<compile_context>
chip_gen: v5e
topology: v5e:2x2
jax: 0.10.0
libtpu: 0.0.40
codegen_flags: <defaults>
</compile_context>

<pallas_src>
import functools

import jax
import jax.numpy as jnp
from jax.experimental import pallas as pl
from jax.experimental.pallas import tpu as pltpu


# ----------------------------------------------------------------------------
# Kernel: fused 4-layer MLP over one (block_n, ·) batch tile
# ----------------------------------------------------------------------------
def _mlp_kernel(x_ref, w1_ref, w2_ref, w3_ref, w4_ref, o_ref):
    x = x_ref[...]                       # (tn, 2)   f32
    w1 = w1_ref[...]                     # (2, 32)   f32

    # Layer 1: K=2 contraction as VPU broadcast-FMA (skips the MXU entirely).
    h = jnp.tanh(x[:, 0:1] * w1[0:1, :] + x[:, 1:2] * w1[1:2, :])    # (tn, 32)

    # Layers 2-4: bf16 MXU matmuls with f32 accumulation; tanh kept in f32.
    h = jnp.tanh(jnp.dot(h.astype(jnp.bfloat16), w2_ref[...],
                         preferred_element_type=jnp.float32))         # (tn, 128)
    h = jnp.tanh(jnp.dot(h.astype(jnp.bfloat16), w3_ref[...],
                         preferred_element_type=jnp.float32))         # (tn, 128)
    y = jnp.tanh(jnp.dot(h.astype(jnp.bfloat16), w4_ref[...],
                         preferred_element_type=jnp.float32))         # (tn, 128)
    o_ref[...] = y.astype(o_ref.dtype)   # lane-dense (tn, 128) store


# ----------------------------------------------------------------------------
# Wrapper
# ----------------------------------------------------------------------------
@functools.partial(jax.jit, static_argnames=("block_n",))
def simple_mapping_net(x, w1, w2, w3, w4, *, block_n=1024):
    """x: (N, 2) f32.  wK: (in_k, out_k) f32 (transposed vs torch's (out, in))."""
    n, in_dim = x.shape
    assert in_dim == 2 and w1.shape[0] == 2
    out_dim = w4.shape[1]                               # 3

    # Lane-dense output: pad W4 columns up to a multiple of 128 (tanh(0)=0,
    # padded columns are sliced away below).
    out_pad = ((out_dim + 127) // 128) * 128            # -> 128
    w4p = jnp.pad(w4, ((0, 0), (0, out_pad - out_dim)))

    # bf16 weights for the MXU layers (f32 accumulation inside the kernel).
    w2b = w2.astype(jnp.bfloat16)
    w3b = w3.astype(jnp.bfloat16)
    w4b = w4p.astype(jnp.bfloat16)

    # Pad the batch to a multiple of the tile; slice off the tail afterwards.
    n_blocks = (n + block_n - 1) // block_n
    n_padded = n_blocks * block_n
    xp = jnp.pad(x, ((0, n_padded - n), (0, 0))) if n_padded != n else x

    # Weights live whole in VMEM for the entire kernel (no double-buffering).
    vmem_full = pl.BlockSpec(memory_space=pltpu.MemorySpace.VMEM)

    out = pl.pallas_call(
        _mlp_kernel,
        out_shape=jax.ShapeDtypeStruct((n_padded, out_pad), jnp.float32),
        grid_spec=pltpu.PrefetchScalarGridSpec(
            num_scalar_prefetch=0,
            grid=(n_blocks,),
            in_specs=[
                pl.BlockSpec((block_n, in_dim), lambda i: (i, 0)),  # x tile
                vmem_full,   # W1 (2, 32)    f32
                vmem_full,   # W2 (32, 128)  bf16
                vmem_full,   # W3 (128, 128) bf16
                vmem_full,   # W4 (128, 128) bf16 (zero-padded cols)
            ],
            out_specs=pl.BlockSpec((block_n, out_pad), lambda i: (i, 0)),
        ),
        compiler_params=pltpu.CompilerParams(
            dimension_semantics=("parallel",),
        ),
    )(xp, w1, w2b, w3b, w4b)

    return out[:n, :out_dim]


# ----------------------------------------------------------------------------
# Deterministic parameter init (Xavier-normal, bias-free, like the torch module)
# ----------------------------------------------------------------------------
def _xavier_normal(key, fan_in, fan_out):
    std = (2.0 / (fan_in + fan_out)) ** 0.5
    # stored as (in, out) so the kernel computes x @ W (== x @ W_torch.T)
    return std * jax.random.normal(key, (fan_in, fan_out), dtype=jnp.float32)


def make_params(key):
    k1, k2, k3, k4 = jax.random.split(key, 4)
    w1 = _xavier_normal(k1, 2, 32)
    w2 = _xavier_normal(k2, 32, 128)
    w3 = _xavier_normal(k3, 128, 128)
    w4 = _xavier_normal(k4, 128, 3)
    return w1, w2, w3, w4


def reference_mlp(x, w1, w2, w3, w4):
    h = jnp.tanh(x @ w1)
    h = jnp.tanh(h @ w2)
    h = jnp.tanh(h @ w3)
    return jnp.tanh(h @ w4)


if __name__ == "__main__":
    key = jax.random.PRNGKey(0)
    kx, kp = jax.random.split(key)

    # A batch of 2-D coordinates; deliberately NOT a multiple of the tile so
    # the padding path is exercised, and 2 grid steps so both v7x TCs get work.
    N = 2000
    x = jax.random.uniform(kx, (N, 2), dtype=jnp.float32)
    w1, w2, w3, w4 = make_params(kp)

    y = simple_mapping_net(x, w1, w2, w3, w4, block_n=1024)
    y = jax.block_until_ready(y)

    y_ref = reference_mlp(x, w1, w2, w3, w4)
    assert y.shape == (N, 3)
    # bf16 MXU inputs with f32 accumulation -> relaxed tolerance vs f32 ref
    # (tanh outputs are bounded in [-1, 1], so this is comfortably tight).
    assert jnp.allclose(y, y_ref, atol=5e-2, rtol=5e-2), "mismatch vs JAX reference"

    print("KERNEL_OK")
</pallas_src>

<mosaic_0001>
module attributes {stable_mosaic.version = 11 : i64} {
  func.func @_mlp_kernel(%arg0: i32, %arg1: memref<1024x2xf32, #tpu.memory_space<vmem>>, %arg2: memref<2x32xf32, #tpu.memory_space<vmem>>, %arg3: memref<32x128xbf16, #tpu.memory_space<vmem>>, %arg4: memref<128x128xbf16, #tpu.memory_space<vmem>>, %arg5: memref<128x128xbf16, #tpu.memory_space<vmem>>, %arg6: memref<1024x128xf32, #tpu.memory_space<vmem>>) attributes {dimension_semantics = [#tpu.dimension_semantics<parallel>], iteration_bounds = array<i64: 2>, scalar_prefetch = 0 : i64, scratch_operands = 0 : i64, tpu.core_type = #tpu.core_type<tc>, window_params = [{transform_indices = @transform_0, window_bounds = array<i64: 1024, 2>}, {pipeline_mode = #tpu.pipeline_mode<synchronous>, transform_indices = @transform_1, window_bounds = array<i64: 2, 32>}, {pipeline_mode = #tpu.pipeline_mode<synchronous>, transform_indices = @transform_2, window_bounds = array<i64: 32, 128>}, {pipeline_mode = #tpu.pipeline_mode<synchronous>, transform_indices = @transform_3, window_bounds = array<i64: 128, 128>}, {pipeline_mode = #tpu.pipeline_mode<synchronous>, transform_indices = @transform_4, window_bounds = array<i64: 128, 128>}, {transform_indices = @transform_5, window_bounds = array<i64: 1024, 128>}]} {
    %c0 = arith.constant 0 : index
    %c0_0 = arith.constant 0 : index
    %0 = vector.load %arg1[%c0, %c0_0] : memref<1024x2xf32, #tpu.memory_space<vmem>>, vector<1024x2xf32>
    %c0_1 = arith.constant 0 : index
    %c0_2 = arith.constant 0 : index
    %1 = vector.load %arg2[%c0_1, %c0_2] : memref<2x32xf32, #tpu.memory_space<vmem>>, vector<2x32xf32>
    %2 = vector.extract_strided_slice %0 {offsets = [0, 0], sizes = [1024, 1], strides = [1, 1]} : vector<1024x2xf32> to vector<1024x1xf32>
    %3 = vector.extract_strided_slice %1 {offsets = [0, 0], sizes = [1, 32], strides = [1, 1]} : vector<2x32xf32> to vector<1x32xf32>
    %4 = vector.broadcast %2 : vector<1024x1xf32> to vector<1024x32xf32>
    %5 = vector.broadcast %3 : vector<1x32xf32> to vector<1024x32xf32>
    %6 = arith.mulf %4, %5 : vector<1024x32xf32>
    %7 = vector.extract_strided_slice %0 {offsets = [0, 1], sizes = [1024, 1], strides = [1, 1]} : vector<1024x2xf32> to vector<1024x1xf32>
    %8 = vector.extract_strided_slice %1 {offsets = [1, 0], sizes = [1, 32], strides = [1, 1]} : vector<2x32xf32> to vector<1x32xf32>
    %9 = vector.broadcast %7 : vector<1024x1xf32> to vector<1024x32xf32>
    %10 = vector.broadcast %8 : vector<1x32xf32> to vector<1024x32xf32>
    %11 = arith.mulf %9, %10 : vector<1024x32xf32>
    %12 = arith.addf %6, %11 : vector<1024x32xf32>
    %13 = math.tanh %12 : vector<1024x32xf32>
    %14 = arith.truncf %13 : vector<1024x32xf32> to vector<1024x32xbf16>
    %c0_3 = arith.constant 0 : index
    %c0_4 = arith.constant 0 : index
    %15 = vector.load %arg3[%c0_3, %c0_4] : memref<32x128xbf16, #tpu.memory_space<vmem>>, vector<32x128xbf16>
    %cst = arith.constant dense<0.000000e+00> : vector<1024x128xf32>
    %16 = tpu.matmul %14, %15, %cst {dimension_numbers = #tpu.dot_dimension_numbers<[1], [0], [0], [1], [0, 0, 1, 1], [], []>} : vector<1024x32xbf16>, vector<32x128xbf16>, vector<1024x128xf32> -> vector<1024x128xf32>
    %17 = math.tanh %16 : vector<1024x128xf32>
    %18 = arith.truncf %17 : vector<1024x128xf32> to vector<1024x128xbf16>
    %c0_5 = arith.constant 0 : index
    %c0_6 = arith.constant 0 : index
    %19 = vector.load %arg4[%c0_5, %c0_6] : memref<128x128xbf16, #tpu.memory_space<vmem>>, vector<128x128xbf16>
    %cst_7 = arith.constant dense<0.000000e+00> : vector<1024x128xf32>
    %20 = tpu.matmul %18, %19, %cst_7 {dimension_numbers = #tpu.dot_dimension_numbers<[1], [0], [0], [1], [0, 0, 1, 1], [], []>} : vector<1024x128xbf16>, vector<128x128xbf16>, vector<1024x128xf32> -> vector<1024x128xf32>
    %21 = math.tanh %20 : vector<1024x128xf32>
    %22 = arith.truncf %21 : vector<1024x128xf32> to vector<1024x128xbf16>
    %c0_8 = arith.constant 0 : index
    %c0_9 = arith.constant 0 : index
    %23 = vector.load %arg5[%c0_8, %c0_9] : memref<128x128xbf16, #tpu.memory_space<vmem>>, vector<128x128xbf16>
    %cst_10 = arith.constant dense<0.000000e+00> : vector<1024x128xf32>
    %24 = tpu.matmul %22, %23, %cst_10 {dimension_numbers = #tpu.dot_dimension_numbers<[1], [0], [0], [1], [0, 0, 1, 1], [], []>} : vector<1024x128xbf16>, vector<128x128xbf16>, vector<1024x128xf32> -> vector<1024x128xf32>
    %25 = math.tanh %24 : vector<1024x128xf32>
    %c0_11 = arith.constant 0 : index
    %c0_12 = arith.constant 0 : index
    %26 = vector.load %arg6[%c0_11, %c0_12] : memref<1024x128xf32, #tpu.memory_space<vmem>>, vector<1024x128xf32>
    tpu.vector_store %arg6[%c0_11, %c0_12], %25 {strides = array<i32>} : memref<1024x128xf32, #tpu.memory_space<vmem>>, vector<1024x128xf32>,
    return
  }
  func.func @transform_0(%arg0: i32) -> (i32, i32) {
    %c0_i32 = arith.constant 0 : i32
    %c0_i32_0 = arith.constant 0 : i32
    return %arg0, %c0_i32 : i32, i32
  }
  func.func @transform_1(%arg0: i32) -> (i32, i32) {
    %c0_i32 = arith.constant 0 : i32
    %c0_i32_0 = arith.constant 0 : i32
    %c0_i32_1 = arith.constant 0 : i32
    return %c0_i32, %c0_i32_0 : i32, i32
  }
  func.func @transform_2(%arg0: i32) -> (i32, i32) {
    %c0_i32 = arith.constant 0 : i32
    %c0_i32_0 = arith.constant 0 : i32
    %c0_i32_1 = arith.constant 0 : i32
    return %c0_i32, %c0_i32_0 : i32, i32
  }
  func.func @transform_3(%arg0: i32) -> (i32, i32) {
    %c0_i32 = arith.constant 0 : i32
    %c0_i32_0 = arith.constant 0 : i32
    %c0_i32_1 = arith.constant 0 : i32
    return %c0_i32, %c0_i32_0 : i32, i32
  }
  func.func @transform_4(%arg0: i32) -> (i32, i32) {
    %c0_i32 = arith.constant 0 : i32
    %c0_i32_0 = arith.constant 0 : i32
    %c0_i32_1 = arith.constant 0 : i32
    return %c0_i32, %c0_i32_0 : i32, i32
  }
  func.func @transform_5(%arg0: i32) -> (i32, i32) {
    %c0_i32 = arith.constant 0 : i32
    %c0_i32_0 = arith.constant 0 : i32
    return %arg0, %c0_i32 : i32, i32
  }
}

</mosaic_0001>

<llo_original>
// kernel: simple_mapping_net.1
$region0: #{simple_mapping_net.1}
  #allocation0 [shape = 'u32[]', space=smem, size = 0x4, offset = 0x4, fixed_abs, tag = 'smem constant byte address 0x4 - core index']
  #allocation1 [shape = 'u32[72,128]{1,0:T(1,128)}', space=vmem, size = 0x9000, scoped, tag = 'internal scratch']
  %s0 = inlined_call_operand.vmem [shape: f32[2048,2], index: 0, kind: input, shape index: {}]
  %s1 = inlined_call_operand.vmem [shape: f32[2,32], index: 1, kind: input, shape index: {}]
  %s2 = inlined_call_operand.vmem [shape: bf16[32,128], index: 2, kind: input, shape index: {}]
  %s3 = inlined_call_operand.vmem [shape: bf16[128,128], index: 3, kind: input, shape index: {}]
  %s4 = inlined_call_operand.vmem [shape: bf16[128,128], index: 4, kind: input, shape index: {}]
  %s5 = inlined_call_operand.vmem [shape: f32[2048,128], index: 5, kind: output, shape index: {}]
  %s6 = sld [smem:[#allocation0]]
  $region53: #{simple_mapping_net.1} parent=0
    _
  %s8 = ssub.s32 1, %s6
  %s9 = scalar_select 0, %s8, %s6
  loop: start=0, step=1, limit=4
  $region2: #{simple_mapping_net.1} parent=0 // loop_pre_header
    _
  $region3: #{simple_mapping_net.1} parent=0 // loop_header
    %s11 = sphi 0, %s15
    %p12 = scmp.ge.s32.totalorder %s11, 4
    %s21 = sphi 0, %s23
    %s24 = sphi 0, %s21
    %s25 = sphi 0, %s24
    %s41 = sphi 0, %s25
    %s45 = sphi 0, %s45
    %s47 = sphi 0, %s45
    %s48 = sphi 0, %s47
    %s62 = sphi 0, %s48
    %s66 = sphi 0, %s66
    %s68 = sphi 0, %s66
    %s69 = sphi 0, %s68
    %s83 = sphi 0, %s69
    %s87 = sphi 0, %s87
    %s89 = sphi 0, %s87
    %s90 = sphi 0, %s89
    %s104 = sphi 0, %s90
    %s108 = sphi 0, %s108
    %s110 = sphi 0, %s108
    %s111 = sphi 0, %s110
    %s125 = sphi 0, %s111
    %s131 = sphi 0, %s133
    %s134 = sphi 0, %s131
    %s135 = sphi 0, %s134
    %s151 = sphi 0, %s135
  $region4: #{simple_mapping_net.1} parent=0 // loop_header_branch
    %14 = sbr.rel (%p12) target = $region8
  $region5: #{simple_mapping_net.1} parent=0 // loop_body
    %s16 = ssub.s32 %s11, 1
    %s17 = ssub.s32 %s11, 2
    %s18 = sadd.s32 %s11, 1
    %s19 = ssub.s32 %s11, %s18
    %p20 = scmp.eq.s32.totalorder %s19, 0
    %s22 = sadd.s32 %s21, 1
    %s23 = scalar_select %p20, %s21, %s22
    %p26 = pneg %p20
    %p27 = scmp.eq.s32.totalorder %s11, 1
    %p28 = por %p26, %p27
    %p29 = scmp.ne.s32.totalorder %s21, %s24
    %p30 = scmp.eq.s32.totalorder %s11, 0
    %p31 = por %p29, %p30
    %p32 = scmp.ne.s32.totalorder %s21, %s24
    %p33 = scmp.eq.s32.totalorder %s16, 1
    %p34 = por %p32, %p33
    %p35 = scmp.ne.s32.totalorder %s24, %s25
    %p36 = scmp.eq.s32.totalorder %s16, 0
    %p37 = por %p35, %p36
    %p38 = scmp.ne.s32.totalorder %s24, %s25
    %p39 = scmp.eq.s32.totalorder %s17, 1
    %p40 = por %p38, %p39
    %p42 = scmp.ne.s32.totalorder %s25, %s41
    %p43 = scmp.eq.s32.totalorder %s17, 0
    %p44 = por %p42, %p43
    %s46 = sadd.s32 %s45, 1
    %p49 = scmp.eq.s32.totalorder %s11, 1
    %p50 = scmp.ne.s32.totalorder %s45, %s47
    %p51 = scmp.eq.s32.totalorder %s11, 0
    %p52 = por %p50, %p51
    %p53 = scmp.ne.s32.totalorder %s45, %s47
    %p54 = scmp.eq.s32.totalorder %s16, 1
    %p55 = por %p53, %p54
    %p56 = scmp.ne.s32.totalorder %s47, %s48
    %p57 = scmp.eq.s32.totalorder %s16, 0
    %p58 = por %p56, %p57
    %p59 = scmp.ne.s32.totalorder %s47, %s48
    %p60 = scmp.eq.s32.totalorder %s17, 1
    %p61 = por %p59, %p60
    %p63 = scmp.ne.s32.totalorder %s48, %s62
    %p64 = scmp.eq.s32.totalorder %s17, 0
    %p65 = por %p63, %p64
    %s67 = sadd.s32 %s66, 1
    %p70 = scmp.eq.s32.totalorder %s11, 1
    %p71 = scmp.ne.s32.totalorder %s66, %s68
    %p72 = scmp.eq.s32.totalorder %s11, 0
    %p73 = por %p71, %p72
    %p74 = scmp.ne.s32.totalorder %s66, %s68
    %p75 = scmp.eq.s32.totalorder %s16, 1
    %p76 = por %p74, %p75
    %p77 = scmp.ne.s32.totalorder %s68, %s69
    %p78 = scmp.eq.s32.totalorder %s16, 0
    %p79 = por %p77, %p78
    %p80 = scmp.ne.s32.totalorder %s68, %s69
    %p81 = scmp.eq.s32.totalorder %s17, 1
    %p82 = por %p80, %p81
    %p84 = scmp.ne.s32.totalorder %s69, %s83
    %p85 = scmp.eq.s32.totalorder %s17, 0
    %p86 = por %p84, %p85
    %s88 = sadd.s32 %s87, 1
    %p91 = scmp.eq.s32.totalorder %s11, 1
    %p92 = scmp.ne.s32.totalorder %s87, %s89
    %p93 = scmp.eq.s32.totalorder %s11, 0
    %p94 = por %p92, %p93
    %p95 = scmp.ne.s32.totalorder %s87, %s89
    %p96 = scmp.eq.s32.totalorder %s16, 1
    %p97 = por %p95, %p96
    %p98 = scmp.ne.s32.totalorder %s89, %s90
    %p99 = scmp.eq.s32.totalorder %s16, 0
    %p100 = por %p98, %p99
    %p101 = scmp.ne.s32.totalorder %s89, %s90
    %p102 = scmp.eq.s32.totalorder %s17, 1
    %p103 = por %p101, %p102
    %p105 = scmp.ne.s32.totalorder %s90, %s104
    %p106 = scmp.eq.s32.totalorder %s17, 0
    %p107 = por %p105, %p106
    %s109 = sadd.s32 %s108, 1
    %p112 = scmp.eq.s32.totalorder %s11, 1
    %p113 = scmp.ne.s32.totalorder %s108, %s110
    %p114 = scmp.eq.s32.totalorder %s11, 0
    %p115 = por %p113, %p114
    %p116 = scmp.ne.s32.totalorder %s108, %s110
    %p117 = scmp.eq.s32.totalorder %s16, 1
    %p118 = por %p116, %p117
    %p119 = scmp.ne.s32.totalorder %s110, %s111
    %p120 = scmp.eq.s32.totalorder %s16, 0
    %p121 = por %p119, %p120
    %p122 = scmp.ne.s32.totalorder %s110, %s111
    %p123 = scmp.eq.s32.totalorder %s17, 1
    %p124 = por %p122, %p123
    %p126 = scmp.ne.s32.totalorder %s111, %s125
    %p127 = scmp.eq.s32.totalorder %s17, 0
    %p128 = por %p126, %p127
    %s129 = ssub.s32 %s11, %s18
    %p130 = scmp.eq.s32.totalorder %s129, 0
    %s132 = sadd.s32 %s131, 1
    %s133 = scalar_select %p130, %s131, %s132
    %p136 = pneg %p130
    %p137 = scmp.eq.s32.totalorder %s11, 1
    %p138 = por %p136, %p137
    %p139 = scmp.ne.s32.totalorder %s131, %s134
    %p140 = scmp.eq.s32.totalorder %s11, 0
    %p141 = por %p139, %p140
    %p142 = scmp.ne.s32.totalorder %s131, %s134
    %p143 = scmp.eq.s32.totalorder %s16, 1
    %p144 = por %p142, %p143
    %p145 = scmp.ne.s32.totalorder %s134, %s135
    %p146 = scmp.eq.s32.totalorder %s16, 0
    %p147 = por %p145, %p146
    %p148 = scmp.ne.s32.totalorder %s134, %s135
    %p149 = scmp.eq.s32.totalorder %s17, 1
    %p150 = por %p148, %p149
    %p152 = scmp.ne.s32.totalorder %s135, %s151
    %p153 = scmp.eq.s32.totalorder %s17, 0
    %p154 = por %p152, %p153
    %p155 = scmp.le.s32.totalorder 1, %s11
    %p156 = scmp.lt.s32.totalorder %s11, 3
    %p157 = pnand %p155, %p156
    %p158 = pneg %p157
    // Predicated region
    $region9: #{simple_mapping_net.1} parent=5 // pred_check
      _
    $region10: #{simple_mapping_net.1} parent=5 // pred_check_branch
      %160 = sbr.rel (%p157) target = $region12
    $region11: #{simple_mapping_net.1} parent=5 // pred_region
      %s161 = ssub.s32 %s11, 1
      // Predicated region
      $region13: #{simple_mapping_net.1} parent=11 // pred_check
        %p162 = pneg %p58
      $region14: #{simple_mapping_net.1} parent=11 // pred_check_branch
        %164 = sbr.rel (%p162) target = $region16
      $region15: #{simple_mapping_net.1} parent=11 // pred_region
        _
      $region16: #{simple_mapping_net.1} parent=11 // pred_fallthru
        _
      // Predicated region
      $region17: #{simple_mapping_net.1} parent=11 // pred_check
        %p165 = pneg %p79
      $region18: #{simple_mapping_net.1} parent=11 // pred_check_branch
        %167 = sbr.rel (%p165) target = $region20
      $region19: #{simple_mapping_net.1} parent=11 // pred_region
        _
      $region20: #{simple_mapping_net.1} parent=11 // pred_fallthru
        _
      // Predicated region
      $region21: #{simple_mapping_net.1} parent=11 // pred_check
        %p168 = pneg %p100
      $region22: #{simple_mapping_net.1} parent=11 // pred_check_branch
        %170 = sbr.rel (%p168) target = $region24
      $region23: #{simple_mapping_net.1} parent=11 // pred_region
        _
      $region24: #{simple_mapping_net.1} parent=11 // pred_fallthru
        _
      // Predicated region
      $region25: #{simple_mapping_net.1} parent=11 // pred_check
        %p171 = pneg %p121
      $region26: #{simple_mapping_net.1} parent=11 // pred_check_branch
        %173 = sbr.rel (%p171) target = $region28
      $region27: #{simple_mapping_net.1} parent=11 // pred_region
        _
      $region28: #{simple_mapping_net.1} parent=11 // pred_fallthru
        _
    $region12: #{simple_mapping_net.1} parent=5 // pred_fallthru
      _
    %p174 = scmp.lt.s32.totalorder %s11, 2
    // Predicated region
    $region29: #{simple_mapping_net.1} parent=5 // pred_check
      %p175 = pneg %p174
    $region30: #{simple_mapping_net.1} parent=5 // pred_check_branch
      %177 = sbr.rel (%p175) target = $region32
    $region31: #{simple_mapping_net.1} parent=5 // pred_region
      // Predicated region
      $region33: #{simple_mapping_net.1} parent=31 // pred_check
        %p178 = pneg %p31
      $region34: #{simple_mapping_net.1} parent=31 // pred_check_branch
        %180 = sbr.rel (%p178) target = $region36
      $region35: #{simple_mapping_net.1} parent=31 // pred_region
        %s181 = smul.u32 128, %s11
        %p182 = scmp.lt.s32.totalorder %s181, 255
        %s183 = scalar_select %p182, %s181, 255
        %s184 = smul.addr %s183, 8
        %s185 = scalar_lea.vmem %s0, %s184
        %s186 = smul.u32 128, %s11
      $region36: #{simple_mapping_net.1} parent=31 // pred_fallthru
        _
    $region32: #{simple_mapping_net.1} parent=5 // pred_fallthru
      _
    %p187 = scmp.le.s32.totalorder 1, %s11
    %p188 = scmp.lt.s32.totalorder %s11, 3
    %p189 = pnand %p187, %p188
    %p190 = pneg %p189
    // Predicated region
    $region37: #{simple_mapping_net.1} parent=5 // pred_check
      _
    $region38: #{simple_mapping_net.1} parent=5 // pred_check_branch
      %192 = sbr.rel (%p189) target = $region40
    $region39: #{simple_mapping_net.1} parent=5 // pred_region
      %s193 = ssub.s32 %s11, 1
      %s194 = smul.u32 128, %s16
      %p195 = scmp.lt.s32.totalorder %s194, 255
      %s196 = scalar_select %p195, %s194, 255
      %s197 = smul.addr %s196, 8
      %s198 = scalar_lea.vmem %s0, %s197
      %p199 = pneg %p37
      %p200 = pneg %p34
      %p201 = pneg %p58
      %p202 = pneg %p55
      %p203 = pneg %p79
      %p204 = pneg %p76
      %p205 = pneg %p100
      %p206 = pneg %p97
      %p207 = pneg %p121
      %p208 = pneg %p118
      %p209 = pneg %p147
      %p210 = pneg %p144
      %s211 = smul.u32 128, %s16
      %p212 = scmp.lt.s32.totalorder %s211, 255
      %s213 = scalar_select %p212, %s211, 255
      %s214 = smul.addr %s213, 8
      %s215 = scalar_lea.vmem %s5, %s214
      %s216 = smul.u32 128, %s16
      %p217 = scmp.lt.s32.totalorder %s216, 255
      %s218 = scalar_select %p217, %s216, 255
      %s219 = smul.addr %s218, 8
      %s220 = scalar_lea.vmem %s0, %s219
      %s221 = smul.u32 128, %s16
      %s222 = smul.u32 128, %s16
      %p223 = scmp.lt.s32.totalorder %s222, 255
      %s224 = scalar_select %p223, %s222, 255
      %s225 = smul.addr %s224, 8
      %s226 = scalar_lea.vmem %s5, %s225
      %s227 = smul.u32 128, %s16
      %v229 = vld [vmem:[%s220] sm:$0xff]
      %v230 = vld [vmem:[%s220 + $0x8] sm:$0xff]
      %v231 = vld [vmem:[%s220 + $0x10] sm:$0xff]
      %v232 = vld [vmem:[%s220 + $0x18] sm:$0xff]
      %v233 = vld [vmem:[%s220 + $0x20] sm:$0xff]
      %v234 = vld [vmem:[%s220 + $0x28] sm:$0xff]
      %v235 = vld [vmem:[%s220 + $0x30] sm:$0xff]
      %v236 = vld [vmem:[%s220 + $0x38] sm:$0xff]
      %v237 = vld [vmem:[%s220 + $0x40] sm:$0xff]
      %v238 = vld [vmem:[%s220 + $0x48] sm:$0xff]
      %v239 = vld [vmem:[%s220 + $0x50] sm:$0xff]
      %v240 = vld [vmem:[%s220 + $0x58] sm:$0xff]
      %v241 = vld [vmem:[%s220 + $0x60] sm:$0xff]
      %v242 = vld [vmem:[%s220 + $0x68] sm:$0xff]
      %v243 = vld [vmem:[%s220 + $0x70] sm:$0xff]
      %v244 = vld [vmem:[%s220 + $0x78] sm:$0xff]
      %v245 = vld [vmem:[%s220 + $0x80] sm:$0xff]
      %v246 = vld [vmem:[%s220 + $0x88] sm:$0xff]
      %v247 = vld [vmem:[%s220 + $0x90] sm:$0xff]
      %v248 = vld [vmem:[%s220 + $0x98] sm:$0xff]
      %v249 = vld [vmem:[%s220 + $0xa0] sm:$0xff]
      %v250 = vld [vmem:[%s220 + $0xa8] sm:$0xff]
      %v251 = vld [vmem:[%s220 + $0xb0] sm:$0xff]
      %v252 = vld [vmem:[%s220 + $0xb8] sm:$0xff]
      %v253 = vld [vmem:[%s220 + $0xc0] sm:$0xff]
      %v254 = vld [vmem:[%s220 + $0xc8] sm:$0xff]
      %v255 = vld [vmem:[%s220 + $0xd0] sm:$0xff]
      %v256 = vld [vmem:[%s220 + $0xd8] sm:$0xff]
      %v257 = vld [vmem:[%s220 + $0xe0] sm:$0xff]
      %v258 = vld [vmem:[%s220 + $0xe8] sm:$0xff]
      %v259 = vld [vmem:[%s220 + $0xf0] sm:$0xff]
      %v260 = vld [vmem:[%s220 + $0xf8] sm:$0xff]
      %v261 = vld [vmem:[%s220 + $0x100] sm:$0xff]
      %v262 = vld [vmem:[%s220 + $0x108] sm:$0xff]
      %v263 = vld [vmem:[%s220 + $0x110] sm:$0xff]
      %v264 = vld [vmem:[%s220 + $0x118] sm:$0xff]
      %v265 = vld [vmem:[%s220 + $0x120] sm:$0xff]
      %v266 = vld [vmem:[%s220 + $0x128] sm:$0xff]
      %v267 = vld [vmem:[%s220 + $0x130] sm:$0xff]
      %v268 = vld [vmem:[%s220 + $0x138] sm:$0xff]
      %v269 = vld [vmem:[%s220 + $0x140] sm:$0xff]
      %v270 = vld [vmem:[%s220 + $0x148] sm:$0xff]
      %v271 = vld [vmem:[%s220 + $0x150] sm:$0xff]
      %v272 = vld [vmem:[%s220 + $0x158] sm:$0xff]
      %v273 = vld [vmem:[%s220 + $0x160] sm:$0xff]
      %v274 = vld [vmem:[%s220 + $0x168] sm:$0xff]
      %v275 = vld [vmem:[%s220 + $0x170] sm:$0xff]
      %v276 = vld [vmem:[%s220 + $0x178] sm:$0xff]
      %v277 = vld [vmem:[%s220 + $0x180] sm:$0xff]
      %v278 = vld [vmem:[%s220 + $0x188] sm:$0xff]
      %v279 = vld [vmem:[%s220 + $0x190] sm:$0xff]
      %v280 = vld [vmem:[%s220 + $0x198] sm:$0xff]
      %v281 = vld [vmem:[%s220 + $0x1a0] sm:$0xff]
      %v282 = vld [vmem:[%s220 + $0x1a8] sm:$0xff]
      %v283 = vld [vmem:[%s220 + $0x1b0] sm:$0xff]
      %v284 = vld [vmem:[%s220 + $0x1b8] sm:$0xff]
      %v285 = vld [vmem:[%s220 + $0x1c0] sm:$0xff]
      %v286 = vld [vmem:[%s220 + $0x1c8] sm:$0xff]
      %v287 = vld [vmem:[%s220 + $0x1d0] sm:$0xff]
      %v288 = vld [vmem:[%s220 + $0x1d8] sm:$0xff]
      %v289 = vld [vmem:[%s220 + $0x1e0] sm:$0xff]
      %v290 = vld [vmem:[%s220 + $0x1e8] sm:$0xff]
      %v291 = vld [vmem:[%s220 + $0x1f0] sm:$0xff]
      %v292 = vld [vmem:[%s220 + $0x1f8] sm:$0xff]
      %v293 = vld [vmem:[%s220 + $0x200] sm:$0xff]
      %v294 = vld [vmem:[%s220 + $0x208] sm:$0xff]
      %v295 = vld [vmem:[%s220 + $0x210] sm:$0xff]
      %v296 = vld [vmem:[%s220 + $0x218] sm:$0xff]
      %v297 = vld [vmem:[%s220 + $0x220] sm:$0xff]
      %v298 = vld [vmem:[%s220 + $0x228] sm:$0xff]
      %v299 = vld [vmem:[%s220 + $0x230] sm:$0xff]
      %v300 = vld [vmem:[%s220 + $0x238] sm:$0xff]
      %v301 = vld [vmem:[%s220 + $0x240] sm:$0xff]
      %v302 = vld [vmem:[%s220 + $0x248] sm:$0xff]
      %v303 = vld [vmem:[%s220 + $0x250] sm:$0xff]
      %v304 = vld [vmem:[%s220 + $0x258] sm:$0xff]
      %v305 = vld [vmem:[%s220 + $0x260] sm:$0xff]
      %v306 = vld [vmem:[%s220 + $0x268] sm:$0xff]
      %v307 = vld [vmem:[%s220 + $0x270] sm:$0xff]
      %v308 = vld [vmem:[%s220 + $0x278] sm:$0xff]
      %v309 = vld [vmem:[%s220 + $0x280] sm:$0xff]
      %v310 = vld [vmem:[%s220 + $0x288] sm:$0xff]
      %v311 = vld [vmem:[%s220 + $0x290] sm:$0xff]
      %v312 = vld [vmem:[%s220 + $0x298] sm:$0xff]
      %v313 = vld [vmem:[%s220 + $0x2a0] sm:$0xff]
      %v314 = vld [vmem:[%s220 + $0x2a8] sm:$0xff]
      %v315 = vld [vmem:[%s220 + $0x2b0] sm:$0xff]
      %v316 = vld [vmem:[%s220 + $0x2b8] sm:$0xff]
      %v317 = vld [vmem:[%s220 + $0x2c0] sm:$0xff]
      %v318 = vld [vmem:[%s220 + $0x2c8] sm:$0xff]
      %v319 = vld [vmem:[%s220 + $0x2d0] sm:$0xff]
      %v320 = vld [vmem:[%s220 + $0x2d8] sm:$0xff]
      %v321 = vld [vmem:[%s220 + $0x2e0] sm:$0xff]
      %v322 = vld [vmem:[%s220 + $0x2e8] sm:$0xff]
      %v323 = vld [vmem:[%s220 + $0x2f0] sm:$0xff]
      %v324 = vld [vmem:[%s220 + $0x2f8] sm:$0xff]
      %v325 = vld [vmem:[%s220 + $0x300] sm:$0xff]
      %v326 = vld [vmem:[%s220 + $0x308] sm:$0xff]
      %v327 = vld [vmem:[%s220 + $0x310] sm:$0xff]
      %v328 = vld [vmem:[%s220 + $0x318] sm:$0xff]
      %v329 = vld [vmem:[%s220 + $0x320] sm:$0xff]
      %v330 = vld [vmem:[%s220 + $0x328] sm:$0xff]
      %v331 = vld [vmem:[%s220 + $0x330] sm:$0xff]
      %v332 = vld [vmem:[%s220 + $0x338] sm:$0xff]
      %v333 = vld [vmem:[%s220 + $0x340] sm:$0xff]
      %v334 = vld [vmem:[%s220 + $0x348] sm:$0xff]
      %v335 = vld [vmem:[%s220 + $0x350] sm:$0xff]
      %v336 = vld [vmem:[%s220 + $0x358] sm:$0xff]
      %v337 = vld [vmem:[%s220 + $0x360] sm:$0xff]
      %v338 = vld [vmem:[%s220 + $0x368] sm:$0xff]
      %v339 = vld [vmem:[%s220 + $0x370] sm:$0xff]
      %v340 = vld [vmem:[%s220 + $0x378] sm:$0xff]
      %v341 = vld [vmem:[%s220 + $0x380] sm:$0xff]
      %v342 = vld [vmem:[%s220 + $0x388] sm:$0xff]
      %v343 = vld [vmem:[%s220 + $0x390] sm:$0xff]
      %v344 = vld [vmem:[%s220 + $0x398] sm:$0xff]
      %v345 = vld [vmem:[%s220 + $0x3a0] sm:$0xff]
      %v346 = vld [vmem:[%s220 + $0x3a8] sm:$0xff]
      %v347 = vld [vmem:[%s220 + $0x3b0] sm:$0xff]
      %v348 = vld [vmem:[%s220 + $0x3b8] sm:$0xff]
      %v349 = vld [vmem:[%s220 + $0x3c0] sm:$0xff]
      %v350 = vld [vmem:[%s220 + $0x3c8] sm:$0xff]
      %v351 = vld [vmem:[%s220 + $0x3d0] sm:$0xff]
      %v352 = vld [vmem:[%s220 + $0x3d8] sm:$0xff]
      %v353 = vld [vmem:[%s220 + $0x3e0] sm:$0xff]
      %v354 = vld [vmem:[%s220 + $0x3e8] sm:$0xff]
      %v355 = vld [vmem:[%s220 + $0x3f0] sm:$0xff]
      %v356 = vld [vmem:[%s220 + $0x3f8] sm:$0xff]
      %v357 = vld [vmem:[%s1] sm:$0x3]
      %359 = vset.pattern.permute.xlu0 0
      %360 = vperm.xlu0 %359, %v229
      %v361 = vpop.permute.xlu0 %360
      %364 = vset.pattern.permute.xlu0 0
      %365 = vperm.xlu0 %364, %v230
      %v366 = vpop.permute.xlu0 %365
      %369 = vset.pattern.permute.xlu0 0
      %370 = vperm.xlu0 %369, %v231
      %v371 = vpop.permute.xlu0 %370
      %374 = vset.pattern.permute.xlu0 0
      %375 = vperm.xlu0 %374, %v232
      %v376 = vpop.permute.xlu0 %375
      %379 = vset.pattern.permute.xlu0 0
      %380 = vperm.xlu0 %379, %v233
      %v381 = vpop.permute.xlu0 %380
      %384 = vset.pattern.permute.xlu0 0
      %385 = vperm.xlu0 %384, %v234
      %v386 = vpop.permute.xlu0 %385
      %389 = vset.pattern.permute.xlu0 0
      %390 = vperm.xlu0 %389, %v235
      %v391 = vpop.permute.xlu0 %390
      %394 = vset.pattern.permute.xlu0 0
      %395 = vperm.xlu0 %394, %v236
      %v396 = vpop.permute.xlu0 %395
      %399 = vset.pattern.permute.xlu0 0
      %400 = vperm.xlu0 %399, %v237
      %v401 = vpop.permute.xlu0 %400
      %404 = vset.pattern.permute.xlu0 0
      %405 = vperm.xlu0 %404, %v238
      %v406 = vpop.permute.xlu0 %405
      %409 = vset.pattern.permute.xlu0 0
      %410 = vperm.xlu0 %409, %v239
      %v411 = vpop.permute.xlu0 %410
      %414 = vset.pattern.permute.xlu0 0
      %415 = vperm.xlu0 %414, %v240
      %v416 = vpop.permute.xlu0 %415
      %419 = vset.pattern.permute.xlu0 0
      %420 = vperm.xlu0 %419, %v241
      %v421 = vpop.permute.xlu0 %420
      %424 = vset.pattern.permute.xlu0 0
      %425 = vperm.xlu0 %424, %v242
      %v426 = vpop.permute.xlu0 %425
      %429 = vset.pattern.permute.xlu0 0
      %430 = vperm.xlu0 %429, %v243
      %v431 = vpop.permute.xlu0 %430
      %434 = vset.pattern.permute.xlu0 0
      %435 = vperm.xlu0 %434, %v244
      %v436 = vpop.permute.xlu0 %435
      %439 = vset.pattern.permute.xlu0 0
      %440 = vperm.xlu0 %439, %v245
      %v441 = vpop.permute.xlu0 %440
      %444 = vset.pattern.permute.xlu0 0
      %445 = vperm.xlu0 %444, %v246
      %v446 = vpop.permute.xlu0 %445
      %449 = vset.pattern.permute.xlu0 0
      %450 = vperm.xlu0 %449, %v247
      %v451 = vpop.permute.xlu0 %450
      %454 = vset.pattern.permute.xlu0 0
      %455 = vperm.xlu0 %454, %v248
      %v456 = vpop.permute.xlu0 %455
      %459 = vset.pattern.permute.xlu0 0
      %460 = vperm.xlu0 %459, %v249
      %v461 = vpop.permute.xlu0 %460
      %464 = vset.pattern.permute.xlu0 0
      %465 = vperm.xlu0 %464, %v250
      %v466 = vpop.permute.xlu0 %465
      %469 = vset.pattern.permute.xlu0 0
      %470 = vperm.xlu0 %469, %v251
      %v471 = vpop.permute.xlu0 %470
      %474 = vset.pattern.permute.xlu0 0
      %475 = vperm.xlu0 %474, %v252
      %v476 = vpop.permute.xlu0 %475
      %479 = vset.pattern.permute.xlu0 0
      %480 = vperm.xlu0 %479, %v253
      %v481 = vpop.permute.xlu0 %480
      %484 = vset.pattern.permute.xlu0 0
      %485 = vperm.xlu0 %484, %v254
      %v486 = vpop.permute.xlu0 %485
      %489 = vset.pattern.permute.xlu0 0
      %490 = vperm.xlu0 %489, %v255
      %v491 = vpop.permute.xlu0 %490
      %494 = vset.pattern.permute.xlu0 0
      %495 = vperm.xlu0 %494, %v256
      %v496 = vpop.permute.xlu0 %495
      %499 = vset.pattern.permute.xlu0 0
      %500 = vperm.xlu0 %499, %v257
      %v501 = vpop.permute.xlu0 %500
      %504 = vset.pattern.permute.xlu0 0
      %505 = vperm.xlu0 %504, %v258
      %v506 = vpop.permute.xlu0 %505
      %509 = vset.pattern.permute.xlu0 0
      %510 = vperm.xlu0 %509, %v259
      %v511 = vpop.permute.xlu0 %510
      %514 = vset.pattern.permute.xlu0 0
      %515 = vperm.xlu0 %514, %v260
      %v516 = vpop.permute.xlu0 %515
      %519 = vset.pattern.permute.xlu0 0
      %520 = vperm.xlu0 %519, %v261
      %v521 = vpop.permute.xlu0 %520
      %524 = vset.pattern.permute.xlu0 0
      %525 = vperm.xlu0 %524, %v262
      %v526 = vpop.permute.xlu0 %525
      %529 = vset.pattern.permute.xlu0 0
      %530 = vperm.xlu0 %529, %v263
      %v531 = vpop.permute.xlu0 %530
      %534 = vset.pattern.permute.xlu0 0
      %535 = vperm.xlu0 %534, %v264
      %v536 = vpop.permute.xlu0 %535
      %539 = vset.pattern.permute.xlu0 0
      %540 = vperm.xlu0 %539, %v265
      %v541 = vpop.permute.xlu0 %540
      %544 = vset.pattern.permute.xlu0 0
      %545 = vperm.xlu0 %544, %v266
      %v546 = vpop.permute.xlu0 %545
      %549 = vset.pattern.permute.xlu0 0
      %550 = vperm.xlu0 %549, %v267
      %v551 = vpop.permute.xlu0 %550
      %554 = vset.pattern.permute.xlu0 0
      %555 = vperm.xlu0 %554, %v268
      %v556 = vpop.permute.xlu0 %555
      %559 = vset.pattern.permute.xlu0 0
      %560 = vperm.xlu0 %559, %v269
      %v561 = vpop.permute.xlu0 %560
      %564 = vset.pattern.permute.xlu0 0
      %565 = vperm.xlu0 %564, %v270
      %v566 = vpop.permute.xlu0 %565
      %569 = vset.pattern.permute.xlu0 0
      %570 = vperm.xlu0 %569, %v271
      %v571 = vpop.permute.xlu0 %570
      %574 = vset.pattern.permute.xlu0 0
      %575 = vperm.xlu0 %574, %v272
      %v576 = vpop.permute.xlu0 %575
      %579 = vset.pattern.permute.xlu0 0
      %580 = vperm.xlu0 %579, %v273
      %v581 = vpop.permute.xlu0 %580
      %584 = vset.pattern.permute.xlu0 0
      %585 = vperm.xlu0 %584, %v274
      %v586 = vpop.permute.xlu0 %585
      %589 = vset.pattern.permute.xlu0 0
      %590 = vperm.xlu0 %589, %v275
      %v591 = vpop.permute.xlu0 %590
      %594 = vset.pattern.permute.xlu0 0
      %595 = vperm.xlu0 %594, %v276
      %v596 = vpop.permute.xlu0 %595
      %599 = vset.pattern.permute.xlu0 0
      %600 = vperm.xlu0 %599, %v277
      %v601 = vpop.permute.xlu0 %600
      %604 = vset.pattern.permute.xlu0 0
      %605 = vperm.xlu0 %604, %v278
      %v606 = vpop.permute.xlu0 %605
      %609 = vset.pattern.permute.xlu0 0
      %610 = vperm.xlu0 %609, %v279
      %v611 = vpop.permute.xlu0 %610
      %614 = vset.pattern.permute.xlu0 0
      %615 = vperm.xlu0 %614, %v280
      %v616 = vpop.permute.xlu0 %615
      %619 = vset.pattern.permute.xlu0 0
      %620 = vperm.xlu0 %619, %v281
      %v621 = vpop.permute.xlu0 %620
      %624 = vset.pattern.permute.xlu0 0
      %625 = vperm.xlu0 %624, %v282
      %v626 = vpop.permute.xlu0 %625
      %629 = vset.pattern.permute.xlu0 0
      %630 = vperm.xlu0 %629, %v283
      %v631 = vpop.permute.xlu0 %630
      %634 = vset.pattern.permute.xlu0 0
      %635 = vperm.xlu0 %634, %v284
      %v636 = vpop.permute.xlu0 %635
      %639 = vset.pattern.permute.xlu0 0
      %640 = vperm.xlu0 %639, %v285
      %v641 = vpop.permute.xlu0 %640
      %644 = vset.pattern.permute.xlu0 0
      %645 = vperm.xlu0 %644, %v286
      %v646 = vpop.permute.xlu0 %645
      %649 = vset.pattern.permute.xlu0 0
      %650 = vperm.xlu0 %649, %v287
      %v651 = vpop.permute.xlu0 %650
      %654 = vset.pattern.permute.xlu0 0
      %655 = vperm.xlu0 %654, %v288
      %v656 = vpop.permute.xlu0 %655
      %659 = vset.pattern.permute.xlu0 0
      %660 = vperm.xlu0 %659, %v289
      %v661 = vpop.permute.xlu0 %660
      %664 = vset.pattern.permute.xlu0 0
      %665 = vperm.xlu0 %664, %v290
      %v666 = vpop.permute.xlu0 %665
      %669 = vset.pattern.permute.xlu0 0
      %670 = vperm.xlu0 %669, %v291
      %v671 = vpop.permute.xlu0 %670
      %674 = vset.pattern.permute.xlu0 0
      %675 = vperm.xlu0 %674, %v292
      %v676 = vpop.permute.xlu0 %675
      %679 = vset.pattern.permute.xlu0 0
      %680 = vperm.xlu0 %679, %v293
      %v681 = vpop.permute.xlu0 %680
      %684 = vset.pattern.permute.xlu0 0
      %685 = vperm.xlu0 %684, %v294
      %v686 = vpop.permute.xlu0 %685
      %689 = vset.pattern.permute.xlu0 0
      %690 = vperm.xlu0 %689, %v295
      %v691 = vpop.permute.xlu0 %690
      %694 = vset.pattern.permute.xlu0 0
      %695 = vperm.xlu0 %694, %v296
      %v696 = vpop.permute.xlu0 %695
      %699 = vset.pattern.permute.xlu0 0
      %700 = vperm.xlu0 %699, %v297
      %v701 = vpop.permute.xlu0 %700
      %704 = vset.pattern.permute.xlu0 0
      %705 = vperm.xlu0 %704, %v298
      %v706 = vpop.permute.xlu0 %705
      %709 = vset.pattern.permute.xlu0 0
      %710 = vperm.xlu0 %709, %v299
      %v711 = vpop.permute.xlu0 %710
      %714 = vset.pattern.permute.xlu0 0
      %715 = vperm.xlu0 %714, %v300
      %v716 = vpop.permute.xlu0 %715
      %719 = vset.pattern.permute.xlu0 0
      %720 = vperm.xlu0 %719, %v301
      %v721 = vpop.permute.xlu0 %720
      %724 = vset.pattern.permute.xlu0 0
      %725 = vperm.xlu0 %724, %v302
      %v726 = vpop.permute.xlu0 %725
      %729 = vset.pattern.permute.xlu0 0
      %730 = vperm.xlu0 %729, %v303
      %v731 = vpop.permute.xlu0 %730
      %734 = vset.pattern.permute.xlu0 0
      %735 = vperm.xlu0 %734, %v304
      %v736 = vpop.permute.xlu0 %735
      %739 = vset.pattern.permute.xlu0 0
      %740 = vperm.xlu0 %739, %v305
      %v741 = vpop.permute.xlu0 %740
      %744 = vset.pattern.permute.xlu0 0
      %745 = vperm.xlu0 %744, %v306
      %v746 = vpop.permute.xlu0 %745
      %749 = vset.pattern.permute.xlu0 0
      %750 = vperm.xlu0 %749, %v307
      %v751 = vpop.permute.xlu0 %750
      %754 = vset.pattern.permute.xlu0 0
      %755 = vperm.xlu0 %754, %v308
      %v756 = vpop.permute.xlu0 %755
      %759 = vset.pattern.permute.xlu0 0
      %760 = vperm.xlu0 %759, %v309
      %v761 = vpop.permute.xlu0 %760
      %764 = vset.pattern.permute.xlu0 0
      %765 = vperm.xlu0 %764, %v310
      %v766 = vpop.permute.xlu0 %765
      %769 = vset.pattern.permute.xlu0 0
      %770 = vperm.xlu0 %769, %v311
      %v771 = vpop.permute.xlu0 %770
      %774 = vset.pattern.permute.xlu0 0
      %775 = vperm.xlu0 %774, %v312
      %v776 = vpop.permute.xlu0 %775
      %779 = vset.pattern.permute.xlu0 0
      %780 = vperm.xlu0 %779, %v313
      %v781 = vpop.permute.xlu0 %780
      %784 = vset.pattern.permute.xlu0 0
      %785 = vperm.xlu0 %784, %v314
      %v786 = vpop.permute.xlu0 %785
      %789 = vset.pattern.permute.xlu0 0
      %790 = vperm.xlu0 %789, %v315
      %v791 = vpop.permute.xlu0 %790
      %794 = vset.pattern.permute.xlu0 0
      %795 = vperm.xlu0 %794, %v316
      %v796 = vpop.permute.xlu0 %795
      %799 = vset.pattern.permute.xlu0 0
      %800 = vperm.xlu0 %799, %v317
      %v801 = vpop.permute.xlu0 %800
      %804 = vset.pattern.permute.xlu0 0
      %805 = vperm.xlu0 %804, %v318
      %v806 = vpop.permute.xlu0 %805
      %809 = vset.pattern.permute.xlu0 0
      %810 = vperm.xlu0 %809, %v319
      %v811 = vpop.permute.xlu0 %810
      %814 = vset.pattern.permute.xlu0 0
      %815 = vperm.xlu0 %814, %v320
      %v816 = vpop.permute.xlu0 %815
      %819 = vset.pattern.permute.xlu0 0
      %820 = vperm.xlu0 %819, %v321
      %v821 = vpop.permute.xlu0 %820
      %824 = vset.pattern.permute.xlu0 0
      %825 = vperm.xlu0 %824, %v322
      %v826 = vpop.permute.xlu0 %825
      %829 = vset.pattern.permute.xlu0 0
      %830 = vperm.xlu0 %829, %v323
      %v831 = vpop.permute.xlu0 %830
      %834 = vset.pattern.permute.xlu0 0
      %835 = vperm.xlu0 %834, %v324
      %v836 = vpop.permute.xlu0 %835
      %839 = vset.pattern.permute.xlu0 0
      %840 = vperm.xlu0 %839, %v325
      %v841 = vpop.permute.xlu0 %840
      %844 = vset.pattern.permute.xlu0 0
      %845 = vperm.xlu0 %844, %v326
      %v846 = vpop.permute.xlu0 %845
      %849 = vset.pattern.permute.xlu0 0
      %850 = vperm.xlu0 %849, %v327
      %v851 = vpop.permute.xlu0 %850
      %854 = vset.pattern.permute.xlu0 0
      %855 = vperm.xlu0 %854, %v328
      %v856 = vpop.permute.xlu0 %855
      %859 = vset.pattern.permute.xlu0 0
      %860 = vperm.xlu0 %859, %v329
      %v861 = vpop.permute.xlu0 %860
      %864 = vset.pattern.permute.xlu0 0
      %865 = vperm.xlu0 %864, %v330
      %v866 = vpop.permute.xlu0 %865
      %869 = vset.pattern.permute.xlu0 0
      %870 = vperm.xlu0 %869, %v331
      %v871 = vpop.permute.xlu0 %870
      %874 = vset.pattern.permute.xlu0 0
      %875 = vperm.xlu0 %874, %v332
      %v876 = vpop.permute.xlu0 %875
      %879 = vset.pattern.permute.xlu0 0
      %880 = vperm.xlu0 %879, %v333
      %v881 = vpop.permute.xlu0 %880
      %884 = vset.pattern.permute.xlu0 0
      %885 = vperm.xlu0 %884, %v334
      %v886 = vpop.permute.xlu0 %885
      %889 = vset.pattern.permute.xlu0 0
      %890 = vperm.xlu0 %889, %v335
      %v891 = vpop.permute.xlu0 %890
      %894 = vset.pattern.permute.xlu0 0
      %895 = vperm.xlu0 %894, %v336
      %v896 = vpop.permute.xlu0 %895
      %899 = vset.pattern.permute.xlu0 0
      %900 = vperm.xlu0 %899, %v337
      %v901 = vpop.permute.xlu0 %900
      %904 = vset.pattern.permute.xlu0 0
      %905 = vperm.xlu0 %904, %v338
      %v906 = vpop.permute.xlu0 %905
      %909 = vset.pattern.permute.xlu0 0
      %910 = vperm.xlu0 %909, %v339
      %v911 = vpop.permute.xlu0 %910
      %914 = vset.pattern.permute.xlu0 0
      %915 = vperm.xlu0 %914, %v340
      %v916 = vpop.permute.xlu0 %915
      %919 = vset.pattern.permute.xlu0 0
      %920 = vperm.xlu0 %919, %v341
      %v921 = vpop.permute.xlu0 %920
      %924 = vset.pattern.permute.xlu0 0
      %925 = vperm.xlu0 %924, %v342
      %v926 = vpop.permute.xlu0 %925
      %929 = vset.pattern.permute.xlu0 0
      %930 = vperm.xlu0 %929, %v343
      %v931 = vpop.permute.xlu0 %930
      %934 = vset.pattern.permute.xlu0 0
      %935 = vperm.xlu0 %934, %v344
      %v936 = vpop.permute.xlu0 %935
      %939 = vset.pattern.permute.xlu0 0
      %940 = vperm.xlu0 %939, %v345
      %v941 = vpop.permute.xlu0 %940
      %944 = vset.pattern.permute.xlu0 0
      %945 = vperm.xlu0 %944, %v346
      %v946 = vpop.permute.xlu0 %945
      %949 = vset.pattern.permute.xlu0 0
      %950 = vperm.xlu0 %949, %v347
      %v951 = vpop.permute.xlu0 %950
      %954 = vset.pattern.permute.xlu0 0
      %955 = vperm.xlu0 %954, %v348
      %v956 = vpop.permute.xlu0 %955
      %959 = vset.pattern.permute.xlu0 0
      %960 = vperm.xlu0 %959, %v349
      %v961 = vpop.permute.xlu0 %960
      %964 = vset.pattern.permute.xlu0 0
      %965 = vperm.xlu0 %964, %v350
      %v966 = vpop.permute.xlu0 %965
      %969 = vset.pattern.permute.xlu0 0
      %970 = vperm.xlu0 %969, %v351
      %v971 = vpop.permute.xlu0 %970
      %974 = vset.pattern.permute.xlu0 0
      %975 = vperm.xlu0 %974, %v352
      %v976 = vpop.permute.xlu0 %975
      %979 = vset.pattern.permute.xlu0 0
      %980 = vperm.xlu0 %979, %v353
      %v981 = vpop.permute.xlu0 %980
      %984 = vset.pattern.permute.xlu0 0
      %985 = vperm.xlu0 %984, %v354
      %v986 = vpop.permute.xlu0 %985
      %989 = vset.pattern.permute.xlu0 0
      %990 = vperm.xlu0 %989, %v355
      %v991 = vpop.permute.xlu0 %990
      %994 = vset.pattern.permute.xlu0 0
      %995 = vperm.xlu0 %994, %v356
      %v996 = vpop.permute.xlu0 %995
      %v998 = vperm.slane %v357, 0
      %v999 = vmul.f32 %v361, %v998
      %v1000 = vmul.f32 %v366, %v998
      %v1001 = vmul.f32 %v371, %v998
      %v1002 = vmul.f32 %v376, %v998
      %v1003 = vmul.f32 %v381, %v998
      %v1004 = vmul.f32 %v386, %v998
      %v1005 = vmul.f32 %v391, %v998
      %v1006 = vmul.f32 %v396, %v998
      %v1007 = vmul.f32 %v401, %v998
      %v1008 = vmul.f32 %v406, %v998
      %v1009 = vmul.f32 %v411, %v998
      %v1010 = vmul.f32 %v416, %v998
      %v1011 = vmul.f32 %v421, %v998
      %v1012 = vmul.f32 %v426, %v998
      %v1013 = vmul.f32 %v431, %v998
      %v1014 = vmul.f32 %v436, %v998
      %v1015 = vmul.f32 %v441, %v998
      %v1016 = vmul.f32 %v446, %v998
      %v1017 = vmul.f32 %v451, %v998
      %v1018 = vmul.f32 %v456, %v998
      %v1019 = vmul.f32 %v461, %v998
      %v1020 = vmul.f32 %v466, %v998
      %v1021 = vmul.f32 %v471, %v998
      %v1022 = vmul.f32 %v476, %v998
      %v1023 = vmul.f32 %v481, %v998
      %v1024 = vmul.f32 %v486, %v998
      %v1025 = vmul.f32 %v491, %v998
      %v1026 = vmul.f32 %v496, %v998
      %v1027 = vmul.f32 %v501, %v998
      %v1028 = vmul.f32 %v506, %v998
      %v1029 = vmul.f32 %v511, %v998
      %v1030 = vmul.f32 %v516, %v998
      %v1031 = vmul.f32 %v521, %v998
      %v1032 = vmul.f32 %v526, %v998
      %v1033 = vmul.f32 %v531, %v998
      %v1034 = vmul.f32 %v536, %v998
      %v1035 = vmul.f32 %v541, %v998
      %v1036 = vmul.f32 %v546, %v998
      %v1037 = vmul.f32 %v551, %v998
      %v1038 = vmul.f32 %v556, %v998
      %v1039 = vmul.f32 %v561, %v998
      %v1040 = vmul.f32 %v566, %v998
      %v1041 = vmul.f32 %v571, %v998
      %v1042 = vmul.f32 %v576, %v998
      %v1043 = vmul.f32 %v581, %v998
      %v1044 = vmul.f32 %v586, %v998
      %v1045 = vmul.f32 %v591, %v998
      %v1046 = vmul.f32 %v596, %v998
      %v1047 = vmul.f32 %v601, %v998
      %v1048 = vmul.f32 %v606, %v998
      %v1049 = vmul.f32 %v611, %v998
      %v1050 = vmul.f32 %v616, %v998
      %v1051 = vmul.f32 %v621, %v998
      %v1052 = vmul.f32 %v626, %v998
      %v1053 = vmul.f32 %v631, %v998
      %v1054 = vmul.f32 %v636, %v998
      %v1055 = vmul.f32 %v641, %v998
      %v1056 = vmul.f32 %v646, %v998
      %v1057 = vmul.f32 %v651, %v998
      %v1058 = vmul.f32 %v656, %v998
      %v1059 = vmul.f32 %v661, %v998
      %v1060 = vmul.f32 %v666, %v998
      %v1061 = vmul.f32 %v671, %v998
      %v1062 = vmul.f32 %v676, %v998
      %v1063 = vmul.f32 %v681, %v998
      %v1064 = vmul.f32 %v686, %v998
      %v1065 = vmul.f32 %v691, %v998
      %v1066 = vmul.f32 %v696, %v998
      %v1067 = vmul.f32 %v701, %v998
      %v1068 = vmul.f32 %v706, %v998
      %v1069 = vmul.f32 %v711, %v998
      %v1070 = vmul.f32 %v716, %v998
      %v1071 = vmul.f32 %v721, %v998
      %v1072 = vmul.f32 %v726, %v998
      %v1073 = vmul.f32 %v731, %v998
      %v1074 = vmul.f32 %v736, %v998
      %v1075 = vmul.f32 %v741, %v998
      %v1076 = vmul.f32 %v746, %v998
      %v1077 = vmul.f32 %v751, %v998
      %v1078 = vmul.f32 %v756, %v998
      %v1079 = vmul.f32 %v761, %v998
      %v1080 = vmul.f32 %v766, %v998
      %v1081 = vmul.f32 %v771, %v998
      %v1082 = vmul.f32 %v776, %v998
      %v1083 = vmul.f32 %v781, %v998
      %v1084 = vmul.f32 %v786, %v998
      %v1085 = vmul.f32 %v791, %v998
      %v1086 = vmul.f32 %v796, %v998
      %v1087 = vmul.f32 %v801, %v998
      %v1088 = vmul.f32 %v806, %v998
      %v1089 = vmul.f32 %v811, %v998
      %v1090 = vmul.f32 %v816, %v998
      %v1091 = vmul.f32 %v821, %v998
      %v1092 = vmul.f32 %v826, %v998
      %v1093 = vmul.f32 %v831, %v998
      %v1094 = vmul.f32 %v836, %v998
      %v1095 = vmul.f32 %v841, %v998
      %v1096 = vmul.f32 %v846, %v998
      %v1097 = vmul.f32 %v851, %v998
      %v1098 = vmul.f32 %v856, %v998
      %v1099 = vmul.f32 %v861, %v998
      %v1100 = vmul.f32 %v866, %v998
      %v1101 = vmul.f32 %v871, %v998
      %v1102 = vmul.f32 %v876, %v998
      %v1103 = vmul.f32 %v881, %v998
      %v1104 = vmul.f32 %v886, %v998
      %v1105 = vmul.f32 %v891, %v998
      %v1106 = vmul.f32 %v896, %v998
      %v1107 = vmul.f32 %v901, %v998
      %v1108 = vmul.f32 %v906, %v998
      %v1109 = vmul.f32 %v911, %v998
      %v1110 = vmul.f32 %v916, %v998
      %v1111 = vmul.f32 %v921, %v998
      %v1112 = vmul.f32 %v926, %v998
      %v1113 = vmul.f32 %v931, %v998
      %v1114 = vmul.f32 %v936, %v998
      %v1115 = vmul.f32 %v941, %v998
      %v1116 = vmul.f32 %v946, %v998
      %v1117 = vmul.f32 %v951, %v998
      %v1118 = vmul.f32 %v956, %v998
      %v1119 = vmul.f32 %v961, %v998
      %v1120 = vmul.f32 %v966, %v998
      %v1121 = vmul.f32 %v971, %v998
      %v1122 = vmul.f32 %v976, %v998
      %v1123 = vmul.f32 %v981, %v998
      %v1124 = vmul.f32 %v986, %v998
      %v1125 = vmul.f32 %v991, %v998
      %v1126 = vmul.f32 %v996, %v998
      %1127 = vset.pattern.permute.xlu0 1
      %1128 = vperm.xlu0 %1127, %v229
      %v1129 = vpop.permute.xlu0 %1128
      %1131 = vset.pattern.permute.xlu0 1
      %1132 = vperm.xlu0 %1131, %v230
      %v1133 = vpop.permute.xlu0 %1132
      %1135 = vset.pattern.permute.xlu0 1
      %1136 = vperm.xlu0 %1135, %v231
      %v1137 = vpop.permute.xlu0 %1136
      %1139 = vset.pattern.permute.xlu0 1
      %1140 = vperm.xlu0 %1139, %v232
      %v1141 = vpop.permute.xlu0 %1140
      %1143 = vset.pattern.permute.xlu0 1
      %1144 = vperm.xlu0 %1143, %v233
      %v1145 = vpop.permute.xlu0 %1144
      %1147 = vset.pattern.permute.xlu0 1
      %1148 = vperm.xlu0 %1147, %v234
      %v1149 = vpop.permute.xlu0 %1148
      %1151 = vset.pattern.permute.xlu0 1
      %1152 = vperm.xlu0 %1151, %v235
      %v1153 = vpop.permute.xlu0 %1152
      %1155 = vset.pattern.permute.xlu0 1
      %1156 = vperm.xlu0 %1155, %v236
      %v1157 = vpop.permute.xlu0 %1156
      %1159 = vset.pattern.permute.xlu0 1
      %1160 = vperm.xlu0 %1159, %v237
      %v1161 = vpop.permute.xlu0 %1160
      %1163 = vset.pattern.permute.xlu0 1
      %1164 = vperm.xlu0 %1163, %v238
      %v1165 = vpop.permute.xlu0 %1164
      %1167 = vset.pattern.permute.xlu0 1
      %1168 = vperm.xlu0 %1167, %v239
      %v1169 = vpop.permute.xlu0 %1168
      %1171 = vset.pattern.permute.xlu0 1
      %1172 = vperm.xlu0 %1171, %v240
      %v1173 = vpop.permute.xlu0 %1172
      %1175 = vset.pattern.permute.xlu0 1
      %1176 = vperm.xlu0 %1175, %v241
      %v1177 = vpop.permute.xlu0 %1176
      %1179 = vset.pattern.permute.xlu0 1
      %1180 = vperm.xlu0 %1179, %v242
      %v1181 = vpop.permute.xlu0 %1180
      %1183 = vset.pattern.permute.xlu0 1
      %1184 = vperm.xlu0 %1183, %v243
      %v1185 = vpop.permute.xlu0 %1184
      %1187 = vset.pattern.permute.xlu0 1
      %1188 = vperm.xlu0 %1187, %v244
      %v1189 = vpop.permute.xlu0 %1188
      %1191 = vset.pattern.permute.xlu0 1
      %1192 = vperm.xlu0 %1191, %v245
      %v1193 = vpop.permute.xlu0 %1192
      %1195 = vset.pattern.permute.xlu0 1
      %1196 = vperm.xlu0 %1195, %v246
      %v1197 = vpop.permute.xlu0 %1196
      %1199 = vset.pattern.permute.xlu0 1
      %1200 = vperm.xlu0 %1199, %v247
      %v1201 = vpop.permute.xlu0 %1200
      %1203 = vset.pattern.permute.xlu0 1
      %1204 = vperm.xlu0 %1203, %v248
      %v1205 = vpop.permute.xlu0 %1204
      %1207 = vset.pattern.permute.xlu0 1
      %1208 = vperm.xlu0 %1207, %v249
      %v1209 = vpop.permute.xlu0 %1208
      %1211 = vset.pattern.permute.xlu0 1
      %1212 = vperm.xlu0 %1211, %v250
      %v1213 = vpop.permute.xlu0 %1212
      %1215 = vset.pattern.permute.xlu0 1
      %1216 = vperm.xlu0 %1215, %v251
      %v1217 = vpop.permute.xlu0 %1216
      %1219 = vset.pattern.permute.xlu0 1
      %1220 = vperm.xlu0 %1219, %v252
      %v1221 = vpop.permute.xlu0 %1220
      %1223 = vset.pattern.permute.xlu0 1
      %1224 = vperm.xlu0 %1223, %v253
      %v1225 = vpop.permute.xlu0 %1224
      %1227 = vset.pattern.permute.xlu0 1
      %1228 = vperm.xlu0 %1227, %v254
      %v1229 = vpop.permute.xlu0 %1228
      %1231 = vset.pattern.permute.xlu0 1
      %1232 = vperm.xlu0 %1231, %v255
      %v1233 = vpop.permute.xlu0 %1232
      %1235 = vset.pattern.permute.xlu0 1
      %1236 = vperm.xlu0 %1235, %v256
      %v1237 = vpop.permute.xlu0 %1236
      %1239 = vset.pattern.permute.xlu0 1
      %1240 = vperm.xlu0 %1239, %v257
      %v1241 = vpop.permute.xlu0 %1240
      %1243 = vset.pattern.permute.xlu0 1
      %1244 = vperm.xlu0 %1243, %v258
      %v1245 = vpop.permute.xlu0 %1244
      %1247 = vset.pattern.permute.xlu0 1
      %1248 = vperm.xlu0 %1247, %v259
      %v1249 = vpop.permute.xlu0 %1248
      %1251 = vset.pattern.permute.xlu0 1
      %1252 = vperm.xlu0 %1251, %v260
      %v1253 = vpop.permute.xlu0 %1252
      %1255 = vset.pattern.permute.xlu0 1
      %1256 = vperm.xlu0 %1255, %v261
      %v1257 = vpop.permute.xlu0 %1256
      %1259 = vset.pattern.permute.xlu0 1
      %1260 = vperm.xlu0 %1259, %v262
      %v1261 = vpop.permute.xlu0 %1260
      %1263 = vset.pattern.permute.xlu0 1
      %1264 = vperm.xlu0 %1263, %v263
      %v1265 = vpop.permute.xlu0 %1264
      %1267 = vset.pattern.permute.xlu0 1
      %1268 = vperm.xlu0 %1267, %v264
      %v1269 = vpop.permute.xlu0 %1268
      %1271 = vset.pattern.permute.xlu0 1
      %1272 = vperm.xlu0 %1271, %v265
      %v1273 = vpop.permute.xlu0 %1272
      %1275 = vset.pattern.permute.xlu0 1
      %1276 = vperm.xlu0 %1275, %v266
      %v1277 = vpop.permute.xlu0 %1276
      %1279 = vset.pattern.permute.xlu0 1
      %1280 = vperm.xlu0 %1279, %v267
      %v1281 = vpop.permute.xlu0 %1280
      %1283 = vset.pattern.permute.xlu0 1
      %1284 = vperm.xlu0 %1283, %v268
      %v1285 = vpop.permute.xlu0 %1284
      %1287 = vset.pattern.permute.xlu0 1
      %1288 = vperm.xlu0 %1287, %v269
      %v1289 = vpop.permute.xlu0 %1288
      %1291 = vset.pattern.permute.xlu0 1
      %1292 = vperm.xlu0 %1291, %v270
      %v1293 = vpop.permute.xlu0 %1292
      %1295 = vset.pattern.permute.xlu0 1
      %1296 = vperm.xlu0 %1295, %v271
      %v1297 = vpop.permute.xlu0 %1296
      %1299 = vset.pattern.permute.xlu0 1
      %1300 = vperm.xlu0 %1299, %v272
      %v1301 = vpop.permute.xlu0 %1300
      %1303 = vset.pattern.permute.xlu0 1
      %1304 = vperm.xlu0 %1303, %v273
      %v1305 = vpop.permute.xlu0 %1304
      %1307 = vset.pattern.permute.xlu0 1
      %1308 = vperm.xlu0 %1307, %v274
      %v1309 = vpop.permute.xlu0 %1308
      %1311 = vset.pattern.permute.xlu0 1
      %1312 = vperm.xlu0 %1311, %v275
      %v1313 = vpop.permute.xlu0 %1312
      %1315 = vset.pattern.permute.xlu0 1
      %1316 = vperm.xlu0 %1315, %v276
      %v1317 = vpop.permute.xlu0 %1316
      %1319 = vset.pattern.permute.xlu0 1
      %1320 = vperm.xlu0 %1319, %v277
      %v1321 = vpop.permute.xlu0 %1320
      %1323 = vset.pattern.permute.xlu0 1
      %1324 = vperm.xlu0 %1323, %v278
      %v1325 = vpop.permute.xlu0 %1324
      %1327 = vset.pattern.permute.xlu0 1
      %1328 = vperm.xlu0 %1327, %v279
      %v1329 = vpop.permute.xlu0 %1328
      %1331 = vset.pattern.permute.xlu0 1
      %1332 = vperm.xlu0 %1331, %v280
      %v1333 = vpop.permute.xlu0 %1332
      %1335 = vset.pattern.permute.xlu0 1
      %1336 = vperm.xlu0 %1335, %v281
      %v1337 = vpop.permute.xlu0 %1336
      %1339 = vset.pattern.permute.xlu0 1
      %1340 = vperm.xlu0 %1339, %v282
      %v1341 = vpop.permute.xlu0 %1340
      %1343 = vset.pattern.permute.xlu0 1
      %1344 = vperm.xlu0 %1343, %v283
      %v1345 = vpop.permute.xlu0 %1344
      %1347 = vset.pattern.permute.xlu0 1
      %1348 = vperm.xlu0 %1347, %v284
      %v1349 = vpop.permute.xlu0 %1348
      %1351 = vset.pattern.permute.xlu0 1
      %1352 = vperm.xlu0 %1351, %v285
      %v1353 = vpop.permute.xlu0 %1352
      %1355 = vset.pattern.permute.xlu0 1
      %1356 = vperm.xlu0 %1355, %v286
      %v1357 = vpop.permute.xlu0 %1356
      %1359 = vset.pattern.permute.xlu0 1
      %1360 = vperm.xlu0 %1359, %v287
      %v1361 = vpop.permute.xlu0 %1360
      %1363 = vset.pattern.permute.xlu0 1
      %1364 = vperm.xlu0 %1363, %v288
      %v1365 = vpop.permute.xlu0 %1364
      %1367 = vset.pattern.permute.xlu0 1
      %1368 = vperm.xlu0 %1367, %v289
      %v1369 = vpop.permute.xlu0 %1368
      %1371 = vset.pattern.permute.xlu0 1
      %1372 = vperm.xlu0 %1371, %v290
      %v1373 = vpop.permute.xlu0 %1372
      %1375 = vset.pattern.permute.xlu0 1
      %1376 = vperm.xlu0 %1375, %v291
      %v1377 = vpop.permute.xlu0 %1376
      %1379 = vset.pattern.permute.xlu0 1
      %1380 = vperm.xlu0 %1379, %v292
      %v1381 = vpop.permute.xlu0 %1380
      %1383 = vset.pattern.permute.xlu0 1
      %1384 = vperm.xlu0 %1383, %v293
      %v1385 = vpop.permute.xlu0 %1384
      %1387 = vset.pattern.permute.xlu0 1
      %1388 = vperm.xlu0 %1387, %v294
      %v1389 = vpop.permute.xlu0 %1388
      %1391 = vset.pattern.permute.xlu0 1
      %1392 = vperm.xlu0 %1391, %v295
      %v1393 = vpop.permute.xlu0 %1392
      %1395 = vset.pattern.permute.xlu0 1
      %1396 = vperm.xlu0 %1395, %v296
      %v1397 = vpop.permute.xlu0 %1396
      %1399 = vset.pattern.permute.xlu0 1
      %1400 = vperm.xlu0 %1399, %v297
      %v1401 = vpop.permute.xlu0 %1400
      %1403 = vset.pattern.permute.xlu0 1
      %1404 = vperm.xlu0 %1403, %v298
      %v1405 = vpop.permute.xlu0 %1404
      %1407 = vset.pattern.permute.xlu0 1
      %1408 = vperm.xlu0 %1407, %v299
      %v1409 = vpop.permute.xlu0 %1408
      %1411 = vset.pattern.permute.xlu0 1
      %1412 = vperm.xlu0 %1411, %v300
      %v1413 = vpop.permute.xlu0 %1412
      %1415 = vset.pattern.permute.xlu0 1
      %1416 = vperm.xlu0 %1415, %v301
      %v1417 = vpop.permute.xlu0 %1416
      %1419 = vset.pattern.permute.xlu0 1
      %1420 = vperm.xlu0 %1419, %v302
      %v1421 = vpop.permute.xlu0 %1420
      %1423 = vset.pattern.permute.xlu0 1
      %1424 = vperm.xlu0 %1423, %v303
      %v1425 = vpop.permute.xlu0 %1424
      %1427 = vset.pattern.permute.xlu0 1
      %1428 = vperm.xlu0 %1427, %v304
      %v1429 = vpop.permute.xlu0 %1428
      %1431 = vset.pattern.permute.xlu0 1
      %1432 = vperm.xlu0 %1431, %v305
      %v1433 = vpop.permute.xlu0 %1432
      %1435 = vset.pattern.permute.xlu0 1
      %1436 = vperm.xlu0 %1435, %v306
      %v1437 = vpop.permute.xlu0 %1436
      %1439 = vset.pattern.permute.xlu0 1
      %1440 = vperm.xlu0 %1439, %v307
      %v1441 = vpop.permute.xlu0 %1440
      %1443 = vset.pattern.permute.xlu0 1
      %1444 = vperm.xlu0 %1443, %v308
      %v1445 = vpop.permute.xlu0 %1444
      %1447 = vset.pattern.permute.xlu0 1
      %1448 = vperm.xlu0 %1447, %v309
      %v1449 = vpop.permute.xlu0 %1448
      %1451 = vset.pattern.permute.xlu0 1
      %1452 = vperm.xlu0 %1451, %v310
      %v1453 = vpop.permute.xlu0 %1452
      %1455 = vset.pattern.permute.xlu0 1
      %1456 = vperm.xlu0 %1455, %v311
      %v1457 = vpop.permute.xlu0 %1456
      %1459 = vset.pattern.permute.xlu0 1
      %1460 = vperm.xlu0 %1459, %v312
      %v1461 = vpop.permute.xlu0 %1460
      %1463 = vset.pattern.permute.xlu0 1
      %1464 = vperm.xlu0 %1463, %v313
      %v1465 = vpop.permute.xlu0 %1464
      %1467 = vset.pattern.permute.xlu0 1
      %1468 = vperm.xlu0 %1467, %v314
      %v1469 = vpop.permute.xlu0 %1468
      %1471 = vset.pattern.permute.xlu0 1
      %1472 = vperm.xlu0 %1471, %v315
      %v1473 = vpop.permute.xlu0 %1472
      %1475 = vset.pattern.permute.xlu0 1
      %1476 = vperm.xlu0 %1475, %v316
      %v1477 = vpop.permute.xlu0 %1476
      %1479 = vset.pattern.permute.xlu0 1
      %1480 = vperm.xlu0 %1479, %v317
      %v1481 = vpop.permute.xlu0 %1480
      %1483 = vset.pattern.permute.xlu0 1
      %1484 = vperm.xlu0 %1483, %v318
      %v1485 = vpop.permute.xlu0 %1484
      %1487 = vset.pattern.permute.xlu0 1
      %1488 = vperm.xlu0 %1487, %v319
      %v1489 = vpop.permute.xlu0 %1488
      %1491 = vset.pattern.permute.xlu0 1
      %1492 = vperm.xlu0 %1491, %v320
      %v1493 = vpop.permute.xlu0 %1492
      %1495 = vset.pattern.permute.xlu0 1
      %1496 = vperm.xlu0 %1495, %v321
      %v1497 = vpop.permute.xlu0 %1496
      %1499 = vset.pattern.permute.xlu0 1
      %1500 = vperm.xlu0 %1499, %v322
      %v1501 = vpop.permute.xlu0 %1500
      %1503 = vset.pattern.permute.xlu0 1
      %1504 = vperm.xlu0 %1503, %v323
      %v1505 = vpop.permute.xlu0 %1504
      %1507 = vset.pattern.permute.xlu0 1
      %1508 = vperm.xlu0 %1507, %v324
      %v1509 = vpop.permute.xlu0 %1508
      %1511 = vset.pattern.permute.xlu0 1
      %1512 = vperm.xlu0 %1511, %v325
      %v1513 = vpop.permute.xlu0 %1512
      %1515 = vset.pattern.permute.xlu0 1
      %1516 = vperm.xlu0 %1515, %v326
      %v1517 = vpop.permute.xlu0 %1516
      %1519 = vset.pattern.permute.xlu0 1
      %1520 = vperm.xlu0 %1519, %v327
      %v1521 = vpop.permute.xlu0 %1520
      %1523 = vset.pattern.permute.xlu0 1
      %1524 = vperm.xlu0 %1523, %v328
      %v1525 = vpop.permute.xlu0 %1524
      %1527 = vset.pattern.permute.xlu0 1
      %1528 = vperm.xlu0 %1527, %v329
      %v1529 = vpop.permute.xlu0 %1528
      %1531 = vset.pattern.permute.xlu0 1
      %1532 = vperm.xlu0 %1531, %v330
      %v1533 = vpop.permute.xlu0 %1532
      %1535 = vset.pattern.permute.xlu0 1
      %1536 = vperm.xlu0 %1535, %v331
      %v1537 = vpop.permute.xlu0 %1536
      %1539 = vset.pattern.permute.xlu0 1
      %1540 = vperm.xlu0 %1539, %v332
      %v1541 = vpop.permute.xlu0 %1540
      %1543 = vset.pattern.permute.xlu0 1
      %1544 = vperm.xlu0 %1543, %v333
      %v1545 = vpop.permute.xlu0 %1544
      %1547 = vset.pattern.permute.xlu0 1
      %1548 = vperm.xlu0 %1547, %v334
      %v1549 = vpop.permute.xlu0 %1548
      %1551 = vset.pattern.permute.xlu0 1
      %1552 = vperm.xlu0 %1551, %v335
      %v1553 = vpop.permute.xlu0 %1552
      %1555 = vset.pattern.permute.xlu0 1
      %1556 = vperm.xlu0 %1555, %v336
      %v1557 = vpop.permute.xlu0 %1556
      %1559 = vset.pattern.permute.xlu0 1
      %1560 = vperm.xlu0 %1559, %v337
      %v1561 = vpop.permute.xlu0 %1560
      %1563 = vset.pattern.permute.xlu0 1
      %1564 = vperm.xlu0 %1563, %v338
      %v1565 = vpop.permute.xlu0 %1564
      %1567 = vset.pattern.permute.xlu0 1
      %1568 = vperm.xlu0 %1567, %v339
      %v1569 = vpop.permute.xlu0 %1568
      %1571 = vset.pattern.permute.xlu0 1
      %1572 = vperm.xlu0 %1571, %v340
      %v1573 = vpop.permute.xlu0 %1572
      %1575 = vset.pattern.permute.xlu0 1
      %1576 = vperm.xlu0 %1575, %v341
      %v1577 = vpop.permute.xlu0 %1576
      %1579 = vset.pattern.permute.xlu0 1
      %1580 = vperm.xlu0 %1579, %v342
      %v1581 = vpop.permute.xlu0 %1580
      %1583 = vset.pattern.permute.xlu0 1
      %1584 = vperm.xlu0 %1583, %v343
      %v1585 = vpop.permute.xlu0 %1584
      %1587 = vset.pattern.permute.xlu0 1
      %1588 = vperm.xlu0 %1587, %v344
      %v1589 = vpop.permute.xlu0 %1588
      %1591 = vset.pattern.permute.xlu0 1
      %1592 = vperm.xlu0 %1591, %v345
      %v1593 = vpop.permute.xlu0 %1592
      %1595 = vset.pattern.permute.xlu0 1
      %1596 = vperm.xlu0 %1595, %v346
      %v1597 = vpop.permute.xlu0 %1596
      %1599 = vset.pattern.permute.xlu0 1
      %1600 = vperm.xlu0 %1599, %v347
      %v1601 = vpop.permute.xlu0 %1600
      %1603 = vset.pattern.permute.xlu0 1
      %1604 = vperm.xlu0 %1603, %v348
      %v1605 = vpop.permute.xlu0 %1604
      %1607 = vset.pattern.permute.xlu0 1
      %1608 = vperm.xlu0 %1607, %v349
      %v1609 = vpop.permute.xlu0 %1608
      %1611 = vset.pattern.permute.xlu0 1
      %1612 = vperm.xlu0 %1611, %v350
      %v1613 = vpop.permute.xlu0 %1612
      %1615 = vset.pattern.permute.xlu0 1
      %1616 = vperm.xlu0 %1615, %v351
      %v1617 = vpop.permute.xlu0 %1616
      %1619 = vset.pattern.permute.xlu0 1
      %1620 = vperm.xlu0 %1619, %v352
      %v1621 = vpop.permute.xlu0 %1620
      %1623 = vset.pattern.permute.xlu0 1
      %1624 = vperm.xlu0 %1623, %v353
      %v1625 = vpop.permute.xlu0 %1624
      %1627 = vset.pattern.permute.xlu0 1
      %1628 = vperm.xlu0 %1627, %v354
      %v1629 = vpop.permute.xlu0 %1628
      %1631 = vset.pattern.permute.xlu0 1
      %1632 = vperm.xlu0 %1631, %v355
      %v1633 = vpop.permute.xlu0 %1632
      %1635 = vset.pattern.permute.xlu0 1
      %1636 = vperm.xlu0 %1635, %v356
      %v1637 = vpop.permute.xlu0 %1636
      %v1639 = vperm.slane %v357, 1
      %v1640 = vmul.f32 %v1129, %v1639
      %v1641 = vmul.f32 %v1133, %v1639
      %v1642 = vmul.f32 %v1137, %v1639
      %v1643 = vmul.f32 %v1141, %v1639
      %v1644 = vmul.f32 %v1145, %v1639
      %v1645 = vmul.f32 %v1149, %v1639
      %v1646 = vmul.f32 %v1153, %v1639
      %v1647 = vmul.f32 %v1157, %v1639
      %v1648 = vmul.f32 %v1161, %v1639
      %v1649 = vmul.f32 %v1165, %v1639
      %v1650 = vmul.f32 %v1169, %v1639
      %v1651 = vmul.f32 %v1173, %v1639
      %v1652 = vmul.f32 %v1177, %v1639
      %v1653 = vmul.f32 %v1181, %v1639
      %v1654 = vmul.f32 %v1185, %v1639
      %v1655 = vmul.f32 %v1189, %v1639
      %v1656 = vmul.f32 %v1193, %v1639
      %v1657 = vmul.f32 %v1197, %v1639
      %v1658 = vmul.f32 %v1201, %v1639
      %v1659 = vmul.f32 %v1205, %v1639
      %v1660 = vmul.f32 %v1209, %v1639
      %v1661 = vmul.f32 %v1213, %v1639
      %v1662 = vmul.f32 %v1217, %v1639
      %v1663 = vmul.f32 %v1221, %v1639
      %v1664 = vmul.f32 %v1225, %v1639
      %v1665 = vmul.f32 %v1229, %v1639
      %v1666 = vmul.f32 %v1233, %v1639
      %v1667 = vmul.f32 %v1237, %v1639
      %v1668 = vmul.f32 %v1241, %v1639
      %v1669 = vmul.f32 %v1245, %v1639
      %v1670 = vmul.f32 %v1249, %v1639
      %v1671 = vmul.f32 %v1253, %v1639
      %v1672 = vmul.f32 %v1257, %v1639
      %v1673 = vmul.f32 %v1261, %v1639
      %v1674 = vmul.f32 %v1265, %v1639
      %v1675 = vmul.f32 %v1269, %v1639
      %v1676 = vmul.f32 %v1273, %v1639
      %v1677 = vmul.f32 %v1277, %v1639
      %v1678 = vmul.f32 %v1281, %v1639
      %v1679 = vmul.f32 %v1285, %v1639
      %v1680 = vmul.f32 %v1289, %v1639
      %v1681 = vmul.f32 %v1293, %v1639
      %v1682 = vmul.f32 %v1297, %v1639
      %v1683 = vmul.f32 %v1301, %v1639
      %v1684 = vmul.f32 %v1305, %v1639
      %v1685 = vmul.f32 %v1309, %v1639
      %v1686 = vmul.f32 %v1313, %v1639
      %v1687 = vmul.f32 %v1317, %v1639
      %v1688 = vmul.f32 %v1321, %v1639
      %v1689 = vmul.f32 %v1325, %v1639
      %v1690 = vmul.f32 %v1329, %v1639
      %v1691 = vmul.f32 %v1333, %v1639
      %v1692 = vmul.f32 %v1337, %v1639
      %v1693 = vmul.f32 %v1341, %v1639
      %v1694 = vmul.f32 %v1345, %v1639
      %v1695 = vmul.f32 %v1349, %v1639
      %v1696 = vmul.f32 %v1353, %v1639
      %v1697 = vmul.f32 %v1357, %v1639
      %v1698 = vmul.f32 %v1361, %v1639
      %v1699 = vmul.f32 %v1365, %v1639
      %v1700 = vmul.f32 %v1369, %v1639
      %v1701 = vmul.f32 %v1373, %v1639
      %v1702 = vmul.f32 %v1377, %v1639
      %v1703 = vmul.f32 %v1381, %v1639
      %v1704 = vmul.f32 %v1385, %v1639
      %v1705 = vmul.f32 %v1389, %v1639
      %v1706 = vmul.f32 %v1393, %v1639
      %v1707 = vmul.f32 %v1397, %v1639
      %v1708 = vmul.f32 %v1401, %v1639
      %v1709 = vmul.f32 %v1405, %v1639
      %v1710 = vmul.f32 %v1409, %v1639
      %v1711 = vmul.f32 %v1413, %v1639
      %v1712 = vmul.f32 %v1417, %v1639
      %v1713 = vmul.f32 %v1421, %v1639
      %v1714 = vmul.f32 %v1425, %v1639
      %v1715 = vmul.f32 %v1429, %v1639
      %v1716 = vmul.f32 %v1433, %v1639
      %v1717 = vmul.f32 %v1437, %v1639
      %v1718 = vmul.f32 %v1441, %v1639
      %v1719 = vmul.f32 %v1445, %v1639
      %v1720 = vmul.f32 %v1449, %v1639
      %v1721 = vmul.f32 %v1453, %v1639
      %v1722 = vmul.f32 %v1457, %v1639
      %v1723 = vmul.f32 %v1461, %v1639
      %v1724 = vmul.f32 %v1465, %v1639
      %v1725 = vmul.f32 %v1469, %v1639
      %v1726 = vmul.f32 %v1473, %v1639
      %v1727 = vmul.f32 %v1477, %v1639
      %v1728 = vmul.f32 %v1481, %v1639
      %v1729 = vmul.f32 %v1485, %v1639
      %v1730 = vmul.f32 %v1489, %v1639
      %v1731 = vmul.f32 %v1493, %v1639
      %v1732 = vmul.f32 %v1497, %v1639
      %v1733 = vmul.f32 %v1501, %v1639
      %v1734 = vmul.f32 %v1505, %v1639
      %v1735 = vmul.f32 %v1509, %v1639
      %v1736 = vmul.f32 %v1513, %v1639
      %v1737 = vmul.f32 %v1517, %v1639
      %v1738 = vmul.f32 %v1521, %v1639
      %v1739 = vmul.f32 %v1525, %v1639
      %v1740 = vmul.f32 %v1529, %v1639
      %v1741 = vmul.f32 %v1533, %v1639
      %v1742 = vmul.f32 %v1537, %v1639
      %v1743 = vmul.f32 %v1541, %v1639
      %v1744 = vmul.f32 %v1545, %v1639
      %v1745 = vmul.f32 %v1549, %v1639
      %v1746 = vmul.f32 %v1553, %v1639
      %v1747 = vmul.f32 %v1557, %v1639
      %v1748 = vmul.f32 %v1561, %v1639
      %v1749 = vmul.f32 %v1565, %v1639
      %v1750 = vmul.f32 %v1569, %v1639
      %v1751 = vmul.f32 %v1573, %v1639
      %v1752 = vmul.f32 %v1577, %v1639
      %v1753 = vmul.f32 %v1581, %v1639
      %v1754 = vmul.f32 %v1585, %v1639
      %v1755 = vmul.f32 %v1589, %v1639
      %v1756 = vmul.f32 %v1593, %v1639
      %v1757 = vmul.f32 %v1597, %v1639
      %v1758 = vmul.f32 %v1601, %v1639
      %v1759 = vmul.f32 %v1605, %v1639
      %v1760 = vmul.f32 %v1609, %v1639
      %v1761 = vmul.f32 %v1613, %v1639
      %v1762 = vmul.f32 %v1617, %v1639
      %v1763 = vmul.f32 %v1621, %v1639
      %v1764 = vmul.f32 %v1625, %v1639
      %v1765 = vmul.f32 %v1629, %v1639
      %v1766 = vmul.f32 %v1633, %v1639
      %v1767 = vmul.f32 %v1637, %v1639
      %v1768 = vadd.f32 %v999, %v1640
      %v1769 = vadd.f32 %v1000, %v1641
      %v1770 = vadd.f32 %v1001, %v1642
      %v1771 = vadd.f32 %v1002, %v1643
      %v1772 = vadd.f32 %v1003, %v1644
      %v1773 = vadd.f32 %v1004, %v1645
      %v1774 = vadd.f32 %v1005, %v1646
      %v1775 = vadd.f32 %v1006, %v1647
      %v1776 = vadd.f32 %v1007, %v1648
      %v1777 = vadd.f32 %v1008, %v1649
      %v1778 = vadd.f32 %v1009, %v1650
      %v1779 = vadd.f32 %v1010, %v1651
      %v1780 = vadd.f32 %v1011, %v1652
      %v1781 = vadd.f32 %v1012, %v1653
      %v1782 = vadd.f32 %v1013, %v1654
      %v1783 = vadd.f32 %v1014, %v1655
      %v1784 = vadd.f32 %v1015, %v1656
      %v1785 = vadd.f32 %v1016, %v1657
      %v1786 = vadd.f32 %v1017, %v1658
      %v1787 = vadd.f32 %v1018, %v1659
      %v1788 = vadd.f32 %v1019, %v1660
      %v1789 = vadd.f32 %v1020, %v1661
      %v1790 = vadd.f32 %v1021, %v1662
      %v1791 = vadd.f32 %v1022, %v1663
      %v1792 = vadd.f32 %v1023, %v1664
      %v1793 = vadd.f32 %v1024, %v1665
      %v1794 = vadd.f32 %v1025, %v1666
      %v1795 = vadd.f32 %v1026, %v1667
      %v1796 = vadd.f32 %v1027, %v1668
      %v1797 = vadd.f32 %v1028, %v1669
      %v1798 = vadd.f32 %v1029, %v1670
      %v1799 = vadd.f32 %v1030, %v1671
      %v1800 = vadd.f32 %v1031, %v1672
      %v1801 = vadd.f32 %v1032, %v1673
      %v1802 = vadd.f32 %v1033, %v1674
      %v1803 = vadd.f32 %v1034, %v1675
      %v1804 = vadd.f32 %v1035, %v1676
      %v1805 = vadd.f32 %v1036, %v1677
      %v1806 = vadd.f32 %v1037, %v1678
      %v1807 = vadd.f32 %v1038, %v1679
      %v1808 = vadd.f32 %v1039, %v1680
      %v1809 = vadd.f32 %v1040, %v1681
      %v1810 = vadd.f32 %v1041, %v1682
      %v1811 = vadd.f32 %v1042, %v1683
      %v1812 = vadd.f32 %v1043, %v1684
      %v1813 = vadd.f32 %v1044, %v1685
      %v1814 = vadd.f32 %v1045, %v1686
      %v1815 = vadd.f32 %v1046, %v1687
      %v1816 = vadd.f32 %v1047, %v1688
      %v1817 = vadd.f32 %v1048, %v1689
      %v1818 = vadd.f32 %v1049, %v1690
      %v1819 = vadd.f32 %v1050, %v1691
      %v1820 = vadd.f32 %v1051, %v1692
      %v1821 = vadd.f32 %v1052, %v1693
      %v1822 = vadd.f32 %v1053, %v1694
      %v1823 = vadd.f32 %v1054, %v1695
      %v1824 = vadd.f32 %v1055, %v1696
      %v1825 = vadd.f32 %v1056, %v1697
      %v1826 = vadd.f32 %v1057, %v1698
      %v1827 = vadd.f32 %v1058, %v1699
      %v1828 = vadd.f32 %v1059, %v1700
      %v1829 = vadd.f32 %v1060, %v1701
      %v1830 = vadd.f32 %v1061, %v1702
      %v1831 = vadd.f32 %v1062, %v1703
      %v1832 = vadd.f32 %v1063, %v1704
      %v1833 = vadd.f32 %v1064, %v1705
      %v1834 = vadd.f32 %v1065, %v1706
      %v1835 = vadd.f32 %v1066, %v1707
      %v1836 = vadd.f32 %v1067, %v1708
      %v1837 = vadd.f32 %v1068, %v1709
      %v1838 = vadd.f32 %v1069, %v1710
      %v1839 = vadd.f32 %v1070, %v1711
      %v1840 = vadd.f32 %v1071, %v1712
      %v1841 = vadd.f32 %v1072, %v1713
      %v1842 = vadd.f32 %v1073, %v1714
      %v1843 = vadd.f32 %v1074, %v1715
      %v1844 = vadd.f32 %v1075, %v1716
      %v1845 = vadd.f32 %v1076, %v1717
      %v1846 = vadd.f32 %v1077, %v1718
      %v1847 = vadd.f32 %v1078, %v1719
      %v1848 = vadd.f32 %v1079, %v1720
      %v1849 = vadd.f32 %v1080, %v1721
      %v1850 = vadd.f32 %v1081, %v1722
      %v1851 = vadd.f32 %v1082, %v1723
      %v1852 = vadd.f32 %v1083, %v1724
      %v1853 = vadd.f32 %v1084, %v1725
      %v1854 = vadd.f32 %v1085, %v1726
      %v1855 = vadd.f32 %v1086, %v1727
      %v1856 = vadd.f32 %v1087, %v1728
      %v1857 = vadd.f32 %v1088, %v1729
      %v1858 = vadd.f32 %v1089, %v1730
      %v1859 = vadd.f32 %v1090, %v1731
      %v1860 = vadd.f32 %v1091, %v1732
      %v1861 = vadd.f32 %v1092, %v1733
      %v1862 = vadd.f32 %v1093, %v1734
      %v1863 = vadd.f32 %v1094, %v1735
      %v1864 = vadd.f32 %v1095, %v1736
      %v1865 = vadd.f32 %v1096, %v1737
      %v1866 = vadd.f32 %v1097, %v1738
      %v1867 = vadd.f32 %v1098, %v1739
      %v1868 = vadd.f32 %v1099, %v1740
      %v1869 = vadd.f32 %v1100, %v1741
      %v1870 = vadd.f32 %v1101, %v1742
      %v1871 = vadd.f32 %v1102, %v1743
      %v1872 = vadd.f32 %v1103, %v1744
      %v1873 = vadd.f32 %v1104, %v1745
      %v1874 = vadd.f32 %v1105, %v1746
      %v1875 = vadd.f32 %v1106, %v1747
      %v1876 = vadd.f32 %v1107, %v1748
      %v1877 = vadd.f32 %v1108, %v1749
      %v1878 = vadd.f32 %v1109, %v1750
      %v1879 = vadd.f32 %v1110, %v1751
      %v1880 = vadd.f32 %v1111, %v1752
      %v1881 = vadd.f32 %v1112, %v1753
      %v1882 = vadd.f32 %v1113, %v1754
      %v1883 = vadd.f32 %v1114, %v1755
      %v1884 = vadd.f32 %v1115, %v1756
      %v1885 = vadd.f32 %v1116, %v1757
      %v1886 = vadd.f32 %v1117, %v1758
      %v1887 = vadd.f32 %v1118, %v1759
      %v1888 = vadd.f32 %v1119, %v1760
      %v1889 = vadd.f32 %v1120, %v1761
      %v1890 = vadd.f32 %v1121, %v1762
      %v1891 = vadd.f32 %v1122, %v1763
      %v1892 = vadd.f32 %v1123, %v1764
      %v1893 = vadd.f32 %v1124, %v1765
      %v1894 = vadd.f32 %v1125, %v1766
      %v1895 = vadd.f32 %v1126, %v1767
      %v1896 = vtanh.pop %v1768
      %v1897 = vtanh.pop %v1769
      %v1898 = vtanh.pop %v1770
      %v1899 = vtanh.pop %v1771
      %v1900 = vtanh.pop %v1772
      %v1901 = vtanh.pop %v1773
      %v1902 = vtanh.pop %v1774
      %v1903 = vtanh.pop %v1775
      %v1904 = vtanh.pop %v1776
      %v1905 = vtanh.pop %v1777
      %v1906 = vtanh.pop %v1778
      %v1907 = vtanh.pop %v1779
      %v1908 = vtanh.pop %v1780
      %v1909 = vtanh.pop %v1781
      %v1910 = vtanh.pop %v1782
      %v1911 = vtanh.pop %v1783
      %v1912 = vtanh.pop %v1784
      %v1913 = vtanh.pop %v1785
      %v1914 = vtanh.pop %v1786
      %v1915 = vtanh.pop %v1787
      %v1916 = vtanh.pop %v1788
      %v1917 = vtanh.pop %v1789
      %v1918 = vtanh.pop %v1790
      %v1919 = vtanh.pop %v1791
      %v1920 = vtanh.pop %v1792
      %v1921 = vtanh.pop %v1793
      %v1922 = vtanh.pop %v1794
      %v1923 = vtanh.pop %v1795
      %v1924 = vtanh.pop %v1796
      %v1925 = vtanh.pop %v1797
      %v1926 = vtanh.pop %v1798
      %v1927 = vtanh.pop %v1799
      %v1928 = vtanh.pop %v1800
      %v1929 = vtanh.pop %v1801
      %v1930 = vtanh.pop %v1802
      %v1931 = vtanh.pop %v1803
      %v1932 = vtanh.pop %v1804
      %v1933 = vtanh.pop %v1805
      %v1934 = vtanh.pop %v1806
      %v1935 = vtanh.pop %v1807
      %v1936 = vtanh.pop %v1808
      %v1937 = vtanh.pop %v1809
      %v1938 = vtanh.pop %v1810
      %v1939 = vtanh.pop %v1811
      %v1940 = vtanh.pop %v1812
      %v1941 = vtanh.pop %v1813
      %v1942 = vtanh.pop %v1814
      %v1943 = vtanh.pop %v1815
      %v1944 = vtanh.pop %v1816
      %v1945 = vtanh.pop %v1817
      %v1946 = vtanh.pop %v1818
      %v1947 = vtanh.pop %v1819
      %v1948 = vtanh.pop %v1820
      %v1949 = vtanh.pop %v1821
      %v1950 = vtanh.pop %v1822
      %v1951 = vtanh.pop %v1823
      %v1952 = vtanh.pop %v1824
      %v1953 = vtanh.pop %v1825
      %v1954 = vtanh.pop %v1826
      %v1955 = vtanh.pop %v1827
      %v1956 = vtanh.pop %v1828
      %v1957 = vtanh.pop %v1829
      %v1958 = vtanh.pop %v1830
      %v1959 = vtanh.pop %v1831
      %v1960 = vtanh.pop %v1832
      %v1961 = vtanh.pop %v1833
      %v1962 = vtanh.pop %v1834
      %v1963 = vtanh.pop %v1835
      %v1964 = vtanh.pop %v1836
      %v1965 = vtanh.pop %v1837
      %v1966 = vtanh.pop %v1838
      %v1967 = vtanh.pop %v1839
      %v1968 = vtanh.pop %v1840
      %v1969 = vtanh.pop %v1841
      %v1970 = vtanh.pop %v1842
      %v1971 = vtanh.pop %v1843
      %v1972 = vtanh.pop %v1844
      %v1973 = vtanh.pop %v1845
      %v1974 = vtanh.pop %v1846
      %v1975 = vtanh.pop %v1847
      %v1976 = vtanh.pop %v1848
      %v1977 = vtanh.pop %v1849
      %v1978 = vtanh.pop %v1850
      %v1979 = vtanh.pop %v1851
      %v1980 = vtanh.pop %v1852
      %v1981 = vtanh.pop %v1853
      %v1982 = vtanh.pop %v1854
      %v1983 = vtanh.pop %v1855
      %v1984 = vtanh.pop %v1856
      %v1985 = vtanh.pop %v1857
      %v1986 = vtanh.pop %v1858
      %v1987 = vtanh.pop %v1859
      %v1988 = vtanh.pop %v1860
      %v1989 = vtanh.pop %v1861
      %v1990 = vtanh.pop %v1862
      %v1991 = vtanh.pop %v1863
      %v1992 = vtanh.pop %v1864
      %v1993 = vtanh.pop %v1865
      %v1994 = vtanh.pop %v1866
      %v1995 = vtanh.pop %v1867
      %v1996 = vtanh.pop %v1868
      %v1997 = vtanh.pop %v1869
      %v1998 = vtanh.pop %v1870
      %v1999 = vtanh.pop %v1871
      %v2000 = vtanh.pop %v1872
      %v2001 = vtanh.pop %v1873
      %v2002 = vtanh.pop %v1874
      %v2003 = vtanh.pop %v1875
      %v2004 = vtanh.pop %v1876
      %v2005 = vtanh.pop %v1877
      %v2006 = vtanh.pop %v1878
      %v2007 = vtanh.pop %v1879
      %v2008 = vtanh.pop %v1880
      %v2009 = vtanh.pop %v1881
      %v2010 = vtanh.pop %v1882
      %v2011 = vtanh.pop %v1883
      %v2012 = vtanh.pop %v1884
      %v2013 = vtanh.pop %v1885
      %v2014 = vtanh.pop %v1886
      %v2015 = vtanh.pop %v1887
      %v2016 = vtanh.pop %v1888
      %v2017 = vtanh.pop %v1889
      %v2018 = vtanh.pop %v1890
      %v2019 = vtanh.pop %v1891
      %v2020 = vtanh.pop %v1892
      %v2021 = vtanh.pop %v1893
      %v2022 = vtanh.pop %v1894
      %v2023 = vtanh.pop %v1895
      %v2024 = vpack.c.bf16 %v1897, %v1896
      %v2025 = vpack.c.bf16 %v1899, %v1898
      %v2026 = vpack.c.bf16 %v1901, %v1900
      %v2027 = vpack.c.bf16 %v1903, %v1902
      %v2028 = vpack.c.bf16 %v1905, %v1904
      %v2029 = vpack.c.bf16 %v1907, %v1906
      %v2030 = vpack.c.bf16 %v1909, %v1908
      %v2031 = vpack.c.bf16 %v1911, %v1910
      %v2032 = vpack.c.bf16 %v1913, %v1912
      %v2033 = vpack.c.bf16 %v1915, %v1914
      %v2034 = vpack.c.bf16 %v1917, %v1916
      %v2035 = vpack.c.bf16 %v1919, %v1918
      %v2036 = vpack.c.bf16 %v1921, %v1920
      %v2037 = vpack.c.bf16 %v1923, %v1922
      %v2038 = vpack.c.bf16 %v1925, %v1924
      %v2039 = vpack.c.bf16 %v1927, %v1926
      %v2040 = vpack.c.bf16 %v1929, %v1928
      %v2041 = vpack.c.bf16 %v1931, %v1930
      %v2042 = vpack.c.bf16 %v1933, %v1932
      %v2043 = vpack.c.bf16 %v1935, %v1934
      %v2044 = vpack.c.bf16 %v1937, %v1936
      %v2045 = vpack.c.bf16 %v1939, %v1938
      %v2046 = vpack.c.bf16 %v1941, %v1940
      %v2047 = vpack.c.bf16 %v1943, %v1942
      %v2048 = vpack.c.bf16 %v1945, %v1944
      %v2049 = vpack.c.bf16 %v1947, %v1946
      %v2050 = vpack.c.bf16 %v1949, %v1948
      %v2051 = vpack.c.bf16 %v1951, %v1950
      %v2052 = vpack.c.bf16 %v1953, %v1952
      %v2053 = vpack.c.bf16 %v1955, %v1954
      %v2054 = vpack.c.bf16 %v1957, %v1956
      %v2055 = vpack.c.bf16 %v1959, %v1958
      %v2056 = vpack.c.bf16 %v1961, %v1960
      %v2057 = vpack.c.bf16 %v1963, %v1962
      %v2058 = vpack.c.bf16 %v1965, %v1964
      %v2059 = vpack.c.bf16 %v1967, %v1966
      %v2060 = vpack.c.bf16 %v1969, %v1968
      %v2061 = vpack.c.bf16 %v1971, %v1970
      %v2062 = vpack.c.bf16 %v1973, %v1972
      %v2063 = vpack.c.bf16 %v1975, %v1974
      %v2064 = vpack.c.bf16 %v1977, %v1976
      %v2065 = vpack.c.bf16 %v1979, %v1978
      %v2066 = vpack.c.bf16 %v1981, %v1980
      %v2067 = vpack.c.bf16 %v1983, %v1982
      %v2068 = vpack.c.bf16 %v1985, %v1984
      %v2069 = vpack.c.bf16 %v1987, %v1986
      %v2070 = vpack.c.bf16 %v1989, %v1988
      %v2071 = vpack.c.bf16 %v1991, %v1990
      %v2072 = vpack.c.bf16 %v1993, %v1992
      %v2073 = vpack.c.bf16 %v1995, %v1994
      %v2074 = vpack.c.bf16 %v1997, %v1996
      %v2075 = vpack.c.bf16 %v1999, %v1998
      %v2076 = vpack.c.bf16 %v2001, %v2000
      %v2077 = vpack.c.bf16 %v2003, %v2002
      %v2078 = vpack.c.bf16 %v2005, %v2004
      %v2079 = vpack.c.bf16 %v2007, %v2006
      %v2080 = vpack.c.bf16 %v2009, %v2008
      %v2081 = vpack.c.bf16 %v2011, %v2010
      %v2082 = vpack.c.bf16 %v2013, %v2012
      %v2083 = vpack.c.bf16 %v2015, %v2014
      %v2084 = vpack.c.bf16 %v2017, %v2016
      %v2085 = vpack.c.bf16 %v2019, %v2018
      %v2086 = vpack.c.bf16 %v2021, %v2020
      %v2087 = vpack.c.bf16 %v2023, %v2022
      %v2088 = vld [vmem:[%s2] sm:$0xf]
      %v2089 = vld [vmem:[%s2 + $0x4] sm:$0xf]
      %v2090 = vld [vmem:[%s2 + $0x8] sm:$0xf]
      %v2091 = vld [vmem:[%s2 + $0xc] sm:$0xf]
      %v2096 = vunpack.c.l.b16 %v2088
      %v2097 = vunpack.c.l.b16 %v2089
      %v2098 = vunpack.c.l.b16 %v2090
      %v2099 = vunpack.c.l.b16 %v2091
      %v2100 = vpack.c.b16 %v2097, %v2096
      %v2101 = vpack.c.b16 %v2099, %v2098
      %vm2104 = vcmask 261120
      %v2106 = vsel %vm2104, %v2024, 0
      %v2109 = vsel %vm2104, %v2025, 0
      %v2112 = vsel %vm2104, %v2026, 0
      %v2115 = vsel %vm2104, %v2027, 0
      %v2118 = vsel %vm2104, %v2028, 0
      %v2121 = vsel %vm2104, %v2029, 0
      %v2124 = vsel %vm2104, %v2030, 0
      %v2127 = vsel %vm2104, %v2031, 0
      %v2130 = vsel %vm2104, %v2032, 0
      %v2133 = vsel %vm2104, %v2033, 0
      %v2136 = vsel %vm2104, %v2034, 0
      %v2139 = vsel %vm2104, %v2035, 0
      %v2142 = vsel %vm2104, %v2036, 0
      %v2145 = vsel %vm2104, %v2037, 0
      %v2148 = vsel %vm2104, %v2038, 0
      %v2151 = vsel %vm2104, %v2039, 0
      %v2154 = vsel %vm2104, %v2040, 0
      %v2157 = vsel %vm2104, %v2041, 0
      %v2160 = vsel %vm2104, %v2042, 0
      %v2163 = vsel %vm2104, %v2043, 0
      %v2166 = vsel %vm2104, %v2044, 0
      %v2169 = vsel %vm2104, %v2045, 0
      %v2172 = vsel %vm2104, %v2046, 0
      %v2175 = vsel %vm2104, %v2047, 0
      %v2178 = vsel %vm2104, %v2048, 0
      %v2181 = vsel %vm2104, %v2049, 0
      %v2184 = vsel %vm2104, %v2050, 0
      %v2187 = vsel %vm2104, %v2051, 0
      %v2190 = vsel %vm2104, %v2052, 0
      %v2193 = vsel %vm2104, %v2053, 0
      %v2196 = vsel %vm2104, %v2054, 0
      %v2199 = vsel %vm2104, %v2055, 0
      %v2202 = vsel %vm2104, %v2056, 0
      %v2205 = vsel %vm2104, %v2057, 0
      %v2208 = vsel %vm2104, %v2058, 0
      %v2211 = vsel %vm2104, %v2059, 0
      %v2214 = vsel %vm2104, %v2060, 0
      %v2217 = vsel %vm2104, %v2061, 0
      %v2220 = vsel %vm2104, %v2062, 0
      %v2223 = vsel %vm2104, %v2063, 0
      %v2226 = vsel %vm2104, %v2064, 0
      %v2229 = vsel %vm2104, %v2065, 0
      %v2232 = vsel %vm2104, %v2066, 0
      %v2235 = vsel %vm2104, %v2067, 0
      %v2238 = vsel %vm2104, %v2068, 0
      %v2241 = vsel %vm2104, %v2069, 0
      %v2244 = vsel %vm2104, %v2070, 0
      %v2247 = vsel %vm2104, %v2071, 0
      %v2250 = vsel %vm2104, %v2072, 0
      %v2253 = vsel %vm2104, %v2073, 0
      %v2256 = vsel %vm2104, %v2074, 0
      %v2259 = vsel %vm2104, %v2075, 0
      %v2262 = vsel %vm2104, %v2076, 0
      %v2265 = vsel %vm2104, %v2077, 0
      %v2268 = vsel %vm2104, %v2078, 0
      %v2271 = vsel %vm2104, %v2079, 0
      %v2274 = vsel %vm2104, %v2080, 0
      %v2277 = vsel %vm2104, %v2081, 0
      %v2280 = vsel %vm2104, %v2082, 0
      %v2283 = vsel %vm2104, %v2083, 0
      %v2286 = vsel %vm2104, %v2084, 0
      %v2289 = vsel %vm2104, %v2085, 0
      %v2292 = vsel %vm2104, %v2086, 0
      %v2295 = vsel %vm2104, %v2087, 0
      %2297 = vmatpush.bf16.msra.mxu0 0
      %2298 = vmatpush.bf16.msra.mxu0 0
      %2299 = vmatpush.bf16.msra.mxu0 0
      %2300 = vmatpush.bf16.msra.mxu0 0
      %2301 = vmatpush.bf16.msra.mxu0 0
      %2302 = vmatpush.bf16.msra.mxu0 0
      %2303 = vmatpush.bf16.msra.mxu0 %v2101
      %2304 = vmatpush.bf16.msra.mxu0 %v2100
      %2305 = vmatmul.bf16.gmra.mxu0 %v2106
      %v2306 = vpop.f32.mrf.mxu0
      %v2307 = vadd.f32 0.0, %v2306
      %v2308 = vpop.f32.mrf.mxu0
      %v2309 = vadd.f32 0.0, %v2308
      %2310 = vmatmul.bf16.gmra.mxu0 %v2109
      %v2311 = vpop.f32.mrf.mxu0
      %v2312 = vadd.f32 0.0, %v2311
      %v2313 = vpop.f32.mrf.mxu0
      %v2314 = vadd.f32 0.0, %v2313
      %2315 = vmatmul.bf16.gmra.mxu0 %v2112
      %v2316 = vpop.f32.mrf.mxu0
      %v2317 = vadd.f32 0.0, %v2316
      %v2318 = vpop.f32.mrf.mxu0
      %v2319 = vadd.f32 0.0, %v2318
      %2320 = vmatmul.bf16.gmra.mxu0 %v2115
      %v2321 = vpop.f32.mrf.mxu0
      %v2322 = vadd.f32 0.0, %v2321
      %v2323 = vpop.f32.mrf.mxu0
      %v2324 = vadd.f32 0.0, %v2323
      %2325 = vmatmul.bf16.gmra.mxu0 %v2118
      %v2326 = vpop.f32.mrf.mxu0
      %v2327 = vadd.f32 0.0, %v2326
      %v2328 = vpop.f32.mrf.mxu0
      %v2329 = vadd.f32 0.0, %v2328
      %2330 = vmatmul.bf16.gmra.mxu0 %v2121
      %v2331 = vpop.f32.mrf.mxu0
      %v2332 = vadd.f32 0.0, %v2331
      %v2333 = vpop.f32.mrf.mxu0
      %v2334 = vadd.f32 0.0, %v2333
      %2335 = vmatmul.bf16.gmra.mxu0 %v2124
      %v2336 = vpop.f32.mrf.mxu0
      %v2337 = vadd.f32 0.0, %v2336
      %v2338 = vpop.f32.mrf.mxu0
      %v2339 = vadd.f32 0.0, %v2338
      %2340 = vmatmul.bf16.gmra.mxu0 %v2127
      %v2341 = vpop.f32.mrf.mxu0
      %v2342 = vadd.f32 0.0, %v2341
      %v2343 = vpop.f32.mrf.mxu0
      %v2344 = vadd.f32 0.0, %v2343
      %2345 = vmatmul.bf16.gmra.mxu0 %v2130
      %v2346 = vpop.f32.mrf.mxu0
      %v2347 = vadd.f32 0.0, %v2346
      %v2348 = vpop.f32.mrf.mxu0
      %v2349 = vadd.f32 0.0, %v2348
      %2350 = vmatmul.bf16.gmra.mxu0 %v2133
      %v2351 = vpop.f32.mrf.mxu0
      %v2352 = vadd.f32 0.0, %v2351
      %v2353 = vpop.f32.mrf.mxu0
      %v2354 = vadd.f32 0.0, %v2353
      %2355 = vmatmul.bf16.gmra.mxu0 %v2136
      %v2356 = vpop.f32.mrf.mxu0
      %v2357 = vadd.f32 0.0, %v2356
      %v2358 = vpop.f32.mrf.mxu0
      %v2359 = vadd.f32 0.0, %v2358
      %2360 = vmatmul.bf16.gmra.mxu0 %v2139
      %v2361 = vpop.f32.mrf.mxu0
      %v2362 = vadd.f32 0.0, %v2361
      %v2363 = vpop.f32.mrf.mxu0
      %v2364 = vadd.f32 0.0, %v2363
      %2365 = vmatmul.bf16.gmra.mxu0 %v2142
      %v2366 = vpop.f32.mrf.mxu0
      %v2367 = vadd.f32 0.0, %v2366
      %v2368 = vpop.f32.mrf.mxu0
      %v2369 = vadd.f32 0.0, %v2368
      %2370 = vmatmul.bf16.gmra.mxu0 %v2145
      %v2371 = vpop.f32.mrf.mxu0
      %v2372 = vadd.f32 0.0, %v2371
      %v2373 = vpop.f32.mrf.mxu0
      %v2374 = vadd.f32 0.0, %v2373
      %2375 = vmatmul.bf16.gmra.mxu0 %v2148
      %v2376 = vpop.f32.mrf.mxu0
      %v2377 = vadd.f32 0.0, %v2376
      %v2378 = vpop.f32.mrf.mxu0
      %v2379 = vadd.f32 0.0, %v2378
      %2380 = vmatmul.bf16.gmra.mxu0 %v2151
      %v2381 = vpop.f32.mrf.mxu0
      %v2382 = vadd.f32 0.0, %v2381
      %v2383 = vpop.f32.mrf.mxu0
      %v2384 = vadd.f32 0.0, %v2383
      %2385 = vmatmul.bf16.gmra.mxu0 %v2154
      %v2386 = vpop.f32.mrf.mxu0
      %v2387 = vadd.f32 0.0, %v2386
      %v2388 = vpop.f32.mrf.mxu0
      %v2389 = vadd.f32 0.0, %v2388
      %2390 = vmatmul.bf16.gmra.mxu0 %v2157
      %v2391 = vpop.f32.mrf.mxu0
      %v2392 = vadd.f32 0.0, %v2391
      %v2393 = vpop.f32.mrf.mxu0
      %v2394 = vadd.f32 0.0, %v2393
      %2395 = vmatmul.bf16.gmra.mxu0 %v2160
      %v2396 = vpop.f32.mrf.mxu0
      %v2397 = vadd.f32 0.0, %v2396
      %v2398 = vpop.f32.mrf.mxu0
      %v2399 = vadd.f32 0.0, %v2398
      %2400 = vmatmul.bf16.gmra.mxu0 %v2163
      %v2401 = vpop.f32.mrf.mxu0
      %v2402 = vadd.f32 0.0, %v2401
      %v2403 = vpop.f32.mrf.mxu0
      %v2404 = vadd.f32 0.0, %v2403
      %2405 = vmatmul.bf16.gmra.mxu0 %v2166
      %v2406 = vpop.f32.mrf.mxu0
      %v2407 = vadd.f32 0.0, %v2406
      %v2408 = vpop.f32.mrf.mxu0
      %v2409 = vadd.f32 0.0, %v2408
      %2410 = vmatmul.bf16.gmra.mxu0 %v2169
      %v2411 = vpop.f32.mrf.mxu0
      %v2412 = vadd.f32 0.0, %v2411
      %v2413 = vpop.f32.mrf.mxu0
      %v2414 = vadd.f32 0.0, %v2413
      %2415 = vmatmul.bf16.gmra.mxu0 %v2172
      %v2416 = vpop.f32.mrf.mxu0
      %v2417 = vadd.f32 0.0, %v2416
      %v2418 = vpop.f32.mrf.mxu0
      %v2419 = vadd.f32 0.0, %v2418
      %2420 = vmatmul.bf16.gmra.mxu0 %v2175
      %v2421 = vpop.f32.mrf.mxu0
      %v2422 = vadd.f32 0.0, %v2421
      %v2423 = vpop.f32.mrf.mxu0
      %v2424 = vadd.f32 0.0, %v2423
      %2425 = vmatmul.bf16.gmra.mxu0 %v2178
      %v2426 = vpop.f32.mrf.mxu0
      %v2427 = vadd.f32 0.0, %v2426
      %v2428 = vpop.f32.mrf.mxu0
      %v2429 = vadd.f32 0.0, %v2428
      %2430 = vmatmul.bf16.gmra.mxu0 %v2181
      %v2431 = vpop.f32.mrf.mxu0
      %v2432 = vadd.f32 0.0, %v2431
      %v2433 = vpop.f32.mrf.mxu0
      %v2434 = vadd.f32 0.0, %v2433
      %2435 = vmatmul.bf16.gmra.mxu0 %v2184
      %v2436 = vpop.f32.mrf.mxu0
      %v2437 = vadd.f32 0.0, %v2436
      %v2438 = vpop.f32.mrf.mxu0
      %v2439 = vadd.f32 0.0, %v2438
      %2440 = vmatmul.bf16.gmra.mxu0 %v2187
      %v2441 = vpop.f32.mrf.mxu0
      %v2442 = vadd.f32 0.0, %v2441
      %v2443 = vpop.f32.mrf.mxu0
      %v2444 = vadd.f32 0.0, %v2443
      %2445 = vmatmul.bf16.gmra.mxu0 %v2190
      %v2446 = vpop.f32.mrf.mxu0
      %v2447 = vadd.f32 0.0, %v2446
      %v2448 = vpop.f32.mrf.mxu0
      %v2449 = vadd.f32 0.0, %v2448
      %2450 = vmatmul.bf16.gmra.mxu0 %v2193
      %v2451 = vpop.f32.mrf.mxu0
      %v2452 = vadd.f32 0.0, %v2451
      %v2453 = vpop.f32.mrf.mxu0
      %v2454 = vadd.f32 0.0, %v2453
      %2455 = vmatmul.bf16.gmra.mxu0 %v2196
      %v2456 = vpop.f32.mrf.mxu0
      %v2457 = vadd.f32 0.0, %v2456
      %v2458 = vpop.f32.mrf.mxu0
      %v2459 = vadd.f32 0.0, %v2458
      %2460 = vmatmul.bf16.gmra.mxu0 %v2199
      %v2461 = vpop.f32.mrf.mxu0
      %v2462 = vadd.f32 0.0, %v2461
      %v2463 = vpop.f32.mrf.mxu0
      %v2464 = vadd.f32 0.0, %v2463
      %2465 = vmatmul.bf16.gmra.mxu0 %v2202
      %v2466 = vpop.f32.mrf.mxu0
      %v2467 = vadd.f32 0.0, %v2466
      %v2468 = vpop.f32.mrf.mxu0
      %v2469 = vadd.f32 0.0, %v2468
      %2470 = vmatmul.bf16.gmra.mxu0 %v2205
      %v2471 = vpop.f32.mrf.mxu0
      %v2472 = vadd.f32 0.0, %v2471
      %v2473 = vpop.f32.mrf.mxu0
      %v2474 = vadd.f32 0.0, %v2473
      %2475 = vmatmul.bf16.gmra.mxu0 %v2208
      %v2476 = vpop.f32.mrf.mxu0
      %v2477 = vadd.f32 0.0, %v2476
      %v2478 = vpop.f32.mrf.mxu0
      %v2479 = vadd.f32 0.0, %v2478
      %2480 = vmatmul.bf16.gmra.mxu0 %v2211
      %v2481 = vpop.f32.mrf.mxu0
      %v2482 = vadd.f32 0.0, %v2481
      %v2483 = vpop.f32.mrf.mxu0
      %v2484 = vadd.f32 0.0, %v2483
      %2485 = vmatmul.bf16.gmra.mxu0 %v2214
      %v2486 = vpop.f32.mrf.mxu0
      %v2487 = vadd.f32 0.0, %v2486
      %v2488 = vpop.f32.mrf.mxu0
      %v2489 = vadd.f32 0.0, %v2488
      %2490 = vmatmul.bf16.gmra.mxu0 %v2217
      %v2491 = vpop.f32.mrf.mxu0
      %v2492 = vadd.f32 0.0, %v2491
      %v2493 = vpop.f32.mrf.mxu0
      %v2494 = vadd.f32 0.0, %v2493
      %2495 = vmatmul.bf16.gmra.mxu0 %v2220
      %v2496 = vpop.f32.mrf.mxu0
      %v2497 = vadd.f32 0.0, %v2496
      %v2498 = vpop.f32.mrf.mxu0
      %v2499 = vadd.f32 0.0, %v2498
      %2500 = vmatmul.bf16.gmra.mxu0 %v2223
      %v2501 = vpop.f32.mrf.mxu0
      %v2502 = vadd.f32 0.0, %v2501
      %v2503 = vpop.f32.mrf.mxu0
      %v2504 = vadd.f32 0.0, %v2503
      %2505 = vmatmul.bf16.gmra.mxu0 %v2226
      %v2506 = vpop.f32.mrf.mxu0
      %v2507 = vadd.f32 0.0, %v2506
      %v2508 = vpop.f32.mrf.mxu0
      %v2509 = vadd.f32 0.0, %v2508
      %2510 = vmatmul.bf16.gmra.mxu0 %v2229
      %v2511 = vpop.f32.mrf.mxu0
      %v2512 = vadd.f32 0.0, %v2511
      %v2513 = vpop.f32.mrf.mxu0
      %v2514 = vadd.f32 0.0, %v2513
      %2515 = vmatmul.bf16.gmra.mxu0 %v2232
      %v2516 = vpop.f32.mrf.mxu0
      %v2517 = vadd.f32 0.0, %v2516
      %v2518 = vpop.f32.mrf.mxu0
      %v2519 = vadd.f32 0.0, %v2518
      %2520 = vmatmul.bf16.gmra.mxu0 %v2235
      %v2521 = vpop.f32.mrf.mxu0
      %v2522 = vadd.f32 0.0, %v2521
      %v2523 = vpop.f32.mrf.mxu0
      %v2524 = vadd.f32 0.0, %v2523
      %2525 = vmatmul.bf16.gmra.mxu0 %v2238
      %v2526 = vpop.f32.mrf.mxu0
      %v2527 = vadd.f32 0.0, %v2526
      %v2528 = vpop.f32.mrf.mxu0
      %v2529 = vadd.f32 0.0, %v2528
      %2530 = vmatmul.bf16.gmra.mxu0 %v2241
      %v2531 = vpop.f32.mrf.mxu0
      %v2532 = vadd.f32 0.0, %v2531
      %v2533 = vpop.f32.mrf.mxu0
      %v2534 = vadd.f32 0.0, %v2533
      %2535 = vmatmul.bf16.gmra.mxu0 %v2244
      %v2536 = vpop.f32.mrf.mxu0
      %v2537 = vadd.f32 0.0, %v2536
      %v2538 = vpop.f32.mrf.mxu0
      %v2539 = vadd.f32 0.0, %v2538
      %2540 = vmatmul.bf16.gmra.mxu0 %v2247
      %v2541 = vpop.f32.mrf.mxu0
      %v2542 = vadd.f32 0.0, %v2541
      %v2543 = vpop.f32.mrf.mxu0
      %v2544 = vadd.f32 0.0, %v2543
      %2545 = vmatmul.bf16.gmra.mxu0 %v2250
      %v2546 = vpop.f32.mrf.mxu0
      %v2547 = vadd.f32 0.0, %v2546
      %v2548 = vpop.f32.mrf.mxu0
      %v2549 = vadd.f32 0.0, %v2548
      %2550 = vmatmul.bf16.gmra.mxu0 %v2253
      %v2551 = vpop.f32.mrf.mxu0
      %v2552 = vadd.f32 0.0, %v2551
      %v2553 = vpop.f32.mrf.mxu0
      %v2554 = vadd.f32 0.0, %v2553
      %2555 = vmatmul.bf16.gmra.mxu0 %v2256
      %v2556 = vpop.f32.mrf.mxu0
      %v2557 = vadd.f32 0.0, %v2556
      %v2558 = vpop.f32.mrf.mxu0
      %v2559 = vadd.f32 0.0, %v2558
      %2560 = vmatmul.bf16.gmra.mxu0 %v2259
      %v2561 = vpop.f32.mrf.mxu0
      %v2562 = vadd.f32 0.0, %v2561
      %v2563 = vpop.f32.mrf.mxu0
      %v2564 = vadd.f32 0.0, %v2563
      %2565 = vmatmul.bf16.gmra.mxu0 %v2262
      %v2566 = vpop.f32.mrf.mxu0
      %v2567 = vadd.f32 0.0, %v2566
      %v2568 = vpop.f32.mrf.mxu0
      %v2569 = vadd.f32 0.0, %v2568
      %2570 = vmatmul.bf16.gmra.mxu0 %v2265
      %v2571 = vpop.f32.mrf.mxu0
      %v2572 = vadd.f32 0.0, %v2571
      %v2573 = vpop.f32.mrf.mxu0
      %v2574 = vadd.f32 0.0, %v2573
      %2575 = vmatmul.bf16.gmra.mxu0 %v2268
      %v2576 = vpop.f32.mrf.mxu0
      %v2577 = vadd.f32 0.0, %v2576
      %v2578 = vpop.f32.mrf.mxu0
      %v2579 = vadd.f32 0.0, %v2578
      %2580 = vmatmul.bf16.gmra.mxu0 %v2271
      %v2581 = vpop.f32.mrf.mxu0
      %v2582 = vadd.f32 0.0, %v2581
      %v2583 = vpop.f32.mrf.mxu0
      %v2584 = vadd.f32 0.0, %v2583
      %2585 = vmatmul.bf16.gmra.mxu0 %v2274
      %v2586 = vpop.f32.mrf.mxu0
      %v2587 = vadd.f32 0.0, %v2586
      %v2588 = vpop.f32.mrf.mxu0
      %v2589 = vadd.f32 0.0, %v2588
      %2590 = vmatmul.bf16.gmra.mxu0 %v2277
      %v2591 = vpop.f32.mrf.mxu0
      %v2592 = vadd.f32 0.0, %v2591
      %v2593 = vpop.f32.mrf.mxu0
      %v2594 = vadd.f32 0.0, %v2593
      %2595 = vmatmul.bf16.gmra.mxu0 %v2280
      %v2596 = vpop.f32.mrf.mxu0
      %v2597 = vadd.f32 0.0, %v2596
      %v2598 = vpop.f32.mrf.mxu0
      %v2599 = vadd.f32 0.0, %v2598
      %2600 = vmatmul.bf16.gmra.mxu0 %v2283
      %v2601 = vpop.f32.mrf.mxu0
      %v2602 = vadd.f32 0.0, %v2601
      %v2603 = vpop.f32.mrf.mxu0
      %v2604 = vadd.f32 0.0, %v2603
      %2605 = vmatmul.bf16.gmra.mxu0 %v2286
      %v2606 = vpop.f32.mrf.mxu0
      %v2607 = vadd.f32 0.0, %v2606
      %v2608 = vpop.f32.mrf.mxu0
      %v2609 = vadd.f32 0.0, %v2608
      %2610 = vmatmul.bf16.gmra.mxu0 %v2289
      %v2611 = vpop.f32.mrf.mxu0
      %v2612 = vadd.f32 0.0, %v2611
      %v2613 = vpop.f32.mrf.mxu0
      %v2614 = vadd.f32 0.0, %v2613
      %2615 = vmatmul.bf16.gmra.mxu0 %v2292
      %v2616 = vpop.f32.mrf.mxu0
      %v2617 = vadd.f32 0.0, %v2616
      %v2618 = vpop.f32.mrf.mxu0
      %v2619 = vadd.f32 0.0, %v2618
      %2620 = vmatmul.bf16.gmra.mxu0 %v2295
      %v2621 = vpop.f32.mrf.mxu0
      %v2622 = vadd.f32 0.0, %v2621
      %v2623 = vpop.f32.mrf.mxu0
      %v2624 = vadd.f32 0.0, %v2623
      %2625 = vdwg.mxu0
      %v2626 = vtanh.pop %v2307
      %v2627 = vtanh.pop %v2309
      %v2628 = vtanh.pop %v2312
      %v2629 = vtanh.pop %v2314
      %v2630 = vtanh.pop %v2317
      %v2631 = vtanh.pop %v2319
      %v2632 = vtanh.pop %v2322
      %v2633 = vtanh.pop %v2324
      %v2634 = vtanh.pop %v2327
      %v2635 = vtanh.pop %v2329
      %v2636 = vtanh.pop %v2332
      %v2637 = vtanh.pop %v2334
      %v2638 = vtanh.pop %v2337
      %v2639 = vtanh.pop %v2339
      %v2640 = vtanh.pop %v2342
      %v2641 = vtanh.pop %v2344
      %v2642 = vtanh.pop %v2347
      %v2643 = vtanh.pop %v2349
      %v2644 = vtanh.pop %v2352
      %v2645 = vtanh.pop %v2354
      %v2646 = vtanh.pop %v2357
      %v2647 = vtanh.pop %v2359
      %v2648 = vtanh.pop %v2362
      %v2649 = vtanh.pop %v2364
      %v2650 = vtanh.pop %v2367
      %v2651 = vtanh.pop %v2369
      %v2652 = vtanh.pop %v2372
      %v2653 = vtanh.pop %v2374
      %v2654 = vtanh.pop %v2377
      %v2655 = vtanh.pop %v2379
      %v2656 = vtanh.pop %v2382
      %v2657 = vtanh.pop %v2384
      %v2658 = vtanh.pop %v2387
      %v2659 = vtanh.pop %v2389
      %v2660 = vtanh.pop %v2392
      %v2661 = vtanh.pop %v2394
      %v2662 = vtanh.pop %v2397
      %v2663 = vtanh.pop %v2399
      %v2664 = vtanh.pop %v2402
      %v2665 = vtanh.pop %v2404
      %v2666 = vtanh.pop %v2407
      %v2667 = vtanh.pop %v2409
      %v2668 = vtanh.pop %v2412
      %v2669 = vtanh.pop %v2414
      %v2670 = vtanh.pop %v2417
      %v2671 = vtanh.pop %v2419
      %v2672 = vtanh.pop %v2422
      %v2673 = vtanh.pop %v2424
      %v2674 = vtanh.pop %v2427
      %v2675 = vtanh.pop %v2429
      %v2676 = vtanh.pop %v2432
      %v2677 = vtanh.pop %v2434
      %v2678 = vtanh.pop %v2437
      %v2679 = vtanh.pop %v2439
      %v2680 = vtanh.pop %v2442
      %v2681 = vtanh.pop %v2444
      %v2682 = vtanh.pop %v2447
      %v2683 = vtanh.pop %v2449
      %v2684 = vtanh.pop %v2452
      %v2685 = vtanh.pop %v2454
      %v2686 = vtanh.pop %v2457
      %v2687 = vtanh.pop %v2459
      %v2688 = vtanh.pop %v2462
      %v2689 = vtanh.pop %v2464
      %v2690 = vtanh.pop %v2467
      %v2691 = vtanh.pop %v2469
      %v2692 = vtanh.pop %v2472
      %v2693 = vtanh.pop %v2474
      %v2694 = vtanh.pop %v2477
      %v2695 = vtanh.pop %v2479
      %v2696 = vtanh.pop %v2482
      %v2697 = vtanh.pop %v2484
      %v2698 = vtanh.pop %v2487
      %v2699 = vtanh.pop %v2489
      %v2700 = vtanh.pop %v2492
      %v2701 = vtanh.pop %v2494
      %v2702 = vtanh.pop %v2497
      %v2703 = vtanh.pop %v2499
      %v2704 = vtanh.pop %v2502
      %v2705 = vtanh.pop %v2504
      %v2706 = vtanh.pop %v2507
      %v2707 = vtanh.pop %v2509
      %v2708 = vtanh.pop %v2512
      %v2709 = vtanh.pop %v2514
      %v2710 = vtanh.pop %v2517
      %v2711 = vtanh.pop %v2519
      %v2712 = vtanh.pop %v2522
      %v2713 = vtanh.pop %v2524
      %v2714 = vtanh.pop %v2527
      %v2715 = vtanh.pop %v2529
      %v2716 = vtanh.pop %v2532
      %v2717 = vtanh.pop %v2534
      %v2718 = vtanh.pop %v2537
      %v2719 = vtanh.pop %v2539
      %v2720 = vtanh.pop %v2542
      %v2721 = vtanh.pop %v2544
      %v2722 = vtanh.pop %v2547
      %v2723 = vtanh.pop %v2549
      %v2724 = vtanh.pop %v2552
      %v2725 = vtanh.pop %v2554
      %v2726 = vtanh.pop %v2557
      %v2727 = vtanh.pop %v2559
      %v2728 = vtanh.pop %v2562
      %v2729 = vtanh.pop %v2564
      %v2730 = vtanh.pop %v2567
      %v2731 = vtanh.pop %v2569
      %v2732 = vtanh.pop %v2572
      %v2733 = vtanh.pop %v2574
      %v2734 = vtanh.pop %v2577
      %v2735 = vtanh.pop %v2579
      %v2736 = vtanh.pop %v2582
      %v2737 = vtanh.pop %v2584
      %v2738 = vtanh.pop %v2587
      %v2739 = vtanh.pop %v2589
      %v2740 = vtanh.pop %v2592
      %v2741 = vtanh.pop %v2594
      %v2742 = vtanh.pop %v2597
      %v2743 = vtanh.pop %v2599
      %v2744 = vtanh.pop %v2602
      %v2745 = vtanh.pop %v2604
      %v2746 = vtanh.pop %v2607
      %v2747 = vtanh.pop %v2609
      %v2748 = vtanh.pop %v2612
      %v2749 = vtanh.pop %v2614
      %v2750 = vtanh.pop %v2617
      %v2751 = vtanh.pop %v2619
      %v2752 = vtanh.pop %v2622
      %v2753 = vtanh.pop %v2624
      %v2754 = vpack.c.bf16 %v2627, %v2626
      %v2755 = vpack.c.bf16 %v2629, %v2628
      %v2756 = vpack.c.bf16 %v2631, %v2630
      %v2757 = vpack.c.bf16 %v2633, %v2632
      %v2758 = vpack.c.bf16 %v2635, %v2634
      %v2759 = vpack.c.bf16 %v2637, %v2636
      %v2760 = vpack.c.bf16 %v2639, %v2638
      %v2761 = vpack.c.bf16 %v2641, %v2640
      %v2762 = vpack.c.bf16 %v2643, %v2642
      %v2763 = vpack.c.bf16 %v2645, %v2644
      %v2764 = vpack.c.bf16 %v2647, %v2646
      %v2765 = vpack.c.bf16 %v2649, %v2648
      %v2766 = vpack.c.bf16 %v2651, %v2650
      %v2767 = vpack.c.bf16 %v2653, %v2652
      %v2768 = vpack.c.bf16 %v2655, %v2654
      %v2769 = vpack.c.bf16 %v2657, %v2656
      %v2770 = vpack.c.bf16 %v2659, %v2658
      %v2771 = vpack.c.bf16 %v2661, %v2660
      %v2772 = vpack.c.bf16 %v2663, %v2662
      %v2773 = vpack.c.bf16 %v2665, %v2664
      %v2774 = vpack.c.bf16 %v2667, %v2666
      %v2775 = vpack.c.bf16 %v2669, %v2668
      %v2776 = vpack.c.bf16 %v2671, %v2670
      %v2777 = vpack.c.bf16 %v2673, %v2672
      %v2778 = vpack.c.bf16 %v2675, %v2674
      %v2779 = vpack.c.bf16 %v2677, %v2676
      %v2780 = vpack.c.bf16 %v2679, %v2678
      %v2781 = vpack.c.bf16 %v2681, %v2680
      %v2782 = vpack.c.bf16 %v2683, %v2682
      %v2783 = vpack.c.bf16 %v2685, %v2684
      %v2784 = vpack.c.bf16 %v2687, %v2686
      %v2785 = vpack.c.bf16 %v2689, %v2688
      %v2786 = vpack.c.bf16 %v2691, %v2690
      %v2787 = vpack.c.bf16 %v2693, %v2692
      %v2788 = vpack.c.bf16 %v2695, %v2694
      %v2789 = vpack.c.bf16 %v2697, %v2696
      %v2790 = vpack.c.bf16 %v2699, %v2698
      %v2791 = vpack.c.bf16 %v2701, %v2700
      %v2792 = vpack.c.bf16 %v2703, %v2702
      %v2793 = vpack.c.bf16 %v2705, %v2704
      %v2794 = vpack.c.bf16 %v2707, %v2706
      %v2795 = vpack.c.bf16 %v2709, %v2708
      %v2796 = vpack.c.bf16 %v2711, %v2710
      %v2797 = vpack.c.bf16 %v2713, %v2712
      %v2798 = vpack.c.bf16 %v2715, %v2714
      %v2799 = vpack.c.bf16 %v2717, %v2716
      %v2800 = vpack.c.bf16 %v2719, %v2718
      %v2801 = vpack.c.bf16 %v2721, %v2720
      %v2802 = vpack.c.bf16 %v2723, %v2722
      %v2803 = vpack.c.bf16 %v2725, %v2724
      %v2804 = vpack.c.bf16 %v2727, %v2726
      %v2805 = vpack.c.bf16 %v2729, %v2728
      %v2806 = vpack.c.bf16 %v2731, %v2730
      %v2807 = vpack.c.bf16 %v2733, %v2732
      %v2808 = vpack.c.bf16 %v2735, %v2734
      %v2809 = vpack.c.bf16 %v2737, %v2736
      %v2810 = vpack.c.bf16 %v2739, %v2738
      %v2811 = vpack.c.bf16 %v2741, %v2740
      %v2812 = vpack.c.bf16 %v2743, %v2742
      %v2813 = vpack.c.bf16 %v2745, %v2744
      %v2814 = vpack.c.bf16 %v2747, %v2746
      %v2815 = vpack.c.bf16 %v2749, %v2748
      %v2816 = vpack.c.bf16 %v2751, %v2750
      %v2817 = vpack.c.bf16 %v2753, %v2752
      %v2818 = vld [vmem:[%s3] sm:$0xf]
      %v2819 = vld [vmem:[%s3 + $0x4] sm:$0xf]
      %v2820 = vld [vmem:[%s3 + $0x8] sm:$0xf]
      %v2821 = vld [vmem:[%s3 + $0xc] sm:$0xf]
      %v2822 = vld [vmem:[%s3 + $0x10] sm:$0xf]
      %v2823 = vld [vmem:[%s3 + $0x14] sm:$0xf]
      %v2824 = vld [vmem:[%s3 + $0x18] sm:$0xf]
      %v2825 = vld [vmem:[%s3 + $0x1c] sm:$0xf]
      %v2826 = vld [vmem:[%s3 + $0x20] sm:$0xf]
      %v2827 = vld [vmem:[%s3 + $0x24] sm:$0xf]
      %v2828 = vld [vmem:[%s3 + $0x28] sm:$0xf]
      %v2829 = vld [vmem:[%s3 + $0x2c] sm:$0xf]
      %v2830 = vld [vmem:[%s3 + $0x30] sm:$0xf]
      %v2831 = vld [vmem:[%s3 + $0x34] sm:$0xf]
      %v2832 = vld [vmem:[%s3 + $0x38] sm:$0xf]
      %v2833 = vld [vmem:[%s3 + $0x3c] sm:$0xf]
      %v2850 = vunpack.c.l.b16 %v2818
      %v2851 = vunpack.c.l.b16 %v2819
      %v2852 = vunpack.c.l.b16 %v2820
      %v2853 = vunpack.c.l.b16 %v2821
      %v2854 = vunpack.c.l.b16 %v2822
      %v2855 = vunpack.c.l.b16 %v2823
      %v2856 = vunpack.c.l.b16 %v2824
      %v2857 = vunpack.c.l.b16 %v2825
      %v2858 = vunpack.c.l.b16 %v2826
      %v2859 = vunpack.c.l.b16 %v2827
      %v2860 = vunpack.c.l.b16 %v2828
      %v2861 = vunpack.c.l.b16 %v2829
      %v2862 = vunpack.c.l.b16 %v2830
      %v2863 = vunpack.c.l.b16 %v2831
      %v2864 = vunpack.c.l.b16 %v2832
      %v2865 = vunpack.c.l.b16 %v2833
      %v2866 = vpack.c.b16 %v2851, %v2850
      %v2867 = vpack.c.b16 %v2853, %v2852
      %v2868 = vpack.c.b16 %v2855, %v2854
      %v2869 = vpack.c.b16 %v2857, %v2856
      %v2870 = vpack.c.b16 %v2859, %v2858
      %v2871 = vpack.c.b16 %v2861, %v2860
      %v2872 = vpack.c.b16 %v2863, %v2862
      %v2873 = vpack.c.b16 %v2865, %v2864
      %2882 = vmatpush.bf16.msra.mxu0 %v2873
      %2883 = vmatpush.bf16.msra.mxu0 %v2872
      %2884 = vmatpush.bf16.msra.mxu0 %v2871
      %2885 = vmatpush.bf16.msra.mxu0 %v2870
      %2886 = vmatpush.bf16.msra.mxu0 %v2869
      %2887 = vmatpush.bf16.msra.mxu0 %v2868
      %2888 = vmatpush.bf16.msra.mxu0 %v2867
      %2889 = vmatpush.bf16.msra.mxu0 %v2866
      %2890 = vmatmul.bf16.gmra.mxu0 %v2754
      %v2891 = vpop.f32.mrf.mxu0
      %v2892 = vadd.f32 0.0, %v2891
      %v2893 = vpop.f32.mrf.mxu0
      %v2894 = vadd.f32 0.0, %v2893
      %2895 = vmatmul.bf16.gmra.mxu0 %v2755
      %v2896 = vpop.f32.mrf.mxu0
      %v2897 = vadd.f32 0.0, %v2896
      %v2898 = vpop.f32.mrf.mxu0
      %v2899 = vadd.f32 0.0, %v2898
      %2900 = vmatmul.bf16.gmra.mxu0 %v2756
      %v2901 = vpop.f32.mrf.mxu0
      %v2902 = vadd.f32 0.0, %v2901
      %v2903 = vpop.f32.mrf.mxu0
      %v2904 = vadd.f32 0.0, %v2903
      %2905 = vmatmul.bf16.gmra.mxu0 %v2757
      %v2906 = vpop.f32.mrf.mxu0
      %v2907 = vadd.f32 0.0, %v2906
      %v2908 = vpop.f32.mrf.mxu0
      %v2909 = vadd.f32 0.0, %v2908
      %2910 = vmatmul.bf16.gmra.mxu0 %v2758
      %v2911 = vpop.f32.mrf.mxu0
      %v2912 = vadd.f32 0.0, %v2911
      %v2913 = vpop.f32.mrf.mxu0
      %v2914 = vadd.f32 0.0, %v2913
      %2915 = vmatmul.bf16.gmra.mxu0 %v2759
      %v2916 = vpop.f32.mrf.mxu0
      %v2917 = vadd.f32 0.0, %v2916
      %v2918 = vpop.f32.mrf.mxu0
      %v2919 = vadd.f32 0.0, %v2918
      %2920 = vmatmul.bf16.gmra.mxu0 %v2760
      %v2921 = vpop.f32.mrf.mxu0
      %v2922 = vadd.f32 0.0, %v2921
      %v2923 = vpop.f32.mrf.mxu0
      %v2924 = vadd.f32 0.0, %v2923
      %2925 = vmatmul.bf16.gmra.mxu0 %v2761
      %v2926 = vpop.f32.mrf.mxu0
      %v2927 = vadd.f32 0.0, %v2926
      %v2928 = vpop.f32.mrf.mxu0
      %v2929 = vadd.f32 0.0, %v2928
      %2930 = vmatmul.bf16.gmra.mxu0 %v2762
      %v2931 = vpop.f32.mrf.mxu0
      %v2932 = vadd.f32 0.0, %v2931
      %v2933 = vpop.f32.mrf.mxu0
      %v2934 = vadd.f32 0.0, %v2933
      %2935 = vmatmul.bf16.gmra.mxu0 %v2763
      %v2936 = vpop.f32.mrf.mxu0
      %v2937 = vadd.f32 0.0, %v2936
      %v2938 = vpop.f32.mrf.mxu0
      %v2939 = vadd.f32 0.0, %v2938
      %2940 = vmatmul.bf16.gmra.mxu0 %v2764
      %v2941 = vpop.f32.mrf.mxu0
      %v2942 = vadd.f32 0.0, %v2941
      %v2943 = vpop.f32.mrf.mxu0
      %v2944 = vadd.f32 0.0, %v2943
      %2945 = vmatmul.bf16.gmra.mxu0 %v2765
      %v2946 = vpop.f32.mrf.mxu0
      %v2947 = vadd.f32 0.0, %v2946
      %v2948 = vpop.f32.mrf.mxu0
      %v2949 = vadd.f32 0.0, %v2948
      %2950 = vmatmul.bf16.gmra.mxu0 %v2766
      %v2951 = vpop.f32.mrf.mxu0
      %v2952 = vadd.f32 0.0, %v2951
      %v2953 = vpop.f32.mrf.mxu0
      %v2954 = vadd.f32 0.0, %v2953
      %2955 = vmatmul.bf16.gmra.mxu0 %v2767
      %v2956 = vpop.f32.mrf.mxu0
      %v2957 = vadd.f32 0.0, %v2956
      %v2958 = vpop.f32.mrf.mxu0
      %v2959 = vadd.f32 0.0, %v2958
      %2960 = vmatmul.bf16.gmra.mxu0 %v2768
      %v2961 = vpop.f32.mrf.mxu0
      %v2962 = vadd.f32 0.0, %v2961
      %v2963 = vpop.f32.mrf.mxu0
      %v2964 = vadd.f32 0.0, %v2963
      %2965 = vmatmul.bf16.gmra.mxu0 %v2769
      %v2966 = vpop.f32.mrf.mxu0
      %v2967 = vadd.f32 0.0, %v2966
      %v2968 = vpop.f32.mrf.mxu0
      %v2969 = vadd.f32 0.0, %v2968
      %2970 = vmatmul.bf16.gmra.mxu0 %v2770
      %v2971 = vpop.f32.mrf.mxu0
      %v2972 = vadd.f32 0.0, %v2971
      %v2973 = vpop.f32.mrf.mxu0
      %v2974 = vadd.f32 0.0, %v2973
      %2975 = vmatmul.bf16.gmra.mxu0 %v2771
      %v2976 = vpop.f32.mrf.mxu0
      %v2977 = vadd.f32 0.0, %v2976
      %v2978 = vpop.f32.mrf.mxu0
      %v2979 = vadd.f32 0.0, %v2978
      %2980 = vmatmul.bf16.gmra.mxu0 %v2772
      %v2981 = vpop.f32.mrf.mxu0
      %v2982 = vadd.f32 0.0, %v2981
      %v2983 = vpop.f32.mrf.mxu0
      %v2984 = vadd.f32 0.0, %v2983
      %2985 = vmatmul.bf16.gmra.mxu0 %v2773
      %v2986 = vpop.f32.mrf.mxu0
      %v2987 = vadd.f32 0.0, %v2986
      %v2988 = vpop.f32.mrf.mxu0
      %v2989 = vadd.f32 0.0, %v2988
      %2990 = vmatmul.bf16.gmra.mxu0 %v2774
      %v2991 = vpop.f32.mrf.mxu0
      %v2992 = vadd.f32 0.0, %v2991
      %v2993 = vpop.f32.mrf.mxu0
      %v2994 = vadd.f32 0.0, %v2993
      %2995 = vmatmul.bf16.gmra.mxu0 %v2775
      %v2996 = vpop.f32.mrf.mxu0
      %v2997 = vadd.f32 0.0, %v2996
      %v2998 = vpop.f32.mrf.mxu0
      %v2999 = vadd.f32 0.0, %v2998
      %3000 = vmatmul.bf16.gmra.mxu0 %v2776
      %v3001 = vpop.f32.mrf.mxu0
      %v3002 = vadd.f32 0.0, %v3001
      %v3003 = vpop.f32.mrf.mxu0
      %v3004 = vadd.f32 0.0, %v3003
      %3005 = vmatmul.bf16.gmra.mxu0 %v2777
      %v3006 = vpop.f32.mrf.mxu0
      %v3007 = vadd.f32 0.0, %v3006
      %v3008 = vpop.f32.mrf.mxu0
      %v3009 = vadd.f32 0.0, %v3008
      %3010 = vmatmul.bf16.gmra.mxu0 %v2778
      %v3011 = vpop.f32.mrf.mxu0
      %v3012 = vadd.f32 0.0, %v3011
      %v3013 = vpop.f32.mrf.mxu0
      %v3014 = vadd.f32 0.0, %v3013
      %3015 = vmatmul.bf16.gmra.mxu0 %v2779
      %v3016 = vpop.f32.mrf.mxu0
      %v3017 = vadd.f32 0.0, %v3016
      %v3018 = vpop.f32.mrf.mxu0
      %v3019 = vadd.f32 0.0, %v3018
      %3020 = vmatmul.bf16.gmra.mxu0 %v2780
      %v3021 = vpop.f32.mrf.mxu0
      %v3022 = vadd.f32 0.0, %v3021
      %v3023 = vpop.f32.mrf.mxu0
      %v3024 = vadd.f32 0.0, %v3023
      %3025 = vmatmul.bf16.gmra.mxu0 %v2781
      %v3026 = vpop.f32.mrf.mxu0
      %v3027 = vadd.f32 0.0, %v3026
      %v3028 = vpop.f32.mrf.mxu0
      %v3029 = vadd.f32 0.0, %v3028
      %3030 = vmatmul.bf16.gmra.mxu0 %v2782
      %v3031 = vpop.f32.mrf.mxu0
      %v3032 = vadd.f32 0.0, %v3031
      %v3033 = vpop.f32.mrf.mxu0
      %v3034 = vadd.f32 0.0, %v3033
      %3035 = vmatmul.bf16.gmra.mxu0 %v2783
      %v3036 = vpop.f32.mrf.mxu0
      %v3037 = vadd.f32 0.0, %v3036
      %v3038 = vpop.f32.mrf.mxu0
      %v3039 = vadd.f32 0.0, %v3038
      %3040 = vmatmul.bf16.gmra.mxu0 %v2784
      %v3041 = vpop.f32.mrf.mxu0
      %v3042 = vadd.f32 0.0, %v3041
      %v3043 = vpop.f32.mrf.mxu0
      %v3044 = vadd.f32 0.0, %v3043
      %3045 = vmatmul.bf16.gmra.mxu0 %v2785
      %v3046 = vpop.f32.mrf.mxu0
      %v3047 = vadd.f32 0.0, %v3046
      %v3048 = vpop.f32.mrf.mxu0
      %v3049 = vadd.f32 0.0, %v3048
      %3050 = vmatmul.bf16.gmra.mxu0 %v2786
      %v3051 = vpop.f32.mrf.mxu0
      %v3052 = vadd.f32 0.0, %v3051
      %v3053 = vpop.f32.mrf.mxu0
      %v3054 = vadd.f32 0.0, %v3053
      %3055 = vmatmul.bf16.gmra.mxu0 %v2787
      %v3056 = vpop.f32.mrf.mxu0
      %v3057 = vadd.f32 0.0, %v3056
      %v3058 = vpop.f32.mrf.mxu0
      %v3059 = vadd.f32 0.0, %v3058
      %3060 = vmatmul.bf16.gmra.mxu0 %v2788
      %v3061 = vpop.f32.mrf.mxu0
      %v3062 = vadd.f32 0.0, %v3061
      %v3063 = vpop.f32.mrf.mxu0
      %v3064 = vadd.f32 0.0, %v3063
      %3065 = vmatmul.bf16.gmra.mxu0 %v2789
      %v3066 = vpop.f32.mrf.mxu0
      %v3067 = vadd.f32 0.0, %v3066
      %v3068 = vpop.f32.mrf.mxu0
      %v3069 = vadd.f32 0.0, %v3068
      %3070 = vmatmul.bf16.gmra.mxu0 %v2790
      %v3071 = vpop.f32.mrf.mxu0
      %v3072 = vadd.f32 0.0, %v3071
      %v3073 = vpop.f32.mrf.mxu0
      %v3074 = vadd.f32 0.0, %v3073
      %3075 = vmatmul.bf16.gmra.mxu0 %v2791
      %v3076 = vpop.f32.mrf.mxu0
      %v3077 = vadd.f32 0.0, %v3076
      %v3078 = vpop.f32.mrf.mxu0
      %v3079 = vadd.f32 0.0, %v3078
      %3080 = vmatmul.bf16.gmra.mxu0 %v2792
      %v3081 = vpop.f32.mrf.mxu0
      %v3082 = vadd.f32 0.0, %v3081
      %v3083 = vpop.f32.mrf.mxu0
      %v3084 = vadd.f32 0.0, %v3083
      %3085 = vmatmul.bf16.gmra.mxu0 %v2793
      %v3086 = vpop.f32.mrf.mxu0
      %v3087 = vadd.f32 0.0, %v3086
      %v3088 = vpop.f32.mrf.mxu0
      %v3089 = vadd.f32 0.0, %v3088
      %3090 = vmatmul.bf16.gmra.mxu0 %v2794
      %v3091 = vpop.f32.mrf.mxu0
      %v3092 = vadd.f32 0.0, %v3091
      %v3093 = vpop.f32.mrf.mxu0
      %v3094 = vadd.f32 0.0, %v3093
      %3095 = vmatmul.bf16.gmra.mxu0 %v2795
      %v3096 = vpop.f32.mrf.mxu0
      %v3097 = vadd.f32 0.0, %v3096
      %v3098 = vpop.f32.mrf.mxu0
      %v3099 = vadd.f32 0.0, %v3098
      %3100 = vmatmul.bf16.gmra.mxu0 %v2796
      %v3101 = vpop.f32.mrf.mxu0
      %v3102 = vadd.f32 0.0, %v3101
      %v3103 = vpop.f32.mrf.mxu0
      %v3104 = vadd.f32 0.0, %v3103
      %3105 = vmatmul.bf16.gmra.mxu0 %v2797
      %v3106 = vpop.f32.mrf.mxu0
      %v3107 = vadd.f32 0.0, %v3106
      %v3108 = vpop.f32.mrf.mxu0
      %v3109 = vadd.f32 0.0, %v3108
      %3110 = vmatmul.bf16.gmra.mxu0 %v2798
      %v3111 = vpop.f32.mrf.mxu0
      %v3112 = vadd.f32 0.0, %v3111
      %v3113 = vpop.f32.mrf.mxu0
      %v3114 = vadd.f32 0.0, %v3113
      %3115 = vmatmul.bf16.gmra.mxu0 %v2799
      %v3116 = vpop.f32.mrf.mxu0
      %v3117 = vadd.f32 0.0, %v3116
      %v3118 = vpop.f32.mrf.mxu0
      %v3119 = vadd.f32 0.0, %v3118
      %3120 = vmatmul.bf16.gmra.mxu0 %v2800
      %v3121 = vpop.f32.mrf.mxu0
      %v3122 = vadd.f32 0.0, %v3121
      %v3123 = vpop.f32.mrf.mxu0
      %v3124 = vadd.f32 0.0, %v3123
      %3125 = vmatmul.bf16.gmra.mxu0 %v2801
      %v3126 = vpop.f32.mrf.mxu0
      %v3127 = vadd.f32 0.0, %v3126
      %v3128 = vpop.f32.mrf.mxu0
      %v3129 = vadd.f32 0.0, %v3128
      %3130 = vmatmul.bf16.gmra.mxu0 %v2802
      %v3131 = vpop.f32.mrf.mxu0
      %v3132 = vadd.f32 0.0, %v3131
      %v3133 = vpop.f32.mrf.mxu0
      %v3134 = vadd.f32 0.0, %v3133
      %3135 = vmatmul.bf16.gmra.mxu0 %v2803
      %v3136 = vpop.f32.mrf.mxu0
      %v3137 = vadd.f32 0.0, %v3136
      %v3138 = vpop.f32.mrf.mxu0
      %v3139 = vadd.f32 0.0, %v3138
      %3140 = vmatmul.bf16.gmra.mxu0 %v2804
      %v3141 = vpop.f32.mrf.mxu0
      %v3142 = vadd.f32 0.0, %v3141
      %v3143 = vpop.f32.mrf.mxu0
      %v3144 = vadd.f32 0.0, %v3143
      %3145 = vmatmul.bf16.gmra.mxu0 %v2805
      %v3146 = vpop.f32.mrf.mxu0
      %v3147 = vadd.f32 0.0, %v3146
      %v3148 = vpop.f32.mrf.mxu0
      %v3149 = vadd.f32 0.0, %v3148
      %3150 = vmatmul.bf16.gmra.mxu0 %v2806
      %v3151 = vpop.f32.mrf.mxu0
      %v3152 = vadd.f32 0.0, %v3151
      %v3153 = vpop.f32.mrf.mxu0
      %v3154 = vadd.f32 0.0, %v3153
      %3155 = vmatmul.bf16.gmra.mxu0 %v2807
      %v3156 = vpop.f32.mrf.mxu0
      %v3157 = vadd.f32 0.0, %v3156
      %v3158 = vpop.f32.mrf.mxu0
      %v3159 = vadd.f32 0.0, %v3158
      %3160 = vmatmul.bf16.gmra.mxu0 %v2808
      %v3161 = vpop.f32.mrf.mxu0
      %v3162 = vadd.f32 0.0, %v3161
      %v3163 = vpop.f32.mrf.mxu0
      %v3164 = vadd.f32 0.0, %v3163
      %3165 = vmatmul.bf16.gmra.mxu0 %v2809
      %v3166 = vpop.f32.mrf.mxu0
      %v3167 = vadd.f32 0.0, %v3166
      %v3168 = vpop.f32.mrf.mxu0
      %v3169 = vadd.f32 0.0, %v3168
      %3170 = vmatmul.bf16.gmra.mxu0 %v2810
      %v3171 = vpop.f32.mrf.mxu0
      %v3172 = vadd.f32 0.0, %v3171
      %v3173 = vpop.f32.mrf.mxu0
      %v3174 = vadd.f32 0.0, %v3173
      %3175 = vmatmul.bf16.gmra.mxu0 %v2811
      %v3176 = vpop.f32.mrf.mxu0
      %v3177 = vadd.f32 0.0, %v3176
      %v3178 = vpop.f32.mrf.mxu0
      %v3179 = vadd.f32 0.0, %v3178
      %3180 = vmatmul.bf16.gmra.mxu0 %v2812
      %v3181 = vpop.f32.mrf.mxu0
      %v3182 = vadd.f32 0.0, %v3181
      %v3183 = vpop.f32.mrf.mxu0
      %v3184 = vadd.f32 0.0, %v3183
      %3185 = vmatmul.bf16.gmra.mxu0 %v2813
      %v3186 = vpop.f32.mrf.mxu0
      %v3187 = vadd.f32 0.0, %v3186
      %v3188 = vpop.f32.mrf.mxu0
      %v3189 = vadd.f32 0.0, %v3188
      %3190 = vmatmul.bf16.gmra.mxu0 %v2814
      %v3191 = vpop.f32.mrf.mxu0
      %v3192 = vadd.f32 0.0, %v3191
      %v3193 = vpop.f32.mrf.mxu0
      %v3194 = vadd.f32 0.0, %v3193
      %3195 = vmatmul.bf16.gmra.mxu0 %v2815
      %v3196 = vpop.f32.mrf.mxu0
      %v3197 = vadd.f32 0.0, %v3196
      %v3198 = vpop.f32.mrf.mxu0
      %v3199 = vadd.f32 0.0, %v3198
      %3200 = vmatmul.bf16.gmra.mxu0 %v2816
      %v3201 = vpop.f32.mrf.mxu0
      %v3202 = vadd.f32 0.0, %v3201
      %v3203 = vpop.f32.mrf.mxu0
      %v3204 = vadd.f32 0.0, %v3203
      %3205 = vmatmul.bf16.gmra.mxu0 %v2817
      %v3206 = vpop.f32.mrf.mxu0
      %v3207 = vadd.f32 0.0, %v3206
      %v3208 = vpop.f32.mrf.mxu0
      %v3209 = vadd.f32 0.0, %v3208
      %3210 = vdwg.mxu0
      %v3211 = vtanh.pop %v2892
      %v3212 = vtanh.pop %v2894
      %v3213 = vtanh.pop %v2897
      %v3214 = vtanh.pop %v2899
      %v3215 = vtanh.pop %v2902
      %v3216 = vtanh.pop %v2904
      %v3217 = vtanh.pop %v2907
      %v3218 = vtanh.pop %v2909
      %v3219 = vtanh.pop %v2912
      %v3220 = vtanh.pop %v2914
      %v3221 = vtanh.pop %v2917
      %v3222 = vtanh.pop %v2919
      %v3223 = vtanh.pop %v2922
      %v3224 = vtanh.pop %v2924
      %v3225 = vtanh.pop %v2927
      %v3226 = vtanh.pop %v2929
      %v3227 = vtanh.pop %v2932
      %v3228 = vtanh.pop %v2934
      %v3229 = vtanh.pop %v2937
      %v3230 = vtanh.pop %v2939
      %v3231 = vtanh.pop %v2942
      %v3232 = vtanh.pop %v2944
      %v3233 = vtanh.pop %v2947
      %v3234 = vtanh.pop %v2949
      %v3235 = vtanh.pop %v2952
      %v3236 = vtanh.pop %v2954
      %v3237 = vtanh.pop %v2957
      %v3238 = vtanh.pop %v2959
      %v3239 = vtanh.pop %v2962
      %v3240 = vtanh.pop %v2964
      %v3241 = vtanh.pop %v2967
      %v3242 = vtanh.pop %v2969
      %v3243 = vtanh.pop %v2972
      %v3244 = vtanh.pop %v2974
      %v3245 = vtanh.pop %v2977
      %v3246 = vtanh.pop %v2979
      %v3247 = vtanh.pop %v2982
      %v3248 = vtanh.pop %v2984
      %v3249 = vtanh.pop %v2987
      %v3250 = vtanh.pop %v2989
      %v3251 = vtanh.pop %v2992
      %v3252 = vtanh.pop %v2994
      %v3253 = vtanh.pop %v2997
      %v3254 = vtanh.pop %v2999
      %v3255 = vtanh.pop %v3002
      %v3256 = vtanh.pop %v3004
      %v3257 = vtanh.pop %v3007
      %v3258 = vtanh.pop %v3009
      %v3259 = vtanh.pop %v3012
      %v3260 = vtanh.pop %v3014
      %v3261 = vtanh.pop %v3017
      %v3262 = vtanh.pop %v3019
      %v3263 = vtanh.pop %v3022
      %v3264 = vtanh.pop %v3024
      %v3265 = vtanh.pop %v3027
      %v3266 = vtanh.pop %v3029
      %v3267 = vtanh.pop %v3032
      %v3268 = vtanh.pop %v3034
      %v3269 = vtanh.pop %v3037
      %v3270 = vtanh.pop %v3039
      %v3271 = vtanh.pop %v3042
      %v3272 = vtanh.pop %v3044
      %v3273 = vtanh.pop %v3047
      %v3274 = vtanh.pop %v3049
      %v3275 = vtanh.pop %v3052
      %v3276 = vtanh.pop %v3054
      %v3277 = vtanh.pop %v3057
      %v3278 = vtanh.pop %v3059
      %v3279 = vtanh.pop %v3062
      %v3280 = vtanh.pop %v3064
      %v3281 = vtanh.pop %v3067
      %v3282 = vtanh.pop %v3069
      %v3283 = vtanh.pop %v3072
      %v3284 = vtanh.pop %v3074
      %v3285 = vtanh.pop %v3077
      %v3286 = vtanh.pop %v3079
      %v3287 = vtanh.pop %v3082
      %v3288 = vtanh.pop %v3084
      %v3289 = vtanh.pop %v3087
      %v3290 = vtanh.pop %v3089
      %v3291 = vtanh.pop %v3092
      %v3292 = vtanh.pop %v3094
      %v3293 = vtanh.pop %v3097
      %v3294 = vtanh.pop %v3099
      %v3295 = vtanh.pop %v3102
      %v3296 = vtanh.pop %v3104
      %v3297 = vtanh.pop %v3107
      %v3298 = vtanh.pop %v3109
      %v3299 = vtanh.pop %v3112
      %v3300 = vtanh.pop %v3114
      %v3301 = vtanh.pop %v3117
      %v3302 = vtanh.pop %v3119
      %v3303 = vtanh.pop %v3122
      %v3304 = vtanh.pop %v3124
      %v3305 = vtanh.pop %v3127
      %v3306 = vtanh.pop %v3129
      %v3307 = vtanh.pop %v3132
      %v3308 = vtanh.pop %v3134
      %v3309 = vtanh.pop %v3137
      %v3310 = vtanh.pop %v3139
      %v3311 = vtanh.pop %v3142
      %v3312 = vtanh.pop %v3144
      %v3313 = vtanh.pop %v3147
      %v3314 = vtanh.pop %v3149
      %v3315 = vtanh.pop %v3152
      %v3316 = vtanh.pop %v3154
      %v3317 = vtanh.pop %v3157
      %v3318 = vtanh.pop %v3159
      %v3319 = vtanh.pop %v3162
      %v3320 = vtanh.pop %v3164
      %v3321 = vtanh.pop %v3167
      %v3322 = vtanh.pop %v3169
      %v3323 = vtanh.pop %v3172
      %v3324 = vtanh.pop %v3174
      %v3325 = vtanh.pop %v3177
      %v3326 = vtanh.pop %v3179
      %v3327 = vtanh.pop %v3182
      %v3328 = vtanh.pop %v3184
      %v3329 = vtanh.pop %v3187
      %v3330 = vtanh.pop %v3189
      %v3331 = vtanh.pop %v3192
      %v3332 = vtanh.pop %v3194
      %v3333 = vtanh.pop %v3197
      %v3334 = vtanh.pop %v3199
      %v3335 = vtanh.pop %v3202
      %v3336 = vtanh.pop %v3204
      %v3337 = vtanh.pop %v3207
      %v3338 = vtanh.pop %v3209
      %v3339 = vpack.c.bf16 %v3212, %v3211
      %v3340 = vpack.c.bf16 %v3214, %v3213
      %v3341 = vpack.c.bf16 %v3216, %v3215
      %v3342 = vpack.c.bf16 %v3218, %v3217
      %v3343 = vpack.c.bf16 %v3220, %v3219
      %v3344 = vpack.c.bf16 %v3222, %v3221
      %v3345 = vpack.c.bf16 %v3224, %v3223
      %v3346 = vpack.c.bf16 %v3226, %v3225
      %v3347 = vpack.c.bf16 %v3228, %v3227
      %v3348 = vpack.c.bf16 %v3230, %v3229
      %v3349 = vpack.c.bf16 %v3232, %v3231
      %v3350 = vpack.c.bf16 %v3234, %v3233
      %v3351 = vpack.c.bf16 %v3236, %v3235
      %v3352 = vpack.c.bf16 %v3238, %v3237
      %v3353 = vpack.c.bf16 %v3240, %v3239
      %v3354 = vpack.c.bf16 %v3242, %v3241
      %v3355 = vpack.c.bf16 %v3244, %v3243
      %v3356 = vpack.c.bf16 %v3246, %v3245
      %v3357 = vpack.c.bf16 %v3248, %v3247
      %v3358 = vpack.c.bf16 %v3250, %v3249
      %v3359 = vpack.c.bf16 %v3252, %v3251
      %v3360 = vpack.c.bf16 %v3254, %v3253
      %v3361 = vpack.c.bf16 %v3256, %v3255
      %v3362 = vpack.c.bf16 %v3258, %v3257
      %v3363 = vpack.c.bf16 %v3260, %v3259
      %v3364 = vpack.c.bf16 %v3262, %v3261
      %v3365 = vpack.c.bf16 %v3264, %v3263
      %v3366 = vpack.c.bf16 %v3266, %v3265
      %v3367 = vpack.c.bf16 %v3268, %v3267
      %v3368 = vpack.c.bf16 %v3270, %v3269
      %v3369 = vpack.c.bf16 %v3272, %v3271
      %v3370 = vpack.c.bf16 %v3274, %v3273
      %v3371 = vpack.c.bf16 %v3276, %v3275
      %v3372 = vpack.c.bf16 %v3278, %v3277
      %v3373 = vpack.c.bf16 %v3280, %v3279
      %v3374 = vpack.c.bf16 %v3282, %v3281
      %v3375 = vpack.c.bf16 %v3284, %v3283
      %v3376 = vpack.c.bf16 %v3286, %v3285
      %v3377 = vpack.c.bf16 %v3288, %v3287
      %v3378 = vpack.c.bf16 %v3290, %v3289
      %v3379 = vpack.c.bf16 %v3292, %v3291
      %v3380 = vpack.c.bf16 %v3294, %v3293
      %v3381 = vpack.c.bf16 %v3296, %v3295
      %v3382 = vpack.c.bf16 %v3298, %v3297
      %v3383 = vpack.c.bf16 %v3300, %v3299
      %v3384 = vpack.c.bf16 %v3302, %v3301
      %v3385 = vpack.c.bf16 %v3304, %v3303
      %v3386 = vpack.c.bf16 %v3306, %v3305
      %v3387 = vpack.c.bf16 %v3308, %v3307
      %v3388 = vpack.c.bf16 %v3310, %v3309
      %v3389 = vpack.c.bf16 %v3312, %v3311
      %v3390 = vpack.c.bf16 %v3314, %v3313
      %v3391 = vpack.c.bf16 %v3316, %v3315
      %v3392 = vpack.c.bf16 %v3318, %v3317
      %v3393 = vpack.c.bf16 %v3320, %v3319
      %v3394 = vpack.c.bf16 %v3322, %v3321
      %v3395 = vpack.c.bf16 %v3324, %v3323
      %v3396 = vpack.c.bf16 %v3326, %v3325
      %v3397 = vpack.c.bf16 %v3328, %v3327
      %v3398 = vpack.c.bf16 %v3330, %v3329
      %v3399 = vpack.c.bf16 %v3332, %v3331
      %v3400 = vpack.c.bf16 %v3334, %v3333
      %v3401 = vpack.c.bf16 %v3336, %v3335
      %v3402 = vpack.c.bf16 %v3338, %v3337
      %v3403 = vld [vmem:[%s4] sm:$0xf]
      %v3404 = vld [vmem:[%s4 + $0x4] sm:$0xf]
      %v3405 = vld [vmem:[%s4 + $0x8] sm:$0xf]
      %v3406 = vld [vmem:[%s4 + $0xc] sm:$0xf]
      %v3407 = vld [vmem:[%s4 + $0x10] sm:$0xf]
      %v3408 = vld [vmem:[%s4 + $0x14] sm:$0xf]
      %v3409 = vld [vmem:[%s4 + $0x18] sm:$0xf]
      %v3410 = vld [vmem:[%s4 + $0x1c] sm:$0xf]
      %v3411 = vld [vmem:[%s4 + $0x20] sm:$0xf]
      %v3412 = vld [vmem:[%s4 + $0x24] sm:$0xf]
      %v3413 = vld [vmem:[%s4 + $0x28] sm:$0xf]
      %v3414 = vld [vmem:[%s4 + $0x2c] sm:$0xf]
      %v3415 = vld [vmem:[%s4 + $0x30] sm:$0xf]
      %v3416 = vld [vmem:[%s4 + $0x34] sm:$0xf]
      %v3417 = vld [vmem:[%s4 + $0x38] sm:$0xf]
      %v3418 = vld [vmem:[%s4 + $0x3c] sm:$0xf]
      %v3435 = vunpack.c.l.b16 %v3403
      %v3436 = vunpack.c.l.b16 %v3404
      %v3437 = vunpack.c.l.b16 %v3405
      %v3438 = vunpack.c.l.b16 %v3406
      %v3439 = vunpack.c.l.b16 %v3407
      %v3440 = vunpack.c.l.b16 %v3408
      %v3441 = vunpack.c.l.b16 %v3409
      %v3442 = vunpack.c.l.b16 %v3410
      %v3443 = vunpack.c.l.b16 %v3411
      %v3444 = vunpack.c.l.b16 %v3412
      %v3445 = vunpack.c.l.b16 %v3413
      %v3446 = vunpack.c.l.b16 %v3414
      %v3447 = vunpack.c.l.b16 %v3415
      %v3448 = vunpack.c.l.b16 %v3416
      %v3449 = vunpack.c.l.b16 %v3417
      %v3450 = vunpack.c.l.b16 %v3418
      %v3451 = vpack.c.b16 %v3436, %v3435
      %v3452 = vpack.c.b16 %v3438, %v3437
      %v3453 = vpack.c.b16 %v3440, %v3439
      %v3454 = vpack.c.b16 %v3442, %v3441
      %v3455 = vpack.c.b16 %v3444, %v3443
      %v3456 = vpack.c.b16 %v3446, %v3445
      %v3457 = vpack.c.b16 %v3448, %v3447
      %v3458 = vpack.c.b16 %v3450, %v3449
      %3467 = vmatpush.bf16.msra.mxu0 %v3458
      %3468 = vmatpush.bf16.msra.mxu0 %v3457
      %3469 = vmatpush.bf16.msra.mxu0 %v3456
      %3470 = vmatpush.bf16.msra.mxu0 %v3455
      %3471 = vmatpush.bf16.msra.mxu0 %v3454
      %3472 = vmatpush.bf16.msra.mxu0 %v3453
      %3473 = vmatpush.bf16.msra.mxu0 %v3452
      %3474 = vmatpush.bf16.msra.mxu0 %v3451
      %3475 = vmatmul.bf16.gmra.mxu0 %v3339
      %v3476 = vpop.f32.mrf.mxu0
      %v3477 = vadd.f32 0.0, %v3476
      %v3478 = vpop.f32.mrf.mxu0
      %v3479 = vadd.f32 0.0, %v3478
      %3480 = vmatmul.bf16.gmra.mxu0 %v3340
      %v3481 = vpop.f32.mrf.mxu0
      %v3482 = vadd.f32 0.0, %v3481
      %v3483 = vpop.f32.mrf.mxu0
      %v3484 = vadd.f32 0.0, %v3483
      %3485 = vmatmul.bf16.gmra.mxu0 %v3341
      %v3486 = vpop.f32.mrf.mxu0
      %v3487 = vadd.f32 0.0, %v3486
      %v3488 = vpop.f32.mrf.mxu0
      %v3489 = vadd.f32 0.0, %v3488
      %3490 = vmatmul.bf16.gmra.mxu0 %v3342
      %v3491 = vpop.f32.mrf.mxu0
      %v3492 = vadd.f32 0.0, %v3491
      %v3493 = vpop.f32.mrf.mxu0
      %v3494 = vadd.f32 0.0, %v3493
      %3495 = vmatmul.bf16.gmra.mxu0 %v3343
      %v3496 = vpop.f32.mrf.mxu0
      %v3497 = vadd.f32 0.0, %v3496
      %v3498 = vpop.f32.mrf.mxu0
      %v3499 = vadd.f32 0.0, %v3498
      %3500 = vmatmul.bf16.gmra.mxu0 %v3344
      %v3501 = vpop.f32.mrf.mxu0
      %v3502 = vadd.f32 0.0, %v3501
      %v3503 = vpop.f32.mrf.mxu0
      %v3504 = vadd.f32 0.0, %v3503
      %3505 = vmatmul.bf16.gmra.mxu0 %v3345
      %v3506 = vpop.f32.mrf.mxu0
      %v3507 = vadd.f32 0.0, %v3506
      %v3508 = vpop.f32.mrf.mxu0
      %v3509 = vadd.f32 0.0, %v3508
      %3510 = vmatmul.bf16.gmra.mxu0 %v3346
      %v3511 = vpop.f32.mrf.mxu0
      %v3512 = vadd.f32 0.0, %v3511
      %v3513 = vpop.f32.mrf.mxu0
      %v3514 = vadd.f32 0.0, %v3513
      %3515 = vmatmul.bf16.gmra.mxu0 %v3347
      %v3516 = vpop.f32.mrf.mxu0
      %v3517 = vadd.f32 0.0, %v3516
      %v3518 = vpop.f32.mrf.mxu0
      %v3519 = vadd.f32 0.0, %v3518
      %3520 = vmatmul.bf16.gmra.mxu0 %v3348
      %v3521 = vpop.f32.mrf.mxu0
      %v3522 = vadd.f32 0.0, %v3521
      %v3523 = vpop.f32.mrf.mxu0
      %v3524 = vadd.f32 0.0, %v3523
      %3525 = vmatmul.bf16.gmra.mxu0 %v3349
      %v3526 = vpop.f32.mrf.mxu0
      %v3527 = vadd.f32 0.0, %v3526
      %v3528 = vpop.f32.mrf.mxu0
      %v3529 = vadd.f32 0.0, %v3528
      %3530 = vmatmul.bf16.gmra.mxu0 %v3350
      %v3531 = vpop.f32.mrf.mxu0
      %v3532 = vadd.f32 0.0, %v3531
      %v3533 = vpop.f32.mrf.mxu0
      %v3534 = vadd.f32 0.0, %v3533
      %3535 = vmatmul.bf16.gmra.mxu0 %v3351
      %v3536 = vpop.f32.mrf.mxu0
      %v3537 = vadd.f32 0.0, %v3536
      %v3538 = vpop.f32.mrf.mxu0
      %v3539 = vadd.f32 0.0, %v3538
      %3540 = vmatmul.bf16.gmra.mxu0 %v3352
      %v3541 = vpop.f32.mrf.mxu0
      %v3542 = vadd.f32 0.0, %v3541
      %v3543 = vpop.f32.mrf.mxu0
      %v3544 = vadd.f32 0.0, %v3543
      %3545 = vmatmul.bf16.gmra.mxu0 %v3353
      %v3546 = vpop.f32.mrf.mxu0
      %v3547 = vadd.f32 0.0, %v3546
      %v3548 = vpop.f32.mrf.mxu0
      %v3549 = vadd.f32 0.0, %v3548
      %3550 = vmatmul.bf16.gmra.mxu0 %v3354
      %v3551 = vpop.f32.mrf.mxu0
      %v3552 = vadd.f32 0.0, %v3551
      %v3553 = vpop.f32.mrf.mxu0
      %v3554 = vadd.f32 0.0, %v3553
      %3555 = vmatmul.bf16.gmra.mxu0 %v3355
      %v3556 = vpop.f32.mrf.mxu0
      %v3557 = vadd.f32 0.0, %v3556
      %v3558 = vpop.f32.mrf.mxu0
      %v3559 = vadd.f32 0.0, %v3558
      %3560 = vmatmul.bf16.gmra.mxu0 %v3356
      %v3561 = vpop.f32.mrf.mxu0
      %v3562 = vadd.f32 0.0, %v3561
      %v3563 = vpop.f32.mrf.mxu0
      %v3564 = vadd.f32 0.0, %v3563
      %3565 = vmatmul.bf16.gmra.mxu0 %v3357
      %v3566 = vpop.f32.mrf.mxu0
      %v3567 = vadd.f32 0.0, %v3566
      %v3568 = vpop.f32.mrf.mxu0
      %v3569 = vadd.f32 0.0, %v3568
      %3570 = vmatmul.bf16.gmra.mxu0 %v3358
      %v3571 = vpop.f32.mrf.mxu0
      %v3572 = vadd.f32 0.0, %v3571
      %v3573 = vpop.f32.mrf.mxu0
      %v3574 = vadd.f32 0.0, %v3573
      %3575 = vmatmul.bf16.gmra.mxu0 %v3359
      %v3576 = vpop.f32.mrf.mxu0
      %v3577 = vadd.f32 0.0, %v3576
      %v3578 = vpop.f32.mrf.mxu0
      %v3579 = vadd.f32 0.0, %v3578
      %3580 = vmatmul.bf16.gmra.mxu0 %v3360
      %v3581 = vpop.f32.mrf.mxu0
      %v3582 = vadd.f32 0.0, %v3581
      %v3583 = vpop.f32.mrf.mxu0
      %v3584 = vadd.f32 0.0, %v3583
      %3585 = vmatmul.bf16.gmra.mxu0 %v3361
      %v3586 = vpop.f32.mrf.mxu0
      %v3587 = vadd.f32 0.0, %v3586
      %v3588 = vpop.f32.mrf.mxu0
      %v3589 = vadd.f32 0.0, %v3588
      %3590 = vmatmul.bf16.gmra.mxu0 %v3362
      %v3591 = vpop.f32.mrf.mxu0
      %v3592 = vadd.f32 0.0, %v3591
      %v3593 = vpop.f32.mrf.mxu0
      %v3594 = vadd.f32 0.0, %v3593
      %3595 = vmatmul.bf16.gmra.mxu0 %v3363
      %v3596 = vpop.f32.mrf.mxu0
      %v3597 = vadd.f32 0.0, %v3596
      %v3598 = vpop.f32.mrf.mxu0
      %v3599 = vadd.f32 0.0, %v3598
      %3600 = vmatmul.bf16.gmra.mxu0 %v3364
      %v3601 = vpop.f32.mrf.mxu0
      %v3602 = vadd.f32 0.0, %v3601
      %v3603 = vpop.f32.mrf.mxu0
      %v3604 = vadd.f32 0.0, %v3603
      %3605 = vmatmul.bf16.gmra.mxu0 %v3365
      %v3606 = vpop.f32.mrf.mxu0
      %v3607 = vadd.f32 0.0, %v3606
      %v3608 = vpop.f32.mrf.mxu0
      %v3609 = vadd.f32 0.0, %v3608
      %3610 = vmatmul.bf16.gmra.mxu0 %v3366
      %v3611 = vpop.f32.mrf.mxu0
      %v3612 = vadd.f32 0.0, %v3611
      %v3613 = vpop.f32.mrf.mxu0
      %v3614 = vadd.f32 0.0, %v3613
      %3615 = vmatmul.bf16.gmra.mxu0 %v3367
      %v3616 = vpop.f32.mrf.mxu0
      %v3617 = vadd.f32 0.0, %v3616
      %v3618 = vpop.f32.mrf.mxu0
      %v3619 = vadd.f32 0.0, %v3618
      %3620 = vmatmul.bf16.gmra.mxu0 %v3368
      %v3621 = vpop.f32.mrf.mxu0
      %v3622 = vadd.f32 0.0, %v3621
      %v3623 = vpop.f32.mrf.mxu0
      %v3624 = vadd.f32 0.0, %v3623
      %3625 = vmatmul.bf16.gmra.mxu0 %v3369
      %v3626 = vpop.f32.mrf.mxu0
      %v3627 = vadd.f32 0.0, %v3626
      %v3628 = vpop.f32.mrf.mxu0
      %v3629 = vadd.f32 0.0, %v3628
      %3630 = vmatmul.bf16.gmra.mxu0 %v3370
      %v3631 = vpop.f32.mrf.mxu0
      %v3632 = vadd.f32 0.0, %v3631
      %v3633 = vpop.f32.mrf.mxu0
      %v3634 = vadd.f32 0.0, %v3633
      %3635 = vmatmul.bf16.gmra.mxu0 %v3371
      %v3636 = vpop.f32.mrf.mxu0
      %v3637 = vadd.f32 0.0, %v3636
      %v3638 = vpop.f32.mrf.mxu0
      %v3639 = vadd.f32 0.0, %v3638
      %3640 = vmatmul.bf16.gmra.mxu0 %v3372
      %v3641 = vpop.f32.mrf.mxu0
      %v3642 = vadd.f32 0.0, %v3641
      %v3643 = vpop.f32.mrf.mxu0
      %v3644 = vadd.f32 0.0, %v3643
      %3645 = vmatmul.bf16.gmra.mxu0 %v3373
      %v3646 = vpop.f32.mrf.mxu0
      %v3647 = vadd.f32 0.0, %v3646
      %v3648 = vpop.f32.mrf.mxu0
      %v3649 = vadd.f32 0.0, %v3648
      %3650 = vmatmul.bf16.gmra.mxu0 %v3374
      %v3651 = vpop.f32.mrf.mxu0
      %v3652 = vadd.f32 0.0, %v3651
      %v3653 = vpop.f32.mrf.mxu0
      %v3654 = vadd.f32 0.0, %v3653
      %3655 = vmatmul.bf16.gmra.mxu0 %v3375
      %v3656 = vpop.f32.mrf.mxu0
      %v3657 = vadd.f32 0.0, %v3656
      %v3658 = vpop.f32.mrf.mxu0
      %v3659 = vadd.f32 0.0, %v3658
      %3660 = vmatmul.bf16.gmra.mxu0 %v3376
      %v3661 = vpop.f32.mrf.mxu0
      %v3662 = vadd.f32 0.0, %v3661
      %v3663 = vpop.f32.mrf.mxu0
      %v3664 = vadd.f32 0.0, %v3663
      %3665 = vmatmul.bf16.gmra.mxu0 %v3377
      %v3666 = vpop.f32.mrf.mxu0
      %v3667 = vadd.f32 0.0, %v3666
      %v3668 = vpop.f32.mrf.mxu0
      %v3669 = vadd.f32 0.0, %v3668
      %3670 = vmatmul.bf16.gmra.mxu0 %v3378
      %v3671 = vpop.f32.mrf.mxu0
      %v3672 = vadd.f32 0.0, %v3671
      %v3673 = vpop.f32.mrf.mxu0
      %v3674 = vadd.f32 0.0, %v3673
      %3675 = vmatmul.bf16.gmra.mxu0 %v3379
      %v3676 = vpop.f32.mrf.mxu0
      %v3677 = vadd.f32 0.0, %v3676
      %v3678 = vpop.f32.mrf.mxu0
      %v3679 = vadd.f32 0.0, %v3678
      %3680 = vmatmul.bf16.gmra.mxu0 %v3380
      %v3681 = vpop.f32.mrf.mxu0
      %v3682 = vadd.f32 0.0, %v3681
      %v3683 = vpop.f32.mrf.mxu0
      %v3684 = vadd.f32 0.0, %v3683
      %3685 = vmatmul.bf16.gmra.mxu0 %v3381
      %v3686 = vpop.f32.mrf.mxu0
      %v3687 = vadd.f32 0.0, %v3686
      %v3688 = vpop.f32.mrf.mxu0
      %v3689 = vadd.f32 0.0, %v3688
      %3690 = vmatmul.bf16.gmra.mxu0 %v3382
      %v3691 = vpop.f32.mrf.mxu0
      %v3692 = vadd.f32 0.0, %v3691
      %v3693 = vpop.f32.mrf.mxu0
      %v3694 = vadd.f32 0.0, %v3693
      %3695 = vmatmul.bf16.gmra.mxu0 %v3383
      %v3696 = vpop.f32.mrf.mxu0
      %v3697 = vadd.f32 0.0, %v3696
      %v3698 = vpop.f32.mrf.mxu0
      %v3699 = vadd.f32 0.0, %v3698
      %3700 = vmatmul.bf16.gmra.mxu0 %v3384
      %v3701 = vpop.f32.mrf.mxu0
      %v3702 = vadd.f32 0.0, %v3701
      %v3703 = vpop.f32.mrf.mxu0
      %v3704 = vadd.f32 0.0, %v3703
      %3705 = vmatmul.bf16.gmra.mxu0 %v3385
      %v3706 = vpop.f32.mrf.mxu0
      %v3707 = vadd.f32 0.0, %v3706
      %v3708 = vpop.f32.mrf.mxu0
      %v3709 = vadd.f32 0.0, %v3708
      %3710 = vmatmul.bf16.gmra.mxu0 %v3386
      %v3711 = vpop.f32.mrf.mxu0
      %v3712 = vadd.f32 0.0, %v3711
      %v3713 = vpop.f32.mrf.mxu0
      %v3714 = vadd.f32 0.0, %v3713
      %3715 = vmatmul.bf16.gmra.mxu0 %v3387
      %v3716 = vpop.f32.mrf.mxu0
      %v3717 = vadd.f32 0.0, %v3716
      %v3718 = vpop.f32.mrf.mxu0
      %v3719 = vadd.f32 0.0, %v3718
      %3720 = vmatmul.bf16.gmra.mxu0 %v3388
      %v3721 = vpop.f32.mrf.mxu0
      %v3722 = vadd.f32 0.0, %v3721
      %v3723 = vpop.f32.mrf.mxu0
      %v3724 = vadd.f32 0.0, %v3723
      %3725 = vmatmul.bf16.gmra.mxu0 %v3389
      %v3726 = vpop.f32.mrf.mxu0
      %v3727 = vadd.f32 0.0, %v3726
      %v3728 = vpop.f32.mrf.mxu0
      %v3729 = vadd.f32 0.0, %v3728
      %3730 = vmatmul.bf16.gmra.mxu0 %v3390
      %v3731 = vpop.f32.mrf.mxu0
      %v3732 = vadd.f32 0.0, %v3731
      %v3733 = vpop.f32.mrf.mxu0
      %v3734 = vadd.f32 0.0, %v3733
      %3735 = vmatmul.bf16.gmra.mxu0 %v3391
      %v3736 = vpop.f32.mrf.mxu0
      %v3737 = vadd.f32 0.0, %v3736
      %v3738 = vpop.f32.mrf.mxu0
      %v3739 = vadd.f32 0.0, %v3738
      %3740 = vmatmul.bf16.gmra.mxu0 %v3392
      %v3741 = vpop.f32.mrf.mxu0
      %v3742 = vadd.f32 0.0, %v3741
      %v3743 = vpop.f32.mrf.mxu0
      %v3744 = vadd.f32 0.0, %v3743
      %3745 = vmatmul.bf16.gmra.mxu0 %v3393
      %v3746 = vpop.f32.mrf.mxu0
      %v3747 = vadd.f32 0.0, %v3746
      %v3748 = vpop.f32.mrf.mxu0
      %v3749 = vadd.f32 0.0, %v3748
      %3750 = vmatmul.bf16.gmra.mxu0 %v3394
      %v3751 = vpop.f32.mrf.mxu0
      %v3752 = vadd.f32 0.0, %v3751
      %v3753 = vpop.f32.mrf.mxu0
      %v3754 = vadd.f32 0.0, %v3753
      %3755 = vmatmul.bf16.gmra.mxu0 %v3395
      %v3756 = vpop.f32.mrf.mxu0
      %v3757 = vadd.f32 0.0, %v3756
      %v3758 = vpop.f32.mrf.mxu0
      %v3759 = vadd.f32 0.0, %v3758
      %3760 = vmatmul.bf16.gmra.mxu0 %v3396
      %v3761 = vpop.f32.mrf.mxu0
      %v3762 = vadd.f32 0.0, %v3761
      %v3763 = vpop.f32.mrf.mxu0
      %v3764 = vadd.f32 0.0, %v3763
      %3765 = vmatmul.bf16.gmra.mxu0 %v3397
      %v3766 = vpop.f32.mrf.mxu0
      %v3767 = vadd.f32 0.0, %v3766
      %v3768 = vpop.f32.mrf.mxu0
      %v3769 = vadd.f32 0.0, %v3768
      %3770 = vmatmul.bf16.gmra.mxu0 %v3398
      %v3771 = vpop.f32.mrf.mxu0
      %v3772 = vadd.f32 0.0, %v3771
      %v3773 = vpop.f32.mrf.mxu0
      %v3774 = vadd.f32 0.0, %v3773
      %3775 = vmatmul.bf16.gmra.mxu0 %v3399
      %v3776 = vpop.f32.mrf.mxu0
      %v3777 = vadd.f32 0.0, %v3776
      %v3778 = vpop.f32.mrf.mxu0
      %v3779 = vadd.f32 0.0, %v3778
      %3780 = vmatmul.bf16.gmra.mxu0 %v3400
      %v3781 = vpop.f32.mrf.mxu0
      %v3782 = vadd.f32 0.0, %v3781
      %v3783 = vpop.f32.mrf.mxu0
      %v3784 = vadd.f32 0.0, %v3783
      %3785 = vmatmul.bf16.gmra.mxu0 %v3401
      %v3786 = vpop.f32.mrf.mxu0
      %v3787 = vadd.f32 0.0, %v3786
      %v3788 = vpop.f32.mrf.mxu0
      %v3789 = vadd.f32 0.0, %v3788
      %3790 = vmatmul.bf16.gmra.mxu0 %v3402
      %v3791 = vpop.f32.mrf.mxu0
      %v3792 = vadd.f32 0.0, %v3791
      %v3793 = vpop.f32.mrf.mxu0
      %v3794 = vadd.f32 0.0, %v3793
      %3795 = vdwg.mxu0
      %v3796 = vtanh.pop %v3477
      %v3797 = vtanh.pop %v3479
      %v3798 = vtanh.pop %v3482
      %v3799 = vtanh.pop %v3484
      %v3800 = vtanh.pop %v3487
      %v3801 = vtanh.pop %v3489
      %v3802 = vtanh.pop %v3492
      %v3803 = vtanh.pop %v3494
      %v3804 = vtanh.pop %v3497
      %v3805 = vtanh.pop %v3499
      %v3806 = vtanh.pop %v3502
      %v3807 = vtanh.pop %v3504
      %v3808 = vtanh.pop %v3507
      %v3809 = vtanh.pop %v3509
      %v3810 = vtanh.pop %v3512
      %v3811 = vtanh.pop %v3514
      %v3812 = vtanh.pop %v3517
      %v3813 = vtanh.pop %v3519
      %v3814 = vtanh.pop %v3522
      %v3815 = vtanh.pop %v3524
      %v3816 = vtanh.pop %v3527
      %v3817 = vtanh.pop %v3529
      %v3818 = vtanh.pop %v3532
      %v3819 = vtanh.pop %v3534
      %v3820 = vtanh.pop %v3537
      %v3821 = vtanh.pop %v3539
      %v3822 = vtanh.pop %v3542
      %v3823 = vtanh.pop %v3544
      %v3824 = vtanh.pop %v3547
      %v3825 = vtanh.pop %v3549
      %v3826 = vtanh.pop %v3552
      %v3827 = vtanh.pop %v3554
      %v3828 = vtanh.pop %v3557
      %v3829 = vtanh.pop %v3559
      %v3830 = vtanh.pop %v3562
      %v3831 = vtanh.pop %v3564
      %v3832 = vtanh.pop %v3567
      %v3833 = vtanh.pop %v3569
      %v3834 = vtanh.pop %v3572
      %v3835 = vtanh.pop %v3574
      %v3836 = vtanh.pop %v3577
      %v3837 = vtanh.pop %v3579
      %v3838 = vtanh.pop %v3582
      %v3839 = vtanh.pop %v3584
      %v3840 = vtanh.pop %v3587
      %v3841 = vtanh.pop %v3589
      %v3842 = vtanh.pop %v3592
      %v3843 = vtanh.pop %v3594
      %v3844 = vtanh.pop %v3597
      %v3845 = vtanh.pop %v3599
      %v3846 = vtanh.pop %v3602
      %v3847 = vtanh.pop %v3604
      %v3848 = vtanh.pop %v3607
      %v3849 = vtanh.pop %v3609
      %v3850 = vtanh.pop %v3612
      %v3851 = vtanh.pop %v3614
      %v3852 = vtanh.pop %v3617
      %v3853 = vtanh.pop %v3619
      %v3854 = vtanh.pop %v3622
      %v3855 = vtanh.pop %v3624
      %v3856 = vtanh.pop %v3627
      %v3857 = vtanh.pop %v3629
      %v3858 = vtanh.pop %v3632
      %v3859 = vtanh.pop %v3634
      %v3860 = vtanh.pop %v3637
      %v3861 = vtanh.pop %v3639
      %v3862 = vtanh.pop %v3642
      %v3863 = vtanh.pop %v3644
      %v3864 = vtanh.pop %v3647
      %v3865 = vtanh.pop %v3649
      %v3866 = vtanh.pop %v3652
      %v3867 = vtanh.pop %v3654
      %v3868 = vtanh.pop %v3657
      %v3869 = vtanh.pop %v3659
      %v3870 = vtanh.pop %v3662
      %v3871 = vtanh.pop %v3664
      %v3872 = vtanh.pop %v3667
      %v3873 = vtanh.pop %v3669
      %v3874 = vtanh.pop %v3672
      %v3875 = vtanh.pop %v3674
      %v3876 = vtanh.pop %v3677
      %v3877 = vtanh.pop %v3679
      %v3878 = vtanh.pop %v3682
      %v3879 = vtanh.pop %v3684
      %v3880 = vtanh.pop %v3687
      %v3881 = vtanh.pop %v3689
      %v3882 = vtanh.pop %v3692
      %v3883 = vtanh.pop %v3694
      %v3884 = vtanh.pop %v3697
      %v3885 = vtanh.pop %v3699
      %v3886 = vtanh.pop %v3702
      %v3887 = vtanh.pop %v3704
      %v3888 = vtanh.pop %v3707
      %v3889 = vtanh.pop %v3709
      %v3890 = vtanh.pop %v3712
      %v3891 = vtanh.pop %v3714
      %v3892 = vtanh.pop %v3717
      %v3893 = vtanh.pop %v3719
      %v3894 = vtanh.pop %v3722
      %v3895 = vtanh.pop %v3724
      %v3896 = vtanh.pop %v3727
      %v3897 = vtanh.pop %v3729
      %v3898 = vtanh.pop %v3732
      %v3899 = vtanh.pop %v3734
      %v3900 = vtanh.pop %v3737
      %v3901 = vtanh.pop %v3739
      %v3902 = vtanh.pop %v3742
      %v3903 = vtanh.pop %v3744
      %v3904 = vtanh.pop %v3747
      %v3905 = vtanh.pop %v3749
      %v3906 = vtanh.pop %v3752
      %v3907 = vtanh.pop %v3754
      %v3908 = vtanh.pop %v3757
      %v3909 = vtanh.pop %v3759
      %v3910 = vtanh.pop %v3762
      %v3911 = vtanh.pop %v3764
      %v3912 = vtanh.pop %v3767
      %v3913 = vtanh.pop %v3769
      %v3914 = vtanh.pop %v3772
      %v3915 = vtanh.pop %v3774
      %v3916 = vtanh.pop %v3777
      %v3917 = vtanh.pop %v3779
      %v3918 = vtanh.pop %v3782
      %v3919 = vtanh.pop %v3784
      %v3920 = vtanh.pop %v3787
      %v3921 = vtanh.pop %v3789
      %v3922 = vtanh.pop %v3792
      %v3923 = vtanh.pop %v3794
      %3924 = vst [vmem:[%s226] sm:$0xff] %v3796
      %3925 = vst [vmem:[%s226 + $0x8] sm:$0xff] %v3797
      %3926 = vst [vmem:[%s226 + $0x10] sm:$0xff] %v3798
      %3927 = vst [vmem:[%s226 + $0x18] sm:$0xff] %v3799
      %3928 = vst [vmem:[%s226 + $0x20] sm:$0xff] %v3800
      %3929 = vst [vmem:[%s226 + $0x28] sm:$0xff] %v3801
      %3930 = vst [vmem:[%s226 + $0x30] sm:$0xff] %v3802
      %3931 = vst [vmem:[%s226 + $0x38] sm:$0xff] %v3803
      %3932 = vst [vmem:[%s226 + $0x40] sm:$0xff] %v3804
      %3933 = vst [vmem:[%s226 + $0x48] sm:$0xff] %v3805
      %3934 = vst [vmem:[%s226 + $0x50] sm:$0xff] %v3806
      %3935 = vst [vmem:[%s226 + $0x58] sm:$0xff] %v3807
      %3936 = vst [vmem:[%s226 + $0x60] sm:$0xff] %v3808
      %3937 = vst [vmem:[%s226 + $0x68] sm:$0xff] %v3809
      %3938 = vst [vmem:[%s226 + $0x70] sm:$0xff] %v3810
      %3939 = vst [vmem:[%s226 + $0x78] sm:$0xff] %v3811
      %3940 = vst [vmem:[%s226 + $0x80] sm:$0xff] %v3812
      %3941 = vst [vmem:[%s226 + $0x88] sm:$0xff] %v3813
      %3942 = vst [vmem:[%s226 + $0x90] sm:$0xff] %v3814
      %3943 = vst [vmem:[%s226 + $0x98] sm:$0xff] %v3815
      %3944 = vst [vmem:[%s226 + $0xa0] sm:$0xff] %v3816
      %3945 = vst [vmem:[%s226 + $0xa8] sm:$0xff] %v3817
      %3946 = vst [vmem:[%s226 + $0xb0] sm:$0xff] %v3818
      %3947 = vst [vmem:[%s226 + $0xb8] sm:$0xff] %v3819
      %3948 = vst [vmem:[%s226 + $0xc0] sm:$0xff] %v3820
      %3949 = vst [vmem:[%s226 + $0xc8] sm:$0xff] %v3821
      %3950 = vst [vmem:[%s226 + $0xd0] sm:$0xff] %v3822
      %3951 = vst [vmem:[%s226 + $0xd8] sm:$0xff] %v3823
      %3952 = vst [vmem:[%s226 + $0xe0] sm:$0xff] %v3824
      %3953 = vst [vmem:[%s226 + $0xe8] sm:$0xff] %v3825
      %3954 = vst [vmem:[%s226 + $0xf0] sm:$0xff] %v3826
      %3955 = vst [vmem:[%s226 + $0xf8] sm:$0xff] %v3827
      %3956 = vst [vmem:[%s226 + $0x100] sm:$0xff] %v3828
      %3957 = vst [vmem:[%s226 + $0x108] sm:$0xff] %v3829
      %3958 = vst [vmem:[%s226 + $0x110] sm:$0xff] %v3830
      %3959 = vst [vmem:[%s226 + $0x118] sm:$0xff] %v3831
      %3960 = vst [vmem:[%s226 + $0x120] sm:$0xff] %v3832
      %3961 = vst [vmem:[%s226 + $0x128] sm:$0xff] %v3833
      %3962 = vst [vmem:[%s226 + $0x130] sm:$0xff] %v3834
      %3963 = vst [vmem:[%s226 + $0x138] sm:$0xff] %v3835
      %3964 = vst [vmem:[%s226 + $0x140] sm:$0xff] %v3836
      %3965 = vst [vmem:[%s226 + $0x148] sm:$0xff] %v3837
      %3966 = vst [vmem:[%s226 + $0x150] sm:$0xff] %v3838
      %3967 = vst [vmem:[%s226 + $0x158] sm:$0xff] %v3839
      %3968 = vst [vmem:[%s226 + $0x160] sm:$0xff] %v3840
      %3969 = vst [vmem:[%s226 + $0x168] sm:$0xff] %v3841
      %3970 = vst [vmem:[%s226 + $0x170] sm:$0xff] %v3842
      %3971 = vst [vmem:[%s226 + $0x178] sm:$0xff] %v3843
      %3972 = vst [vmem:[%s226 + $0x180] sm:$0xff] %v3844
      %3973 = vst [vmem:[%s226 + $0x188] sm:$0xff] %v3845
      %3974 = vst [vmem:[%s226 + $0x190] sm:$0xff] %v3846
      %3975 = vst [vmem:[%s226 + $0x198] sm:$0xff] %v3847
      %3976 = vst [vmem:[%s226 + $0x1a0] sm:$0xff] %v3848
      %3977 = vst [vmem:[%s226 + $0x1a8] sm:$0xff] %v3849
      %3978 = vst [vmem:[%s226 + $0x1b0] sm:$0xff] %v3850
      %3979 = vst [vmem:[%s226 + $0x1b8] sm:$0xff] %v3851
      %3980 = vst [vmem:[%s226 + $0x1c0] sm:$0xff] %v3852
      %3981 = vst [vmem:[%s226 + $0x1c8] sm:$0xff] %v3853
      %3982 = vst [vmem:[%s226 + $0x1d0] sm:$0xff] %v3854
      %3983 = vst [vmem:[%s226 + $0x1d8] sm:$0xff] %v3855
      %3984 = vst [vmem:[%s226 + $0x1e0] sm:$0xff] %v3856
      %3985 = vst [vmem:[%s226 + $0x1e8] sm:$0xff] %v3857
      %3986 = vst [vmem:[%s226 + $0x1f0] sm:$0xff] %v3858
      %3987 = vst [vmem:[%s226 + $0x1f8] sm:$0xff] %v3859
      %3988 = vst [vmem:[%s226 + $0x200] sm:$0xff] %v3860
      %3989 = vst [vmem:[%s226 + $0x208] sm:$0xff] %v3861
      %3990 = vst [vmem:[%s226 + $0x210] sm:$0xff] %v3862
      %3991 = vst [vmem:[%s226 + $0x218] sm:$0xff] %v3863
      %3992 = vst [vmem:[%s226 + $0x220] sm:$0xff] %v3864
      %3993 = vst [vmem:[%s226 + $0x228] sm:$0xff] %v3865
      %3994 = vst [vmem:[%s226 + $0x230] sm:$0xff] %v3866
      %3995 = vst [vmem:[%s226 + $0x238] sm:$0xff] %v3867
      %3996 = vst [vmem:[%s226 + $0x240] sm:$0xff] %v3868
      %3997 = vst [vmem:[%s226 + $0x248] sm:$0xff] %v3869
      %3998 = vst [vmem:[%s226 + $0x250] sm:$0xff] %v3870
      %3999 = vst [vmem:[%s226 + $0x258] sm:$0xff] %v3871
      %4000 = vst [vmem:[%s226 + $0x260] sm:$0xff] %v3872
      %4001 = vst [vmem:[%s226 + $0x268] sm:$0xff] %v3873
      %4002 = vst [vmem:[%s226 + $0x270] sm:$0xff] %v3874
      %4003 = vst [vmem:[%s226 + $0x278] sm:$0xff] %v3875
      %4004 = vst [vmem:[%s226 + $0x280] sm:$0xff] %v3876
      %4005 = vst [vmem:[%s226 + $0x288] sm:$0xff] %v3877
      %4006 = vst [vmem:[%s226 + $0x290] sm:$0xff] %v3878
      %4007 = vst [vmem:[%s226 + $0x298] sm:$0xff] %v3879
      %4008 = vst [vmem:[%s226 + $0x2a0] sm:$0xff] %v3880
      %4009 = vst [vmem:[%s226 + $0x2a8] sm:$0xff] %v3881
      %4010 = vst [vmem:[%s226 + $0x2b0] sm:$0xff] %v3882
      %4011 = vst [vmem:[%s226 + $0x2b8] sm:$0xff] %v3883
      %4012 = vst [vmem:[%s226 + $0x2c0] sm:$0xff] %v3884
      %4013 = vst [vmem:[%s226 + $0x2c8] sm:$0xff] %v3885
      %4014 = vst [vmem:[%s226 + $0x2d0] sm:$0xff] %v3886
      %4015 = vst [vmem:[%s226 + $0x2d8] sm:$0xff] %v3887
      %4016 = vst [vmem:[%s226 + $0x2e0] sm:$0xff] %v3888
      %4017 = vst [vmem:[%s226 + $0x2e8] sm:$0xff] %v3889
      %4018 = vst [vmem:[%s226 + $0x2f0] sm:$0xff] %v3890
      %4019 = vst [vmem:[%s226 + $0x2f8] sm:$0xff] %v3891
      %4020 = vst [vmem:[%s226 + $0x300] sm:$0xff] %v3892
      %4021 = vst [vmem:[%s226 + $0x308] sm:$0xff] %v3893
      %4022 = vst [vmem:[%s226 + $0x310] sm:$0xff] %v3894
      %4023 = vst [vmem:[%s226 + $0x318] sm:$0xff] %v3895
      %4024 = vst [vmem:[%s226 + $0x320] sm:$0xff] %v3896
      %4025 = vst [vmem:[%s226 + $0x328] sm:$0xff] %v3897
      %4026 = vst [vmem:[%s226 + $0x330] sm:$0xff] %v3898
      %4027 = vst [vmem:[%s226 + $0x338] sm:$0xff] %v3899
      %4028 = vst [vmem:[%s226 + $0x340] sm:$0xff] %v3900
      %4029 = vst [vmem:[%s226 + $0x348] sm:$0xff] %v3901
      %4030 = vst [vmem:[%s226 + $0x350] sm:$0xff] %v3902
      %4031 = vst [vmem:[%s226 + $0x358] sm:$0xff] %v3903
      %4032 = vst [vmem:[%s226 + $0x360] sm:$0xff] %v3904
      %4033 = vst [vmem:[%s226 + $0x368] sm:$0xff] %v3905
      %4034 = vst [vmem:[%s226 + $0x370] sm:$0xff] %v3906
      %4035 = vst [vmem:[%s226 + $0x378] sm:$0xff] %v3907
      %4036 = vst [vmem:[%s226 + $0x380] sm:$0xff] %v3908
      %4037 = vst [vmem:[%s226 + $0x388] sm:$0xff] %v3909
      %4038 = vst [vmem:[%s226 + $0x390] sm:$0xff] %v3910
      %4039 = vst [vmem:[%s226 + $0x398] sm:$0xff] %v3911
      %4040 = vst [vmem:[%s226 + $0x3a0] sm:$0xff] %v3912
      %4041 = vst [vmem:[%s226 + $0x3a8] sm:$0xff] %v3913
      %4042 = vst [vmem:[%s226 + $0x3b0] sm:$0xff] %v3914
      %4043 = vst [vmem:[%s226 + $0x3b8] sm:$0xff] %v3915
      %4044 = vst [vmem:[%s226 + $0x3c0] sm:$0xff] %v3916
      %4045 = vst [vmem:[%s226 + $0x3c8] sm:$0xff] %v3917
      %4046 = vst [vmem:[%s226 + $0x3d0] sm:$0xff] %v3918
      %4047 = vst [vmem:[%s226 + $0x3d8] sm:$0xff] %v3919
      %4048 = vst [vmem:[%s226 + $0x3e0] sm:$0xff] %v3920
      %4049 = vst [vmem:[%s226 + $0x3e8] sm:$0xff] %v3921
      %4050 = vst [vmem:[%s226 + $0x3f0] sm:$0xff] %v3922
      %4051 = vst [vmem:[%s226 + $0x3f8] sm:$0xff] %v3923
      %s4052 = smul.u32 128, %s16
      %p4053 = scmp.lt.s32.totalorder %s4052, 255
      %s4054 = scalar_select %p4053, %s4052, 255
      %s4055 = smul.addr %s4054, 8
      %s4056 = scalar_lea.vmem %s5, %s4055
      // Predicated region
      $region41: #{simple_mapping_net.1} parent=39 // pred_check
        %p4057 = pneg %p144
      $region42: #{simple_mapping_net.1} parent=39 // pred_check_branch
        %4059 = sbr.rel (%p4057) target = $region44
      $region43: #{simple_mapping_net.1} parent=39 // pred_region
        %s4060 = smul.u32 128, %s16
      $region44: #{simple_mapping_net.1} parent=39 // pred_fallthru
        _
    $region40: #{simple_mapping_net.1} parent=5 // pred_fallthru
      _
    %p4061 = scmp.le.s32.totalorder 2, %s11
    // Predicated region
    $region45: #{simple_mapping_net.1} parent=5 // pred_check
      %p4062 = pneg %p4061
    $region46: #{simple_mapping_net.1} parent=5 // pred_check_branch
      %4064 = sbr.rel (%p4062) target = $region48
    $region47: #{simple_mapping_net.1} parent=5 // pred_region
      %s4065 = ssub.s32 %s11, 2
      // Predicated region
      $region49: #{simple_mapping_net.1} parent=47 // pred_check
        %p4066 = pneg %p150
      $region50: #{simple_mapping_net.1} parent=47 // pred_check_branch
        %4068 = sbr.rel (%p4066) target = $region52
      $region51: #{simple_mapping_net.1} parent=47 // pred_region
        %s4069 = smul.u32 128, %s17
        %p4070 = scmp.lt.s32.totalorder %s4069, 255
        %s4071 = scalar_select %p4070, %s4069, 255
        %s4072 = smul.addr %s4071, 8
        %s4073 = scalar_lea.vmem %s5, %s4072
      $region52: #{simple_mapping_net.1} parent=47 // pred_fallthru
        _
    $region48: #{simple_mapping_net.1} parent=5 // pred_fallthru
      _
  $region6: #{simple_mapping_net.1} parent=0 // loop_footer
    %s15 = sadd.s32 1, %s11
  $region7: #{simple_mapping_net.1} parent=0 // loop_footer_branch
    %10 = sbr.rel target = $region3
  $region8: #{simple_mapping_net.1} parent=0 // loop_exit
    _

</llo_original>
